<compile_context>
chip_gen: v7x
topology: tpu7x:2x2x1
jax: 0.10.0
libtpu: 0.0.40
codegen_flags: <defaults>
</compile_context>

<pallas_src>
import functools
import math

import jax
import jax.numpy as jnp
from jax.experimental import pallas as pl
from jax.experimental.pallas import tpu as pltpu

SCALE = math.sqrt(0.5)
PAD_idx = 0
SOS_idx = 1


# ----------------------------- small helpers --------------------------------

def _mm(x, w):
    """(M, K) @ (K, N) -> (M, N); bf16 operands, f32 accumulation on the MXU."""
    return jax.lax.dot_general(
        x.astype(jnp.bfloat16), w.astype(jnp.bfloat16),
        (((1,), (0,)), ((), ())),
        preferred_element_type=jnp.float32)


def _round_up(x, m):
    return ((x + m - 1) // m) * m


def _const_spec(shape):
    """Full-array block whose index never changes -> fetched once, resident."""
    n = len(shape)
    return pl.BlockSpec(tuple(shape), lambda b, n=n: (0,) * n)


def _batch_spec(full_shape):
    """One batch element per grid step; trailing dims are full-extent."""
    n = len(full_shape)
    blk = (1,) + tuple(full_shape[1:])
    return pl.BlockSpec(blk, lambda b, n=n: (b,) + (0,) * (n - 1))


def _vmem_limit_bytes(operands, out_shapes):
    total = 0
    for a in list(operands) + list(out_shapes):
        total += math.prod(a.shape) * jnp.dtype(a.dtype).itemsize
    # 2x for pipeline double-buffering + headroom; clamp to a window that is
    # >= every chip's default scoped limit and <= v7x's physical VMEM.
    return int(min(max(2 * total + (8 << 20), 32 << 20), 56 << 20))


# ----------------------------- Pallas kernels -------------------------------

def _encoder_kernel(emb_ref, we_ref, be_ref, wcv_ref, wcg_ref, bcv_ref, bcg_ref,
                    wh_ref, bh_ref, conved_ref, comb_ref, *, n_layers, K, L, H):
    # emb_ref: (1, L, E) f32; conv weights pre-split into GLU value/gate halves.
    emb = emb_ref[0]                                           # (L, E) f32
    x = _mm(emb, we_ref[...]) + be_ref[...]                    # (L, H) f32

    p = (K - 1) // 2                                           # 'same' pad (odd K)
    zpad = jnp.zeros((p, H), jnp.float32) if p > 0 else None
    for l in range(n_layers):                                  # fused, VMEM-resident
        # padded input as a VALUE (no scratch store/reload); taps = static slices
        xp = jnp.concatenate([zpad, x, zpad], axis=0) if p > 0 else x
        accv = _mm(xp[0:L], wcv_ref[l, 0])
        accg = _mm(xp[0:L], wcg_ref[l, 0])
        for k in range(1, K):
            tap = xp[k:k + L]
            accv = accv + _mm(tap, wcv_ref[l, k])
            accg = accg + _mm(tap, wcg_ref[l, k])
        accv = accv + bcv_ref[l]
        accg = accg + bcg_ref[l]
        glu = accv * jax.nn.sigmoid(accg)                      # GLU (f32 elementwise)
        x = (glu + x) * SCALE                                  # residual * sqrt(0.5)

    conved = _mm(x, wh_ref[...]) + bh_ref[...]                 # (L, E) f32
    conved_ref[0] = conved.astype(conved_ref.dtype)
    comb_ref[0] = ((conved + emb) * SCALE).astype(comb_ref.dtype)


def _decoder_kernel(emb_ref, encc_ref, encv_ref, mask_ref,
                    we_ref, be_ref, wcv_ref, wcg_ref, bcv_ref, bcg_ref,
                    wah_ref, bah_ref, wae_ref, bae_ref,
                    wh_ref, bh_ref, wo_ref, bo_ref,
                    out_ref, attn_ref, *, n_layers, K, Lt, H):
    # emb_ref: (1, Lt, E) f32; encc/encv: (1, Lsp, E) bf16 (Ls padded to 128-mult);
    # mask_ref: (1, 1, Lsp) f32, 1.0 = valid source position.
    emb = emb_ref[0]                                           # (Lt, E) f32
    encc = encc_ref[0]                                         # (Lsp, E) bf16
    encv = encv_ref[0]                                         # (Lsp, E) bf16
    valid = mask_ref[0] > 0.5                                  # (1, Lsp) bool

    x = _mm(emb, we_ref[...]) + be_ref[...]                    # (Lt, H) f32
    zpad = jnp.zeros((K - 1, H), jnp.float32) if K > 1 else None

    attn = None
    for l in range(n_layers):                                  # fused, VMEM-resident
        # causal conv (left pad K-1) + GLU, value/gate as separate matmuls
        xp = jnp.concatenate([zpad, x], axis=0) if K > 1 else x
        accv = _mm(xp[0:Lt], wcv_ref[l, 0])
        accg = _mm(xp[0:Lt], wcg_ref[l, 0])
        for k in range(1, K):
            tap = xp[k:k + Lt]
            accv = accv + _mm(tap, wcv_ref[l, k])
            accg = accg + _mm(tap, wcg_ref[l, k])
        conved = (accv + bcv_ref[l]) * jax.nn.sigmoid(accg + bcg_ref[l])  # (Lt,H)

        # attention: 'qd,kd->qk' contraction over E (no pre-transposed keys)
        combined = (_mm(conved, wah_ref[...]) + bah_ref[...] + emb) * SCALE  # (Lt,E)
        energy = jax.lax.dot_general(
            combined.astype(jnp.bfloat16), encc,
            (((1,), (1,)), ((), ())),
            preferred_element_type=jnp.float32)                # (Lt, Lsp)
        energy = jnp.where(valid, energy, -1e9)
        energy = energy - jnp.max(energy, axis=-1, keepdims=True)
        e = jnp.exp(energy)
        attn = e * pl.reciprocal(jnp.sum(e, axis=-1, keepdims=True), approx=True)
        attended = _mm(attn, encv)                             # (Lt, E) f32
        attended = _mm(attended, wae_ref[...]) + bae_ref[...]  # (Lt, H) f32
        conved = (conved + attended) * SCALE
        x = (conved + x) * SCALE

    dec_conved = _mm(x, wh_ref[...]) + bh_ref[...]             # (Lt, E)
    logits = _mm(dec_conved, wo_ref[...]) + bo_ref[...]        # (Lt, Vp) lane-dense
    out_ref[0] = logits.astype(out_ref.dtype)
    attn_ref[0] = attn.astype(attn_ref.dtype)                  # last layer only


# ------------------------------- model glue ---------------------------------

def init_params(key, in_dim, emb_dim, h_dim, out_dim,
                enc_layers, dec_layers, kernel_size, max_len):
    keys = iter(jax.random.split(key, 32))

    def nrm(shape, scale=0.1, dtype=jnp.float32):
        return (jax.random.normal(next(keys), shape, jnp.float32) * scale).astype(dtype)

    K, H, E = kernel_size, h_dim, emb_dim
    bf = jnp.bfloat16
    # GLU conv weights are stored pre-split into value / gate halves:
    #   a PyTorch Conv1d weight W (2H, H, K) maps to
    #   wv[l, k] = W[:H, :, k].T   and   wg[l, k] = W[H:, :, k].T
    # Linear weights are stored (in_features, out_features) in bf16; biases f32.
    p = {
        "enc_tok_emb": nrm((in_dim, E)),
        "enc_pos_emb": nrm((max_len, E)),
        "enc_emb2hid_w": nrm((E, H), dtype=bf),
        "enc_emb2hid_b": jnp.zeros((1, H), jnp.float32),
        "enc_hid2emb_w": nrm((H, E), dtype=bf),
        "enc_hid2emb_b": jnp.zeros((1, E), jnp.float32),
        "enc_conv_wv": nrm((enc_layers, K, H, H), dtype=bf),
        "enc_conv_wg": nrm((enc_layers, K, H, H), dtype=bf),
        "enc_conv_bv": jnp.zeros((enc_layers, 1, H), jnp.float32),
        "enc_conv_bg": jnp.zeros((enc_layers, 1, H), jnp.float32),
        "dec_tok_emb": nrm((out_dim, E)),
        "dec_pos_emb": nrm((max_len, E)),
        "dec_emb2hid_w": nrm((E, H), dtype=bf),
        "dec_emb2hid_b": jnp.zeros((1, H), jnp.float32),
        "dec_hid2emb_w": nrm((H, E), dtype=bf),
        "dec_hid2emb_b": jnp.zeros((1, E), jnp.float32),
        "attn_hid2emb_w": nrm((H, E), dtype=bf),
        "attn_hid2emb_b": jnp.zeros((1, E), jnp.float32),
        "attn_emb2hid_w": nrm((E, H), dtype=bf),
        "attn_emb2hid_b": jnp.zeros((1, H), jnp.float32),
        "fc_out_w": nrm((E, out_dim), dtype=bf),
        "fc_out_b": jnp.zeros((1, out_dim), jnp.float32),
        "dec_conv_wv": nrm((dec_layers, K, H, H), dtype=bf),
        "dec_conv_wg": nrm((dec_layers, K, H, H), dtype=bf),
        "dec_conv_bv": jnp.zeros((dec_layers, 1, H), jnp.float32),
        "dec_conv_bg": jnp.zeros((dec_layers, 1, H), jnp.float32),
    }
    return p


def conv_encoder(params, src):
    # dropout is a no-op here (inference / dropout=0.0)
    B, Ls = src.shape
    E = params["enc_tok_emb"].shape[1]
    H = params["enc_emb2hid_w"].shape[1]
    wcv, wcg = params["enc_conv_wv"], params["enc_conv_wg"]
    n_layers, K = wcv.shape[0], wcv.shape[1]
    assert n_layers >= 1
    assert K % 2 == 1, "encoder 'same' padding requires an odd kernel_size"

    emb = params["enc_tok_emb"][src] + params["enc_pos_emb"][:Ls][None]  # (B,Ls,E)

    args = (emb,
            params["enc_emb2hid_w"], params["enc_emb2hid_b"],
            wcv, wcg, params["enc_conv_bv"], params["enc_conv_bg"],
            params["enc_hid2emb_w"], params["enc_hid2emb_b"])
    out_shapes = (jax.ShapeDtypeStruct((B, Ls, E), jnp.bfloat16),   # conved
                  jax.ShapeDtypeStruct((B, Ls, E), jnp.bfloat16))   # combined
    in_specs = [_batch_spec(emb.shape)] + [_const_spec(a.shape) for a in args[1:]]
    out_specs = (_batch_spec((B, Ls, E)), _batch_spec((B, Ls, E)))

    kern = functools.partial(_encoder_kernel, n_layers=n_layers, K=K, L=Ls, H=H)
    conved, combined = pl.pallas_call(
        kern,
        out_shape=out_shapes,
        grid=(B,),
        in_specs=in_specs,
        out_specs=out_specs,
        compiler_params=pltpu.CompilerParams(
            dimension_semantics=("parallel",),
            vmem_limit_bytes=_vmem_limit_bytes(args, out_shapes)),
    )(*args)

    enc_mask = (src != PAD_idx).astype(jnp.float32)[:, None, :]      # (B, 1, Ls)
    return conved, combined, enc_mask


def conv_decoder(params, dec_in, enc_conved, enc_combined, enc_mask):
    B, Lt = dec_in.shape
    E = params["dec_tok_emb"].shape[1]
    H = params["dec_emb2hid_w"].shape[1]
    out_dim = params["fc_out_w"].shape[1]
    wcv, wcg = params["dec_conv_wv"], params["dec_conv_wg"]
    n_layers, K = wcv.shape[0], wcv.shape[1]
    Ls = enc_conved.shape[1]
    assert n_layers >= 1

    emb = params["dec_tok_emb"][dec_in] + params["dec_pos_emb"][:Lt][None]

    # Lane-dense padding at the pallas boundary (sliced off below): source
    # length and vocab are padded to multiples of 128 so the decoder outputs
    # are unmasked vector stores. Padded source columns are masked out.
    Lsp = _round_up(Ls, 128)
    Vp = _round_up(out_dim, 128)
    encc = jnp.pad(enc_conved, ((0, 0), (0, Lsp - Ls), (0, 0)))       # bf16
    encv = jnp.pad(enc_combined, ((0, 0), (0, Lsp - Ls), (0, 0)))     # bf16
    maskp = jnp.pad(enc_mask, ((0, 0), (0, 0), (0, Lsp - Ls)))        # pads invalid
    wo = jnp.pad(params["fc_out_w"], ((0, 0), (0, Vp - out_dim)))
    bo = jnp.pad(params["fc_out_b"], ((0, 0), (0, Vp - out_dim)))

    args = (emb, encc, encv, maskp,
            params["dec_emb2hid_w"], params["dec_emb2hid_b"],
            wcv, wcg, params["dec_conv_bv"], params["dec_conv_bg"],
            params["attn_hid2emb_w"], params["attn_hid2emb_b"],
            params["attn_emb2hid_w"], params["attn_emb2hid_b"],
            params["dec_hid2emb_w"], params["dec_hid2emb_b"],
            wo, bo)
    out_shapes = (jax.ShapeDtypeStruct((B, Lt, Vp), jnp.float32),
                  jax.ShapeDtypeStruct((B, Lt, Lsp), jnp.float32))
    in_specs = [_batch_spec(emb.shape), _batch_spec(encc.shape),
                _batch_spec(encv.shape), _batch_spec(maskp.shape)]
    in_specs += [_const_spec(a.shape) for a in args[4:]]
    out_specs = (_batch_spec((B, Lt, Vp)), _batch_spec((B, Lt, Lsp)))

    kern = functools.partial(_decoder_kernel, n_layers=n_layers, K=K, Lt=Lt, H=H)
    logits_p, attn_p = pl.pallas_call(
        kern,
        out_shape=out_shapes,
        grid=(B,),
        in_specs=in_specs,
        out_specs=out_specs,
        compiler_params=pltpu.CompilerParams(
            dimension_semantics=("parallel",),
            vmem_limit_bytes=_vmem_limit_bytes(args, out_shapes)),
    )(*args)

    return logits_p[:, :, :out_dim], attn_p[:, :, :Ls]


@jax.jit
def _teacher_forced_forward(params, src, dec_in):
    enc_conved, enc_combined, enc_mask = conv_encoder(params, src)
    return conv_decoder(params, dec_in, enc_conved, enc_combined, enc_mask)


def conv_s2s_forward(params, src, src_lens, tgt, tgt_lens, teacher_forcing, rng):
    """Matches ConvS2S.forward; src_lens / tgt_lens unused (as in reference)."""
    # Avoid a device->host sync for degenerate teacher-forcing probabilities.
    if teacher_forcing >= 1.0:
        use_tf = True
    elif teacher_forcing <= 0.0:
        use_tf = False
    else:
        use_tf = bool(jax.random.uniform(rng, ()) < teacher_forcing)
    if use_tf:
        return _teacher_forced_forward(params, src, tgt[:, :-1])
    # TODO(synk): greedy cached decoding (cache_mode) not implemented.
    raise NotImplementedError("greedy cached decoding not implemented")


# ---------------------------------- main -------------------------------------

if __name__ == "__main__":
    in_dim, out_dim = 16, 16
    emb_dim, h_dim = 32, 32
    enc_layers, dec_layers = 2, 2
    kernel_size = 3
    max_len = 16
    B, Ls, Lt = 2, 8, 8

    key = jax.random.PRNGKey(0)
    k_par, k_src, k_tgt, k_tf = jax.random.split(key, 4)
    params = init_params(k_par, in_dim, emb_dim, h_dim, out_dim,
                         enc_layers, dec_layers, kernel_size, max_len)

    src = jax.random.randint(k_src, (B, Ls), 2, in_dim, dtype=jnp.int32)
    tgt = jax.random.randint(k_tgt, (B, Lt), 2, out_dim, dtype=jnp.int32)
    tgt = tgt.at[:, 0].set(SOS_idx)

    dec_outs, attn_ws = conv_s2s_forward(params, src, None, tgt, None,
                                         teacher_forcing=1.0, rng=k_tf)
    jax.block_until_ready((dec_outs, attn_ws))

    assert dec_outs.shape == (B, Lt - 1, out_dim)
    assert attn_ws.shape == (B, Lt - 1, Ls)
    assert bool(jnp.all(jnp.isfinite(dec_outs)))
    assert bool(jnp.all(jnp.isfinite(attn_ws)))
    print("KERNEL_OK")
</pallas_src>

<mosaic_0001>
module attributes {stable_mosaic.version = 11 : i64} {
  func.func @_encoder_kernel(%arg0: i32, %arg1: memref<1x8x32xf32, #tpu.memory_space<vmem>>, %arg2: memref<32x32xbf16, #tpu.memory_space<vmem>>, %arg3: memref<1x32xf32, #tpu.memory_space<vmem>>, %arg4: memref<2x3x32x32xbf16, #tpu.memory_space<vmem>>, %arg5: memref<2x3x32x32xbf16, #tpu.memory_space<vmem>>, %arg6: memref<2x1x32xf32, #tpu.memory_space<vmem>>, %arg7: memref<2x1x32xf32, #tpu.memory_space<vmem>>, %arg8: memref<32x32xbf16, #tpu.memory_space<vmem>>, %arg9: memref<1x32xf32, #tpu.memory_space<vmem>>, %arg10: memref<1x8x32xbf16, #tpu.memory_space<vmem>>, %arg11: memref<1x8x32xbf16, #tpu.memory_space<vmem>>) attributes {dimension_semantics = [#tpu.dimension_semantics<parallel>], iteration_bounds = array<i64: 2>, scalar_prefetch = 0 : i64, scratch_operands = 0 : i64, tpu.core_type = #tpu.core_type<tc>, window_params = [{transform_indices = @transform_0, window_bounds = array<i64: 1, 8, 32>}, {pipeline_mode = #tpu.pipeline_mode<synchronous>, transform_indices = @transform_1, window_bounds = array<i64: 32, 32>}, {pipeline_mode = #tpu.pipeline_mode<synchronous>, transform_indices = @transform_2, window_bounds = array<i64: 1, 32>}, {pipeline_mode = #tpu.pipeline_mode<synchronous>, transform_indices = @transform_3, window_bounds = array<i64: 2, 3, 32, 32>}, {pipeline_mode = #tpu.pipeline_mode<synchronous>, transform_indices = @transform_4, window_bounds = array<i64: 2, 3, 32, 32>}, {pipeline_mode = #tpu.pipeline_mode<synchronous>, transform_indices = @transform_5, window_bounds = array<i64: 2, 1, 32>}, {pipeline_mode = #tpu.pipeline_mode<synchronous>, transform_indices = @transform_6, window_bounds = array<i64: 2, 1, 32>}, {pipeline_mode = #tpu.pipeline_mode<synchronous>, transform_indices = @transform_7, window_bounds = array<i64: 32, 32>}, {pipeline_mode = #tpu.pipeline_mode<synchronous>, transform_indices = @transform_8, window_bounds = array<i64: 1, 32>}, {transform_indices = @transform_9, window_bounds = array<i64: 1, 8, 32>}, {transform_indices = @transform_10, window_bounds = array<i64: 1, 8, 32>}]} {
    %c0 = arith.constant 0 : index
    %c0_0 = arith.constant 0 : index
    %c0_1 = arith.constant 0 : index
    %0 = vector.load %arg1[%c0, %c0_0, %c0_1] : memref<1x8x32xf32, #tpu.memory_space<vmem>>, vector<1x8x32xf32>
    %1 = vector.shape_cast %0 : vector<1x8x32xf32> to vector<8x32xf32>
    %c0_2 = arith.constant 0 : index
    %c0_3 = arith.constant 0 : index
    %2 = vector.load %arg2[%c0_2, %c0_3] : memref<32x32xbf16, #tpu.memory_space<vmem>>, vector<32x32xbf16>
    %3 = arith.truncf %1 : vector<8x32xf32> to vector<8x32xbf16>
    %cst = arith.constant dense<0.000000e+00> : vector<8x32xf32>
    %4 = tpu.matmul %3, %2, %cst {dimension_numbers = #tpu.dot_dimension_numbers<[1], [0], [0], [1], [0, 0, 1, 1], [], []>} : vector<8x32xbf16>, vector<32x32xbf16>, vector<8x32xf32> -> vector<8x32xf32>
    %c0_4 = arith.constant 0 : index
    %c0_5 = arith.constant 0 : index
    %5 = vector.load %arg3[%c0_4, %c0_5] : memref<1x32xf32, #tpu.memory_space<vmem>>, vector<1x32xf32>
    %6 = vector.broadcast %5 : vector<1x32xf32> to vector<8x32xf32>
    %7 = arith.addf %4, %6 : vector<8x32xf32>
    %cst_6 = arith.constant 0.000000e+00 : f32
    %8 = vector.broadcast %cst_6 : f32 to vector<1x32xf32>
    %9 = tpu.concatenate %8, %7, %8 in 0 : vector<1x32xf32>, vector<8x32xf32>, vector<1x32xf32> -> vector<10x32xf32>
    %10 = vector.extract_strided_slice %9 {offsets = [0, 0], sizes = [8, 32], strides = [1, 1]} : vector<10x32xf32> to vector<8x32xf32>
    %c0_7 = arith.constant 0 : index
    %c0_8 = arith.constant 0 : index
    %c0_9 = arith.constant 0 : index
    %c0_10 = arith.constant 0 : index
    %11 = vector.load %arg4[%c0_7, %c0_8, %c0_9, %c0_10] : memref<2x3x32x32xbf16, #tpu.memory_space<vmem>>, vector<1x1x32x32xbf16>
    %12 = vector.shape_cast %11 : vector<1x1x32x32xbf16> to vector<32x32xbf16>
    %13 = arith.truncf %10 : vector<8x32xf32> to vector<8x32xbf16>
    %cst_11 = arith.constant dense<0.000000e+00> : vector<8x32xf32>
    %14 = tpu.matmul %13, %12, %cst_11 {dimension_numbers = #tpu.dot_dimension_numbers<[1], [0], [0], [1], [0, 0, 1, 1], [], []>} : vector<8x32xbf16>, vector<32x32xbf16>, vector<8x32xf32> -> vector<8x32xf32>
    %15 = vector.extract_strided_slice %9 {offsets = [0, 0], sizes = [8, 32], strides = [1, 1]} : vector<10x32xf32> to vector<8x32xf32>
    %c0_12 = arith.constant 0 : index
    %c0_13 = arith.constant 0 : index
    %c0_14 = arith.constant 0 : index
    %c0_15 = arith.constant 0 : index
    %16 = vector.load %arg5[%c0_12, %c0_13, %c0_14, %c0_15] : memref<2x3x32x32xbf16, #tpu.memory_space<vmem>>, vector<1x1x32x32xbf16>
    %17 = vector.shape_cast %16 : vector<1x1x32x32xbf16> to vector<32x32xbf16>
    %18 = arith.truncf %15 : vector<8x32xf32> to vector<8x32xbf16>
    %cst_16 = arith.constant dense<0.000000e+00> : vector<8x32xf32>
    %19 = tpu.matmul %18, %17, %cst_16 {dimension_numbers = #tpu.dot_dimension_numbers<[1], [0], [0], [1], [0, 0, 1, 1], [], []>} : vector<8x32xbf16>, vector<32x32xbf16>, vector<8x32xf32> -> vector<8x32xf32>
    %20 = vector.extract_strided_slice %9 {offsets = [1, 0], sizes = [8, 32], strides = [1, 1]} : vector<10x32xf32> to vector<8x32xf32>
    %c0_17 = arith.constant 0 : index
    %c1 = arith.constant 1 : index
    %c0_18 = arith.constant 0 : index
    %c0_19 = arith.constant 0 : index
    %21 = vector.load %arg4[%c0_17, %c1, %c0_18, %c0_19] : memref<2x3x32x32xbf16, #tpu.memory_space<vmem>>, vector<1x1x32x32xbf16>
    %22 = vector.shape_cast %21 : vector<1x1x32x32xbf16> to vector<32x32xbf16>
    %23 = arith.truncf %20 : vector<8x32xf32> to vector<8x32xbf16>
    %cst_20 = arith.constant dense<0.000000e+00> : vector<8x32xf32>
    %24 = tpu.matmul %23, %22, %cst_20 {dimension_numbers = #tpu.dot_dimension_numbers<[1], [0], [0], [1], [0, 0, 1, 1], [], []>} : vector<8x32xbf16>, vector<32x32xbf16>, vector<8x32xf32> -> vector<8x32xf32>
    %25 = arith.addf %14, %24 : vector<8x32xf32>
    %c0_21 = arith.constant 0 : index
    %c1_22 = arith.constant 1 : index
    %c0_23 = arith.constant 0 : index
    %c0_24 = arith.constant 0 : index
    %26 = vector.load %arg5[%c0_21, %c1_22, %c0_23, %c0_24] : memref<2x3x32x32xbf16, #tpu.memory_space<vmem>>, vector<1x1x32x32xbf16>
    %27 = vector.shape_cast %26 : vector<1x1x32x32xbf16> to vector<32x32xbf16>
    %28 = arith.truncf %20 : vector<8x32xf32> to vector<8x32xbf16>
    %cst_25 = arith.constant dense<0.000000e+00> : vector<8x32xf32>
    %29 = tpu.matmul %28, %27, %cst_25 {dimension_numbers = #tpu.dot_dimension_numbers<[1], [0], [0], [1], [0, 0, 1, 1], [], []>} : vector<8x32xbf16>, vector<32x32xbf16>, vector<8x32xf32> -> vector<8x32xf32>
    %30 = arith.addf %19, %29 : vector<8x32xf32>
    %31 = vector.extract_strided_slice %9 {offsets = [2, 0], sizes = [8, 32], strides = [1, 1]} : vector<10x32xf32> to vector<8x32xf32>
    %c0_26 = arith.constant 0 : index
    %c2 = arith.constant 2 : index
    %c0_27 = arith.constant 0 : index
    %c0_28 = arith.constant 0 : index
    %32 = vector.load %arg4[%c0_26, %c2, %c0_27, %c0_28] : memref<2x3x32x32xbf16, #tpu.memory_space<vmem>>, vector<1x1x32x32xbf16>
    %33 = vector.shape_cast %32 : vector<1x1x32x32xbf16> to vector<32x32xbf16>
    %34 = arith.truncf %31 : vector<8x32xf32> to vector<8x32xbf16>
    %cst_29 = arith.constant dense<0.000000e+00> : vector<8x32xf32>
    %35 = tpu.matmul %34, %33, %cst_29 {dimension_numbers = #tpu.dot_dimension_numbers<[1], [0], [0], [1], [0, 0, 1, 1], [], []>} : vector<8x32xbf16>, vector<32x32xbf16>, vector<8x32xf32> -> vector<8x32xf32>
    %36 = arith.addf %25, %35 : vector<8x32xf32>
    %c0_30 = arith.constant 0 : index
    %c2_31 = arith.constant 2 : index
    %c0_32 = arith.constant 0 : index
    %c0_33 = arith.constant 0 : index
    %37 = vector.load %arg5[%c0_30, %c2_31, %c0_32, %c0_33] : memref<2x3x32x32xbf16, #tpu.memory_space<vmem>>, vector<1x1x32x32xbf16>
    %38 = vector.shape_cast %37 : vector<1x1x32x32xbf16> to vector<32x32xbf16>
    %39 = arith.truncf %31 : vector<8x32xf32> to vector<8x32xbf16>
    %cst_34 = arith.constant dense<0.000000e+00> : vector<8x32xf32>
    %40 = tpu.matmul %39, %38, %cst_34 {dimension_numbers = #tpu.dot_dimension_numbers<[1], [0], [0], [1], [0, 0, 1, 1], [], []>} : vector<8x32xbf16>, vector<32x32xbf16>, vector<8x32xf32> -> vector<8x32xf32>
    %41 = arith.addf %30, %40 : vector<8x32xf32>
    %c0_35 = arith.constant 0 : index
    %c0_36 = arith.constant 0 : index
    %c0_37 = arith.constant 0 : index
    %42 = vector.load %arg6[%c0_35, %c0_36, %c0_37] : memref<2x1x32xf32, #tpu.memory_space<vmem>>, vector<1x1x32xf32>
    %43 = vector.shape_cast %42 : vector<1x1x32xf32> to vector<1x32xf32>
    %44 = vector.broadcast %43 : vector<1x32xf32> to vector<8x32xf32>
    %45 = arith.addf %36, %44 : vector<8x32xf32>
    %c0_38 = arith.constant 0 : index
    %c0_39 = arith.constant 0 : index
    %c0_40 = arith.constant 0 : index
    %46 = vector.load %arg7[%c0_38, %c0_39, %c0_40] : memref<2x1x32xf32, #tpu.memory_space<vmem>>, vector<1x1x32xf32>
    %47 = vector.shape_cast %46 : vector<1x1x32xf32> to vector<1x32xf32>
    %48 = vector.broadcast %47 : vector<1x32xf32> to vector<8x32xf32>
    %49 = arith.addf %41, %48 : vector<8x32xf32>
    %50 = arith.negf %49 : vector<8x32xf32>
    %51 = math.exp %50 : vector<8x32xf32>
    %cst_41 = arith.constant 1.000000e+00 : f32
    %52 = vector.broadcast %cst_41 : f32 to vector<8x32xf32>
    %53 = arith.addf %52, %51 : vector<8x32xf32>
    %54 = arith.divf %52, %53 : vector<8x32xf32>
    %55 = arith.mulf %45, %54 : vector<8x32xf32>
    %56 = arith.addf %55, %7 : vector<8x32xf32>
    %cst_42 = arith.constant 0.707106769 : f32
    %57 = vector.broadcast %cst_42 : f32 to vector<8x32xf32>
    %58 = arith.mulf %56, %57 : vector<8x32xf32>
    %59 = tpu.concatenate %8, %58, %8 in 0 : vector<1x32xf32>, vector<8x32xf32>, vector<1x32xf32> -> vector<10x32xf32>
    %60 = vector.extract_strided_slice %59 {offsets = [0, 0], sizes = [8, 32], strides = [1, 1]} : vector<10x32xf32> to vector<8x32xf32>
    %c1_43 = arith.constant 1 : index
    %c0_44 = arith.constant 0 : index
    %c0_45 = arith.constant 0 : index
    %c0_46 = arith.constant 0 : index
    %61 = vector.load %arg4[%c1_43, %c0_44, %c0_45, %c0_46] : memref<2x3x32x32xbf16, #tpu.memory_space<vmem>>, vector<1x1x32x32xbf16>
    %62 = vector.shape_cast %61 : vector<1x1x32x32xbf16> to vector<32x32xbf16>
    %63 = arith.truncf %60 : vector<8x32xf32> to vector<8x32xbf16>
    %cst_47 = arith.constant dense<0.000000e+00> : vector<8x32xf32>
    %64 = tpu.matmul %63, %62, %cst_47 {dimension_numbers = #tpu.dot_dimension_numbers<[1], [0], [0], [1], [0, 0, 1, 1], [], []>} : vector<8x32xbf16>, vector<32x32xbf16>, vector<8x32xf32> -> vector<8x32xf32>
    %65 = vector.extract_strided_slice %59 {offsets = [0, 0], sizes = [8, 32], strides = [1, 1]} : vector<10x32xf32> to vector<8x32xf32>
    %c1_48 = arith.constant 1 : index
    %c0_49 = arith.constant 0 : index
    %c0_50 = arith.constant 0 : index
    %c0_51 = arith.constant 0 : index
    %66 = vector.load %arg5[%c1_48, %c0_49, %c0_50, %c0_51] : memref<2x3x32x32xbf16, #tpu.memory_space<vmem>>, vector<1x1x32x32xbf16>
    %67 = vector.shape_cast %66 : vector<1x1x32x32xbf16> to vector<32x32xbf16>
    %68 = arith.truncf %65 : vector<8x32xf32> to vector<8x32xbf16>
    %cst_52 = arith.constant dense<0.000000e+00> : vector<8x32xf32>
    %69 = tpu.matmul %68, %67, %cst_52 {dimension_numbers = #tpu.dot_dimension_numbers<[1], [0], [0], [1], [0, 0, 1, 1], [], []>} : vector<8x32xbf16>, vector<32x32xbf16>, vector<8x32xf32> -> vector<8x32xf32>
    %70 = vector.extract_strided_slice %59 {offsets = [1, 0], sizes = [8, 32], strides = [1, 1]} : vector<10x32xf32> to vector<8x32xf32>
    %c1_53 = arith.constant 1 : index
    %c1_54 = arith.constant 1 : index
    %c0_55 = arith.constant 0 : index
    %c0_56 = arith.constant 0 : index
    %71 = vector.load %arg4[%c1_53, %c1_54, %c0_55, %c0_56] : memref<2x3x32x32xbf16, #tpu.memory_space<vmem>>, vector<1x1x32x32xbf16>
    %72 = vector.shape_cast %71 : vector<1x1x32x32xbf16> to vector<32x32xbf16>
    %73 = arith.truncf %70 : vector<8x32xf32> to vector<8x32xbf16>
    %cst_57 = arith.constant dense<0.000000e+00> : vector<8x32xf32>
    %74 = tpu.matmul %73, %72, %cst_57 {dimension_numbers = #tpu.dot_dimension_numbers<[1], [0], [0], [1], [0, 0, 1, 1], [], []>} : vector<8x32xbf16>, vector<32x32xbf16>, vector<8x32xf32> -> vector<8x32xf32>
    %75 = arith.addf %64, %74 : vector<8x32xf32>
    %c1_58 = arith.constant 1 : index
    %c1_59 = arith.constant 1 : index
    %c0_60 = arith.constant 0 : index
    %c0_61 = arith.constant 0 : index
    %76 = vector.load %arg5[%c1_58, %c1_59, %c0_60, %c0_61] : memref<2x3x32x32xbf16, #tpu.memory_space<vmem>>, vector<1x1x32x32xbf16>
    %77 = vector.shape_cast %76 : vector<1x1x32x32xbf16> to vector<32x32xbf16>
    %78 = arith.truncf %70 : vector<8x32xf32> to vector<8x32xbf16>
    %cst_62 = arith.constant dense<0.000000e+00> : vector<8x32xf32>
    %79 = tpu.matmul %78, %77, %cst_62 {dimension_numbers = #tpu.dot_dimension_numbers<[1], [0], [0], [1], [0, 0, 1, 1], [], []>} : vector<8x32xbf16>, vector<32x32xbf16>, vector<8x32xf32> -> vector<8x32xf32>
    %80 = arith.addf %69, %79 : vector<8x32xf32>
    %81 = vector.extract_strided_slice %59 {offsets = [2, 0], sizes = [8, 32], strides = [1, 1]} : vector<10x32xf32> to vector<8x32xf32>
    %c1_63 = arith.constant 1 : index
    %c2_64 = arith.constant 2 : index
    %c0_65 = arith.constant 0 : index
    %c0_66 = arith.constant 0 : index
    %82 = vector.load %arg4[%c1_63, %c2_64, %c0_65, %c0_66] : memref<2x3x32x32xbf16, #tpu.memory_space<vmem>>, vector<1x1x32x32xbf16>
    %83 = vector.shape_cast %82 : vector<1x1x32x32xbf16> to vector<32x32xbf16>
    %84 = arith.truncf %81 : vector<8x32xf32> to vector<8x32xbf16>
    %cst_67 = arith.constant dense<0.000000e+00> : vector<8x32xf32>
    %85 = tpu.matmul %84, %83, %cst_67 {dimension_numbers = #tpu.dot_dimension_numbers<[1], [0], [0], [1], [0, 0, 1, 1], [], []>} : vector<8x32xbf16>, vector<32x32xbf16>, vector<8x32xf32> -> vector<8x32xf32>
    %86 = arith.addf %75, %85 : vector<8x32xf32>
    %c1_68 = arith.constant 1 : index
    %c2_69 = arith.constant 2 : index
    %c0_70 = arith.constant 0 : index
    %c0_71 = arith.constant 0 : index
    %87 = vector.load %arg5[%c1_68, %c2_69, %c0_70, %c0_71] : memref<2x3x32x32xbf16, #tpu.memory_space<vmem>>, vector<1x1x32x32xbf16>
    %88 = vector.shape_cast %87 : vector<1x1x32x32xbf16> to vector<32x32xbf16>
    %89 = arith.truncf %81 : vector<8x32xf32> to vector<8x32xbf16>
    %cst_72 = arith.constant dense<0.000000e+00> : vector<8x32xf32>
    %90 = tpu.matmul %89, %88, %cst_72 {dimension_numbers = #tpu.dot_dimension_numbers<[1], [0], [0], [1], [0, 0, 1, 1], [], []>} : vector<8x32xbf16>, vector<32x32xbf16>, vector<8x32xf32> -> vector<8x32xf32>
    %91 = arith.addf %80, %90 : vector<8x32xf32>
    %c1_73 = arith.constant 1 : index
    %c0_74 = arith.constant 0 : index
    %c0_75 = arith.constant 0 : index
    %92 = vector.load %arg6[%c1_73, %c0_74, %c0_75] : memref<2x1x32xf32, #tpu.memory_space<vmem>>, vector<1x1x32xf32>
    %93 = vector.shape_cast %92 : vector<1x1x32xf32> to vector<1x32xf32>
    %94 = vector.broadcast %93 : vector<1x32xf32> to vector<8x32xf32>
    %95 = arith.addf %86, %94 : vector<8x32xf32>
    %c1_76 = arith.constant 1 : index
    %c0_77 = arith.constant 0 : index
    %c0_78 = arith.constant 0 : index
    %96 = vector.load %arg7[%c1_76, %c0_77, %c0_78] : memref<2x1x32xf32, #tpu.memory_space<vmem>>, vector<1x1x32xf32>
    %97 = vector.shape_cast %96 : vector<1x1x32xf32> to vector<1x32xf32>
    %98 = vector.broadcast %97 : vector<1x32xf32> to vector<8x32xf32>
    %99 = arith.addf %91, %98 : vector<8x32xf32>
    %100 = arith.negf %99 : vector<8x32xf32>
    %101 = math.exp %100 : vector<8x32xf32>
    %cst_79 = arith.constant 1.000000e+00 : f32
    %102 = vector.broadcast %cst_79 : f32 to vector<8x32xf32>
    %103 = arith.addf %102, %101 : vector<8x32xf32>
    %104 = arith.divf %102, %103 : vector<8x32xf32>
    %105 = arith.mulf %95, %104 : vector<8x32xf32>
    %106 = arith.addf %105, %58 : vector<8x32xf32>
    %cst_80 = arith.constant 0.707106769 : f32
    %107 = vector.broadcast %cst_80 : f32 to vector<8x32xf32>
    %108 = arith.mulf %106, %107 : vector<8x32xf32>
    %c0_81 = arith.constant 0 : index
    %c0_82 = arith.constant 0 : index
    %109 = vector.load %arg8[%c0_81, %c0_82] : memref<32x32xbf16, #tpu.memory_space<vmem>>, vector<32x32xbf16>
    %110 = arith.truncf %108 : vector<8x32xf32> to vector<8x32xbf16>
    %cst_83 = arith.constant dense<0.000000e+00> : vector<8x32xf32>
    %111 = tpu.matmul %110, %109, %cst_83 {dimension_numbers = #tpu.dot_dimension_numbers<[1], [0], [0], [1], [0, 0, 1, 1], [], []>} : vector<8x32xbf16>, vector<32x32xbf16>, vector<8x32xf32> -> vector<8x32xf32>
    %c0_84 = arith.constant 0 : index
    %c0_85 = arith.constant 0 : index
    %112 = vector.load %arg9[%c0_84, %c0_85] : memref<1x32xf32, #tpu.memory_space<vmem>>, vector<1x32xf32>
    %113 = vector.broadcast %112 : vector<1x32xf32> to vector<8x32xf32>
    %114 = arith.addf %111, %113 : vector<8x32xf32>
    %115 = arith.truncf %114 : vector<8x32xf32> to vector<8x32xbf16>
    %c0_86 = arith.constant 0 : index
    %c0_87 = arith.constant 0 : index
    %c0_88 = arith.constant 0 : index
    %116 = vector.load %arg10[%c0_86, %c0_87, %c0_88] : memref<1x8x32xbf16, #tpu.memory_space<vmem>>, vector<1x8x32xbf16>
    %117 = vector.shape_cast %116 : vector<1x8x32xbf16> to vector<8x32xbf16>
    %118 = vector.shape_cast %115 : vector<8x32xbf16> to vector<1x8x32xbf16>
    tpu.vector_store %arg10[%c0_86, %c0_87, %c0_88], %118 {strides = array<i32>} : memref<1x8x32xbf16, #tpu.memory_space<vmem>>, vector<1x8x32xbf16>,
    %119 = arith.addf %114, %1 : vector<8x32xf32>
    %cst_89 = arith.constant 0.707106769 : f32
    %120 = vector.broadcast %cst_89 : f32 to vector<8x32xf32>
    %121 = arith.mulf %119, %120 : vector<8x32xf32>
    %122 = arith.truncf %121 : vector<8x32xf32> to vector<8x32xbf16>
    %c0_90 = arith.constant 0 : index
    %c0_91 = arith.constant 0 : index
    %c0_92 = arith.constant 0 : index
    %123 = vector.load %arg11[%c0_90, %c0_91, %c0_92] : memref<1x8x32xbf16, #tpu.memory_space<vmem>>, vector<1x8x32xbf16>
    %124 = vector.shape_cast %123 : vector<1x8x32xbf16> to vector<8x32xbf16>
    %125 = vector.shape_cast %122 : vector<8x32xbf16> to vector<1x8x32xbf16>
    tpu.vector_store %arg11[%c0_90, %c0_91, %c0_92], %125 {strides = array<i32>} : memref<1x8x32xbf16, #tpu.memory_space<vmem>>, vector<1x8x32xbf16>,
    return
  }
  func.func @transform_0(%arg0: i32) -> (i32, i32, i32) {
    %c0_i32 = arith.constant 0 : i32
    %c0_i32_0 = arith.constant 0 : i32
    %c0_i32_1 = arith.constant 0 : i32
    return %arg0, %c0_i32, %c0_i32_0 : i32, i32, i32
  }
  func.func @transform_1(%arg0: i32) -> (i32, i32) {
    %c0_i32 = arith.constant 0 : i32
    %c0_i32_0 = arith.constant 0 : i32
    %c0_i32_1 = arith.constant 0 : i32
    return %c0_i32, %c0_i32_0 : i32, i32
  }
  func.func @transform_2(%arg0: i32) -> (i32, i32) {
    %c0_i32 = arith.constant 0 : i32
    %c0_i32_0 = arith.constant 0 : i32
    %c0_i32_1 = arith.constant 0 : i32
    return %c0_i32, %c0_i32_0 : i32, i32
  }
  func.func @transform_3(%arg0: i32) -> (i32, i32, i32, i32) {
    %c0_i32 = arith.constant 0 : i32
    %c0_i32_0 = arith.constant 0 : i32
    %c0_i32_1 = arith.constant 0 : i32
    %c0_i32_2 = arith.constant 0 : i32
    %c0_i32_3 = arith.constant 0 : i32
    return %c0_i32, %c0_i32_0, %c0_i32_1, %c0_i32_2 : i32, i32, i32, i32
  }
  func.func @transform_4(%arg0: i32) -> (i32, i32, i32, i32) {
    %c0_i32 = arith.constant 0 : i32
    %c0_i32_0 = arith.constant 0 : i32
    %c0_i32_1 = arith.constant 0 : i32
    %c0_i32_2 = arith.constant 0 : i32
    %c0_i32_3 = arith.constant 0 : i32
    return %c0_i32, %c0_i32_0, %c0_i32_1, %c0_i32_2 : i32, i32, i32, i32
  }
  func.func @transform_5(%arg0: i32) -> (i32, i32, i32) {
    %c0_i32 = arith.constant 0 : i32
    %c0_i32_0 = arith.constant 0 : i32
    %c0_i32_1 = arith.constant 0 : i32
    %c0_i32_2 = arith.constant 0 : i32
    return %c0_i32, %c0_i32_0, %c0_i32_1 : i32, i32, i32
  }
  func.func @transform_6(%arg0: i32) -> (i32, i32, i32) {
    %c0_i32 = arith.constant 0 : i32
    %c0_i32_0 = arith.constant 0 : i32
    %c0_i32_1 = arith.constant 0 : i32
    %c0_i32_2 = arith.constant 0 : i32
    return %c0_i32, %c0_i32_0, %c0_i32_1 : i32, i32, i32
  }
  func.func @transform_7(%arg0: i32) -> (i32, i32) {
    %c0_i32 = arith.constant 0 : i32
    %c0_i32_0 = arith.constant 0 : i32
    %c0_i32_1 = arith.constant 0 : i32
    return %c0_i32, %c0_i32_0 : i32, i32
  }
  func.func @transform_8(%arg0: i32) -> (i32, i32) {
    %c0_i32 = arith.constant 0 : i32
    %c0_i32_0 = arith.constant 0 : i32
    %c0_i32_1 = arith.constant 0 : i32
    return %c0_i32, %c0_i32_0 : i32, i32
  }
  func.func @transform_9(%arg0: i32) -> (i32, i32, i32) {
    %c0_i32 = arith.constant 0 : i32
    %c0_i32_0 = arith.constant 0 : i32
    %c0_i32_1 = arith.constant 0 : i32
    return %arg0, %c0_i32, %c0_i32_0 : i32, i32, i32
  }
  func.func @transform_10(%arg0: i32) -> (i32, i32, i32) {
    %c0_i32 = arith.constant 0 : i32
    %c0_i32_0 = arith.constant 0 : i32
    %c0_i32_1 = arith.constant 0 : i32
    return %arg0, %c0_i32, %c0_i32_0 : i32, i32, i32
  }
}

module attributes {stable_mosaic.version = 11 : i64} {
  func.func @_decoder_kernel(%arg0: i32, %arg1: memref<1x7x32xf32, #tpu.memory_space<vmem>>, %arg2: memref<1x128x32xbf16, #tpu.memory_space<vmem>>, %arg3: memref<1x128x32xbf16, #tpu.memory_space<vmem>>, %arg4: memref<1x1x128xf32, #tpu.memory_space<vmem>>, %arg5: memref<32x32xbf16, #tpu.memory_space<vmem>>, %arg6: memref<1x32xf32, #tpu.memory_space<vmem>>, %arg7: memref<2x3x32x32xbf16, #tpu.memory_space<vmem>>, %arg8: memref<2x3x32x32xbf16, #tpu.memory_space<vmem>>, %arg9: memref<2x1x32xf32, #tpu.memory_space<vmem>>, %arg10: memref<2x1x32xf32, #tpu.memory_space<vmem>>, %arg11: memref<32x32xbf16, #tpu.memory_space<vmem>>, %arg12: memref<1x32xf32, #tpu.memory_space<vmem>>, %arg13: memref<32x32xbf16, #tpu.memory_space<vmem>>, %arg14: memref<1x32xf32, #tpu.memory_space<vmem>>, %arg15: memref<32x32xbf16, #tpu.memory_space<vmem>>, %arg16: memref<1x32xf32, #tpu.memory_space<vmem>>, %arg17: memref<32x128xbf16, #tpu.memory_space<vmem>>, %arg18: memref<1x128xf32, #tpu.memory_space<vmem>>, %arg19: memref<1x7x128xf32, #tpu.memory_space<vmem>>, %arg20: memref<1x7x128xf32, #tpu.memory_space<vmem>>) attributes {dimension_semantics = [#tpu.dimension_semantics<parallel>], iteration_bounds = array<i64: 2>, scalar_prefetch = 0 : i64, scratch_operands = 0 : i64, tpu.core_type = #tpu.core_type<tc>, window_params = [{transform_indices = @transform_0, window_bounds = array<i64: 1, 7, 32>}, {transform_indices = @transform_1, window_bounds = array<i64: 1, 128, 32>}, {transform_indices = @transform_2, window_bounds = array<i64: 1, 128, 32>}, {transform_indices = @transform_3, window_bounds = array<i64: 1, 1, 128>}, {pipeline_mode = #tpu.pipeline_mode<synchronous>, transform_indices = @transform_4, window_bounds = array<i64: 32, 32>}, {pipeline_mode = #tpu.pipeline_mode<synchronous>, transform_indices = @transform_5, window_bounds = array<i64: 1, 32>}, {pipeline_mode = #tpu.pipeline_mode<synchronous>, transform_indices = @transform_6, window_bounds = array<i64: 2, 3, 32, 32>}, {pipeline_mode = #tpu.pipeline_mode<synchronous>, transform_indices = @transform_7, window_bounds = array<i64: 2, 3, 32, 32>}, {pipeline_mode = #tpu.pipeline_mode<synchronous>, transform_indices = @transform_8, window_bounds = array<i64: 2, 1, 32>}, {pipeline_mode = #tpu.pipeline_mode<synchronous>, transform_indices = @transform_9, window_bounds = array<i64: 2, 1, 32>}, {pipeline_mode = #tpu.pipeline_mode<synchronous>, transform_indices = @transform_10, window_bounds = array<i64: 32, 32>}, {pipeline_mode = #tpu.pipeline_mode<synchronous>, transform_indices = @transform_11, window_bounds = array<i64: 1, 32>}, {pipeline_mode = #tpu.pipeline_mode<synchronous>, transform_indices = @transform_12, window_bounds = array<i64: 32, 32>}, {pipeline_mode = #tpu.pipeline_mode<synchronous>, transform_indices = @transform_13, window_bounds = array<i64: 1, 32>}, {pipeline_mode = #tpu.pipeline_mode<synchronous>, transform_indices = @transform_14, window_bounds = array<i64: 32, 32>}, {pipeline_mode = #tpu.pipeline_mode<synchronous>, transform_indices = @transform_15, window_bounds = array<i64: 1, 32>}, {pipeline_mode = #tpu.pipeline_mode<synchronous>, transform_indices = @transform_16, window_bounds = array<i64: 32, 128>}, {pipeline_mode = #tpu.pipeline_mode<synchronous>, transform_indices = @transform_17, window_bounds = array<i64: 1, 128>}, {transform_indices = @transform_18, window_bounds = array<i64: 1, 7, 128>}, {transform_indices = @transform_19, window_bounds = array<i64: 1, 7, 128>}]} {
    %c0 = arith.constant 0 : index
    %c0_0 = arith.constant 0 : index
    %c0_1 = arith.constant 0 : index
    %0 = vector.load %arg1[%c0, %c0_0, %c0_1] : memref<1x7x32xf32, #tpu.memory_space<vmem>>, vector<1x7x32xf32>
    %1 = vector.shape_cast %0 : vector<1x7x32xf32> to vector<7x32xf32>
    %c0_2 = arith.constant 0 : index
    %c0_3 = arith.constant 0 : index
    %c0_4 = arith.constant 0 : index
    %2 = vector.load %arg2[%c0_2, %c0_3, %c0_4] : memref<1x128x32xbf16, #tpu.memory_space<vmem>>, vector<1x128x32xbf16>
    %3 = vector.shape_cast %2 : vector<1x128x32xbf16> to vector<128x32xbf16>
    %c0_5 = arith.constant 0 : index
    %c0_6 = arith.constant 0 : index
    %c0_7 = arith.constant 0 : index
    %4 = vector.load %arg3[%c0_5, %c0_6, %c0_7] : memref<1x128x32xbf16, #tpu.memory_space<vmem>>, vector<1x128x32xbf16>
    %5 = vector.shape_cast %4 : vector<1x128x32xbf16> to vector<128x32xbf16>
    %c0_8 = arith.constant 0 : index
    %c0_9 = arith.constant 0 : index
    %c0_10 = arith.constant 0 : index
    %6 = vector.load %arg4[%c0_8, %c0_9, %c0_10] : memref<1x1x128xf32, #tpu.memory_space<vmem>>, vector<1x1x128xf32>
    %7 = vector.shape_cast %6 : vector<1x1x128xf32> to vector<1x128xf32>
    %cst = arith.constant 5.000000e-01 : f32
    %8 = vector.broadcast %cst : f32 to vector<1x128xf32>
    %9 = arith.cmpf ogt, %7, %8 : vector<1x128xf32>
    %c0_11 = arith.constant 0 : index
    %c0_12 = arith.constant 0 : index
    %10 = vector.load %arg5[%c0_11, %c0_12] : memref<32x32xbf16, #tpu.memory_space<vmem>>, vector<32x32xbf16>
    %11 = arith.truncf %1 : vector<7x32xf32> to vector<7x32xbf16>
    %cst_13 = arith.constant dense<0.000000e+00> : vector<7x32xf32>
    %12 = tpu.matmul %11, %10, %cst_13 {dimension_numbers = #tpu.dot_dimension_numbers<[1], [0], [0], [1], [0, 0, 1, 1], [], []>} : vector<7x32xbf16>, vector<32x32xbf16>, vector<7x32xf32> -> vector<7x32xf32>
    %c0_14 = arith.constant 0 : index
    %c0_15 = arith.constant 0 : index
    %13 = vector.load %arg6[%c0_14, %c0_15] : memref<1x32xf32, #tpu.memory_space<vmem>>, vector<1x32xf32>
    %14 = vector.broadcast %13 : vector<1x32xf32> to vector<7x32xf32>
    %15 = arith.addf %12, %14 : vector<7x32xf32>
    %cst_16 = arith.constant 0.000000e+00 : f32
    %16 = vector.broadcast %cst_16 : f32 to vector<2x32xf32>
    %17 = tpu.concatenate %16, %15 in 0 : vector<2x32xf32>, vector<7x32xf32> -> vector<9x32xf32>
    %18 = vector.extract_strided_slice %17 {offsets = [0, 0], sizes = [7, 32], strides = [1, 1]} : vector<9x32xf32> to vector<7x32xf32>
    %c0_17 = arith.constant 0 : index
    %c0_18 = arith.constant 0 : index
    %c0_19 = arith.constant 0 : index
    %c0_20 = arith.constant 0 : index
    %19 = vector.load %arg7[%c0_17, %c0_18, %c0_19, %c0_20] : memref<2x3x32x32xbf16, #tpu.memory_space<vmem>>, vector<1x1x32x32xbf16>
    %20 = vector.shape_cast %19 : vector<1x1x32x32xbf16> to vector<32x32xbf16>
    %21 = arith.truncf %18 : vector<7x32xf32> to vector<7x32xbf16>
    %cst_21 = arith.constant dense<0.000000e+00> : vector<7x32xf32>
    %22 = tpu.matmul %21, %20, %cst_21 {dimension_numbers = #tpu.dot_dimension_numbers<[1], [0], [0], [1], [0, 0, 1, 1], [], []>} : vector<7x32xbf16>, vector<32x32xbf16>, vector<7x32xf32> -> vector<7x32xf32>
    %23 = vector.extract_strided_slice %17 {offsets = [0, 0], sizes = [7, 32], strides = [1, 1]} : vector<9x32xf32> to vector<7x32xf32>
    %c0_22 = arith.constant 0 : index
    %c0_23 = arith.constant 0 : index
    %c0_24 = arith.constant 0 : index
    %c0_25 = arith.constant 0 : index
    %24 = vector.load %arg8[%c0_22, %c0_23, %c0_24, %c0_25] : memref<2x3x32x32xbf16, #tpu.memory_space<vmem>>, vector<1x1x32x32xbf16>
    %25 = vector.shape_cast %24 : vector<1x1x32x32xbf16> to vector<32x32xbf16>
    %26 = arith.truncf %23 : vector<7x32xf32> to vector<7x32xbf16>
    %cst_26 = arith.constant dense<0.000000e+00> : vector<7x32xf32>
    %27 = tpu.matmul %26, %25, %cst_26 {dimension_numbers = #tpu.dot_dimension_numbers<[1], [0], [0], [1], [0, 0, 1, 1], [], []>} : vector<7x32xbf16>, vector<32x32xbf16>, vector<7x32xf32> -> vector<7x32xf32>
    %28 = vector.extract_strided_slice %17 {offsets = [1, 0], sizes = [7, 32], strides = [1, 1]} : vector<9x32xf32> to vector<7x32xf32>
    %c0_27 = arith.constant 0 : index
    %c1 = arith.constant 1 : index
    %c0_28 = arith.constant 0 : index
    %c0_29 = arith.constant 0 : index
    %29 = vector.load %arg7[%c0_27, %c1, %c0_28, %c0_29] : memref<2x3x32x32xbf16, #tpu.memory_space<vmem>>, vector<1x1x32x32xbf16>
    %30 = vector.shape_cast %29 : vector<1x1x32x32xbf16> to vector<32x32xbf16>
    %31 = arith.truncf %28 : vector<7x32xf32> to vector<7x32xbf16>
    %cst_30 = arith.constant dense<0.000000e+00> : vector<7x32xf32>
    %32 = tpu.matmul %31, %30, %cst_30 {dimension_numbers = #tpu.dot_dimension_numbers<[1], [0], [0], [1], [0, 0, 1, 1], [], []>} : vector<7x32xbf16>, vector<32x32xbf16>, vector<7x32xf32> -> vector<7x32xf32>
    %33 = arith.addf %22, %32 : vector<7x32xf32>
    %c0_31 = arith.constant 0 : index
    %c1_32 = arith.constant 1 : index
    %c0_33 = arith.constant 0 : index
    %c0_34 = arith.constant 0 : index
    %34 = vector.load %arg8[%c0_31, %c1_32, %c0_33, %c0_34] : memref<2x3x32x32xbf16, #tpu.memory_space<vmem>>, vector<1x1x32x32xbf16>
    %35 = vector.shape_cast %34 : vector<1x1x32x32xbf16> to vector<32x32xbf16>
    %36 = arith.truncf %28 : vector<7x32xf32> to vector<7x32xbf16>
    %cst_35 = arith.constant dense<0.000000e+00> : vector<7x32xf32>
    %37 = tpu.matmul %36, %35, %cst_35 {dimension_numbers = #tpu.dot_dimension_numbers<[1], [0], [0], [1], [0, 0, 1, 1], [], []>} : vector<7x32xbf16>, vector<32x32xbf16>, vector<7x32xf32> -> vector<7x32xf32>
    %38 = arith.addf %27, %37 : vector<7x32xf32>
    %39 = vector.extract_strided_slice %17 {offsets = [2, 0], sizes = [7, 32], strides = [1, 1]} : vector<9x32xf32> to vector<7x32xf32>
    %c0_36 = arith.constant 0 : index
    %c2 = arith.constant 2 : index
    %c0_37 = arith.constant 0 : index
    %c0_38 = arith.constant 0 : index
    %40 = vector.load %arg7[%c0_36, %c2, %c0_37, %c0_38] : memref<2x3x32x32xbf16, #tpu.memory_space<vmem>>, vector<1x1x32x32xbf16>
    %41 = vector.shape_cast %40 : vector<1x1x32x32xbf16> to vector<32x32xbf16>
    %42 = arith.truncf %39 : vector<7x32xf32> to vector<7x32xbf16>
    %cst_39 = arith.constant dense<0.000000e+00> : vector<7x32xf32>
    %43 = tpu.matmul %42, %41, %cst_39 {dimension_numbers = #tpu.dot_dimension_numbers<[1], [0], [0], [1], [0, 0, 1, 1], [], []>} : vector<7x32xbf16>, vector<32x32xbf16>, vector<7x32xf32> -> vector<7x32xf32>
    %44 = arith.addf %33, %43 : vector<7x32xf32>
    %c0_40 = arith.constant 0 : index
    %c2_41 = arith.constant 2 : index
    %c0_42 = arith.constant 0 : index
    %c0_43 = arith.constant 0 : index
    %45 = vector.load %arg8[%c0_40, %c2_41, %c0_42, %c0_43] : memref<2x3x32x32xbf16, #tpu.memory_space<vmem>>, vector<1x1x32x32xbf16>
    %46 = vector.shape_cast %45 : vector<1x1x32x32xbf16> to vector<32x32xbf16>
    %47 = arith.truncf %39 : vector<7x32xf32> to vector<7x32xbf16>
    %cst_44 = arith.constant dense<0.000000e+00> : vector<7x32xf32>
    %48 = tpu.matmul %47, %46, %cst_44 {dimension_numbers = #tpu.dot_dimension_numbers<[1], [0], [0], [1], [0, 0, 1, 1], [], []>} : vector<7x32xbf16>, vector<32x32xbf16>, vector<7x32xf32> -> vector<7x32xf32>
    %49 = arith.addf %38, %48 : vector<7x32xf32>
    %c0_45 = arith.constant 0 : index
    %c0_46 = arith.constant 0 : index
    %c0_47 = arith.constant 0 : index
    %50 = vector.load %arg9[%c0_45, %c0_46, %c0_47] : memref<2x1x32xf32, #tpu.memory_space<vmem>>, vector<1x1x32xf32>
    %51 = vector.shape_cast %50 : vector<1x1x32xf32> to vector<1x32xf32>
    %52 = vector.broadcast %51 : vector<1x32xf32> to vector<7x32xf32>
    %53 = arith.addf %44, %52 : vector<7x32xf32>
    %c0_48 = arith.constant 0 : index
    %c0_49 = arith.constant 0 : index
    %c0_50 = arith.constant 0 : index
    %54 = vector.load %arg10[%c0_48, %c0_49, %c0_50] : memref<2x1x32xf32, #tpu.memory_space<vmem>>, vector<1x1x32xf32>
    %55 = vector.shape_cast %54 : vector<1x1x32xf32> to vector<1x32xf32>
    %56 = vector.broadcast %55 : vector<1x32xf32> to vector<7x32xf32>
    %57 = arith.addf %49, %56 : vector<7x32xf32>
    %58 = arith.negf %57 : vector<7x32xf32>
    %59 = math.exp %58 : vector<7x32xf32>
    %cst_51 = arith.constant 1.000000e+00 : f32
    %60 = vector.broadcast %cst_51 : f32 to vector<7x32xf32>
    %61 = arith.addf %60, %59 : vector<7x32xf32>
    %62 = arith.divf %60, %61 : vector<7x32xf32>
    %63 = arith.mulf %53, %62 : vector<7x32xf32>
    %c0_52 = arith.constant 0 : index
    %c0_53 = arith.constant 0 : index
    %64 = vector.load %arg11[%c0_52, %c0_53] : memref<32x32xbf16, #tpu.memory_space<vmem>>, vector<32x32xbf16>
    %65 = arith.truncf %63 : vector<7x32xf32> to vector<7x32xbf16>
    %cst_54 = arith.constant dense<0.000000e+00> : vector<7x32xf32>
    %66 = tpu.matmul %65, %64, %cst_54 {dimension_numbers = #tpu.dot_dimension_numbers<[1], [0], [0], [1], [0, 0, 1, 1], [], []>} : vector<7x32xbf16>, vector<32x32xbf16>, vector<7x32xf32> -> vector<7x32xf32>
    %c0_55 = arith.constant 0 : index
    %c0_56 = arith.constant 0 : index
    %67 = vector.load %arg12[%c0_55, %c0_56] : memref<1x32xf32, #tpu.memory_space<vmem>>, vector<1x32xf32>
    %68 = vector.broadcast %67 : vector<1x32xf32> to vector<7x32xf32>
    %69 = arith.addf %66, %68 : vector<7x32xf32>
    %70 = arith.addf %69, %1 : vector<7x32xf32>
    %cst_57 = arith.constant 0.707106769 : f32
    %71 = vector.broadcast %cst_57 : f32 to vector<7x32xf32>
    %72 = arith.mulf %70, %71 : vector<7x32xf32>
    %73 = arith.truncf %72 : vector<7x32xf32> to vector<7x32xbf16>
    %cst_58 = arith.constant dense<0.000000e+00> : vector<7x128xf32>
    %74 = tpu.matmul %73, %3, %cst_58 {dimension_numbers = #tpu.dot_dimension_numbers<[1], [1], [0], [0], [0, 0, 1, 0], [], []>} : vector<7x32xbf16>, vector<128x32xbf16>, vector<7x128xf32> -> vector<7x128xf32>
    %cst_59 = arith.constant -1.000000e+09 : f32
    %75 = vector.shape_cast %9 : vector<1x128xi1> to vector<1x128xi1>
    %76 = vector.broadcast %75 : vector<1x128xi1> to vector<7x128xi1>
    %77 = vector.broadcast %cst_59 : f32 to vector<7x128xf32>
    %78 = arith.select %76, %74, %77 : vector<7x128xi1>, vector<7x128xf32>
    %cst_60 = arith.constant dense<0xFF800000> : vector<7xf32>
    %79 = vector.multi_reduction <maximumf>, %78, %cst_60 [1] : vector<7x128xf32> to vector<7xf32>
    %80 = vector.shape_cast %79 : vector<7xf32> to vector<7x1xf32>
    %81 = vector.broadcast %80 : vector<7x1xf32> to vector<7x128xf32>
    %82 = arith.subf %78, %81 : vector<7x128xf32>
    %83 = math.exp %82 : vector<7x128xf32>
    %cst_61 = arith.constant dense<0.000000e+00> : vector<7xf32>
    %84 = vector.multi_reduction <add>, %83, %cst_61 [1] : vector<7x128xf32> to vector<7xf32>
    %85 = vector.shape_cast %84 : vector<7xf32> to vector<7x1xf32>
    %86 = tpu.reciprocal %85 {approx = true} : vector<7x1xf32> -> vector<7x1xf32>
    %87 = vector.broadcast %86 : vector<7x1xf32> to vector<7x128xf32>
    %88 = arith.mulf %83, %87 : vector<7x128xf32>
    %89 = arith.truncf %88 : vector<7x128xf32> to vector<7x128xbf16>
    %cst_62 = arith.constant dense<0.000000e+00> : vector<7x32xf32>
    %90 = tpu.matmul %89, %5, %cst_62 {dimension_numbers = #tpu.dot_dimension_numbers<[1], [0], [0], [1], [0, 0, 1, 1], [], []>} : vector<7x128xbf16>, vector<128x32xbf16>, vector<7x32xf32> -> vector<7x32xf32>
    %c0_63 = arith.constant 0 : index
    %c0_64 = arith.constant 0 : index
    %91 = vector.load %arg13[%c0_63, %c0_64] : memref<32x32xbf16, #tpu.memory_space<vmem>>, vector<32x32xbf16>
    %92 = arith.truncf %90 : vector<7x32xf32> to vector<7x32xbf16>
    %cst_65 = arith.constant dense<0.000000e+00> : vector<7x32xf32>
    %93 = tpu.matmul %92, %91, %cst_65 {dimension_numbers = #tpu.dot_dimension_numbers<[1], [0], [0], [1], [0, 0, 1, 1], [], []>} : vector<7x32xbf16>, vector<32x32xbf16>, vector<7x32xf32> -> vector<7x32xf32>
    %c0_66 = arith.constant 0 : index
    %c0_67 = arith.constant 0 : index
    %94 = vector.load %arg14[%c0_66, %c0_67] : memref<1x32xf32, #tpu.memory_space<vmem>>, vector<1x32xf32>
    %95 = vector.broadcast %94 : vector<1x32xf32> to vector<7x32xf32>
    %96 = arith.addf %93, %95 : vector<7x32xf32>
    %97 = arith.addf %63, %96 : vector<7x32xf32>
    %cst_68 = arith.constant 0.707106769 : f32
    %98 = vector.broadcast %cst_68 : f32 to vector<7x32xf32>
    %99 = arith.mulf %97, %98 : vector<7x32xf32>
    %100 = arith.addf %99, %15 : vector<7x32xf32>
    %cst_69 = arith.constant 0.707106769 : f32
    %101 = vector.broadcast %cst_69 : f32 to vector<7x32xf32>
    %102 = arith.mulf %100, %101 : vector<7x32xf32>
    %103 = tpu.concatenate %16, %102 in 0 : vector<2x32xf32>, vector<7x32xf32> -> vector<9x32xf32>
    %104 = vector.extract_strided_slice %103 {offsets = [0, 0], sizes = [7, 32], strides = [1, 1]} : vector<9x32xf32> to vector<7x32xf32>
    %c1_70 = arith.constant 1 : index
    %c0_71 = arith.constant 0 : index
    %c0_72 = arith.constant 0 : index
    %c0_73 = arith.constant 0 : index
    %105 = vector.load %arg7[%c1_70, %c0_71, %c0_72, %c0_73] : memref<2x3x32x32xbf16, #tpu.memory_space<vmem>>, vector<1x1x32x32xbf16>
    %106 = vector.shape_cast %105 : vector<1x1x32x32xbf16> to vector<32x32xbf16>
    %107 = arith.truncf %104 : vector<7x32xf32> to vector<7x32xbf16>
    %cst_74 = arith.constant dense<0.000000e+00> : vector<7x32xf32>
    %108 = tpu.matmul %107, %106, %cst_74 {dimension_numbers = #tpu.dot_dimension_numbers<[1], [0], [0], [1], [0, 0, 1, 1], [], []>} : vector<7x32xbf16>, vector<32x32xbf16>, vector<7x32xf32> -> vector<7x32xf32>
    %109 = vector.extract_strided_slice %103 {offsets = [0, 0], sizes = [7, 32], strides = [1, 1]} : vector<9x32xf32> to vector<7x32xf32>
    %c1_75 = arith.constant 1 : index
    %c0_76 = arith.constant 0 : index
    %c0_77 = arith.constant 0 : index
    %c0_78 = arith.constant 0 : index
    %110 = vector.load %arg8[%c1_75, %c0_76, %c0_77, %c0_78] : memref<2x3x32x32xbf16, #tpu.memory_space<vmem>>, vector<1x1x32x32xbf16>
    %111 = vector.shape_cast %110 : vector<1x1x32x32xbf16> to vector<32x32xbf16>
    %112 = arith.truncf %109 : vector<7x32xf32> to vector<7x32xbf16>
    %cst_79 = arith.constant dense<0.000000e+00> : vector<7x32xf32>
    %113 = tpu.matmul %112, %111, %cst_79 {dimension_numbers = #tpu.dot_dimension_numbers<[1], [0], [0], [1], [0, 0, 1, 1], [], []>} : vector<7x32xbf16>, vector<32x32xbf16>, vector<7x32xf32> -> vector<7x32xf32>
    %114 = vector.extract_strided_slice %103 {offsets = [1, 0], sizes = [7, 32], strides = [1, 1]} : vector<9x32xf32> to vector<7x32xf32>
    %c1_80 = arith.constant 1 : index
    %c1_81 = arith.constant 1 : index
    %c0_82 = arith.constant 0 : index
    %c0_83 = arith.constant 0 : index
    %115 = vector.load %arg7[%c1_80, %c1_81, %c0_82, %c0_83] : memref<2x3x32x32xbf16, #tpu.memory_space<vmem>>, vector<1x1x32x32xbf16>
    %116 = vector.shape_cast %115 : vector<1x1x32x32xbf16> to vector<32x32xbf16>
    %117 = arith.truncf %114 : vector<7x32xf32> to vector<7x32xbf16>
    %cst_84 = arith.constant dense<0.000000e+00> : vector<7x32xf32>
    %118 = tpu.matmul %117, %116, %cst_84 {dimension_numbers = #tpu.dot_dimension_numbers<[1], [0], [0], [1], [0, 0, 1, 1], [], []>} : vector<7x32xbf16>, vector<32x32xbf16>, vector<7x32xf32> -> vector<7x32xf32>
    %119 = arith.addf %108, %118 : vector<7x32xf32>
    %c1_85 = arith.constant 1 : index
    %c1_86 = arith.constant 1 : index
    %c0_87 = arith.constant 0 : index
    %c0_88 = arith.constant 0 : index
    %120 = vector.load %arg8[%c1_85, %c1_86, %c0_87, %c0_88] : memref<2x3x32x32xbf16, #tpu.memory_space<vmem>>, vector<1x1x32x32xbf16>
    %121 = vector.shape_cast %120 : vector<1x1x32x32xbf16> to vector<32x32xbf16>
    %122 = arith.truncf %114 : vector<7x32xf32> to vector<7x32xbf16>
    %cst_89 = arith.constant dense<0.000000e+00> : vector<7x32xf32>
    %123 = tpu.matmul %122, %121, %cst_89 {dimension_numbers = #tpu.dot_dimension_numbers<[1], [0], [0], [1], [0, 0, 1, 1], [], []>} : vector<7x32xbf16>, vector<32x32xbf16>, vector<7x32xf32> -> vector<7x32xf32>
    %124 = arith.addf %113, %123 : vector<7x32xf32>
    %125 = vector.extract_strided_slice %103 {offsets = [2, 0], sizes = [7, 32], strides = [1, 1]} : vector<9x32xf32> to vector<7x32xf32>
    %c1_90 = arith.constant 1 : index
    %c2_91 = arith.constant 2 : index
    %c0_92 = arith.constant 0 : index
    %c0_93 = arith.constant 0 : index
    %126 = vector.load %arg7[%c1_90, %c2_91, %c0_92, %c0_93] : memref<2x3x32x32xbf16, #tpu.memory_space<vmem>>, vector<1x1x32x32xbf16>
    %127 = vector.shape_cast %126 : vector<1x1x32x32xbf16> to vector<32x32xbf16>
    %128 = arith.truncf %125 : vector<7x32xf32> to vector<7x32xbf16>
    %cst_94 = arith.constant dense<0.000000e+00> : vector<7x32xf32>
    %129 = tpu.matmul %128, %127, %cst_94 {dimension_numbers = #tpu.dot_dimension_numbers<[1], [0], [0], [1], [0, 0, 1, 1], [], []>} : vector<7x32xbf16>, vector<32x32xbf16>, vector<7x32xf32> -> vector<7x32xf32>
    %130 = arith.addf %119, %129 : vector<7x32xf32>
    %c1_95 = arith.constant 1 : index
    %c2_96 = arith.constant 2 : index
    %c0_97 = arith.constant 0 : index
    %c0_98 = arith.constant 0 : index
    %131 = vector.load %arg8[%c1_95, %c2_96, %c0_97, %c0_98] : memref<2x3x32x32xbf16, #tpu.memory_space<vmem>>, vector<1x1x32x32xbf16>
    %132 = vector.shape_cast %131 : vector<1x1x32x32xbf16> to vector<32x32xbf16>
    %133 = arith.truncf %125 : vector<7x32xf32> to vector<7x32xbf16>
    %cst_99 = arith.constant dense<0.000000e+00> : vector<7x32xf32>
    %134 = tpu.matmul %133, %132, %cst_99 {dimension_numbers = #tpu.dot_dimension_numbers<[1], [0], [0], [1], [0, 0, 1, 1], [], []>} : vector<7x32xbf16>, vector<32x32xbf16>, vector<7x32xf32> -> vector<7x32xf32>
    %135 = arith.addf %124, %134 : vector<7x32xf32>
    %c1_100 = arith.constant 1 : index
    %c0_101 = arith.constant 0 : index
    %c0_102 = arith.constant 0 : index
    %136 = vector.load %arg9[%c1_100, %c0_101, %c0_102] : memref<2x1x32xf32, #tpu.memory_space<vmem>>, vector<1x1x32xf32>
    %137 = vector.shape_cast %136 : vector<1x1x32xf32> to vector<1x32xf32>
    %138 = vector.broadcast %137 : vector<1x32xf32> to vector<7x32xf32>
    %139 = arith.addf %130, %138 : vector<7x32xf32>
    %c1_103 = arith.constant 1 : index
    %c0_104 = arith.constant 0 : index
    %c0_105 = arith.constant 0 : index
    %140 = vector.load %arg10[%c1_103, %c0_104, %c0_105] : memref<2x1x32xf32, #tpu.memory_space<vmem>>, vector<1x1x32xf32>
    %141 = vector.shape_cast %140 : vector<1x1x32xf32> to vector<1x32xf32>
    %142 = vector.broadcast %141 : vector<1x32xf32> to vector<7x32xf32>
    %143 = arith.addf %135, %142 : vector<7x32xf32>
    %144 = arith.negf %143 : vector<7x32xf32>
    %145 = math.exp %144 : vector<7x32xf32>
    %cst_106 = arith.constant 1.000000e+00 : f32
    %146 = vector.broadcast %cst_106 : f32 to vector<7x32xf32>
    %147 = arith.addf %146, %145 : vector<7x32xf32>
    %148 = arith.divf %146, %147 : vector<7x32xf32>
    %149 = arith.mulf %139, %148 : vector<7x32xf32>
    %c0_107 = arith.constant 0 : index
    %c0_108 = arith.constant 0 : index
    %150 = vector.load %arg11[%c0_107, %c0_108] : memref<32x32xbf16, #tpu.memory_space<vmem>>, vector<32x32xbf16>
    %151 = arith.truncf %149 : vector<7x32xf32> to vector<7x32xbf16>
    %cst_109 = arith.constant dense<0.000000e+00> : vector<7x32xf32>
    %152 = tpu.matmul %151, %150, %cst_109 {dimension_numbers = #tpu.dot_dimension_numbers<[1], [0], [0], [1], [0, 0, 1, 1], [], []>} : vector<7x32xbf16>, vector<32x32xbf16>, vector<7x32xf32> -> vector<7x32xf32>
    %c0_110 = arith.constant 0 : index
    %c0_111 = arith.constant 0 : index
    %153 = vector.load %arg12[%c0_110, %c0_111] : memref<1x32xf32, #tpu.memory_space<vmem>>, vector<1x32xf32>
    %154 = vector.broadcast %153 : vector<1x32xf32> to vector<7x32xf32>
    %155 = arith.addf %152, %154 : vector<7x32xf32>
    %156 = arith.addf %155, %1 : vector<7x32xf32>
    %cst_112 = arith.constant 0.707106769 : f32
    %157 = vector.broadcast %cst_112 : f32 to vector<7x32xf32>
    %158 = arith.mulf %156, %157 : vector<7x32xf32>
    %159 = arith.truncf %158 : vector<7x32xf32> to vector<7x32xbf16>
    %cst_113 = arith.constant dense<0.000000e+00> : vector<7x128xf32>
    %160 = tpu.matmul %159, %3, %cst_113 {dimension_numbers = #tpu.dot_dimension_numbers<[1], [1], [0], [0], [0, 0, 1, 0], [], []>} : vector<7x32xbf16>, vector<128x32xbf16>, vector<7x128xf32> -> vector<7x128xf32>
    %cst_114 = arith.constant -1.000000e+09 : f32
    %161 = vector.shape_cast %9 : vector<1x128xi1> to vector<1x128xi1>
    %162 = vector.broadcast %161 : vector<1x128xi1> to vector<7x128xi1>
    %163 = vector.broadcast %cst_114 : f32 to vector<7x128xf32>
    %164 = arith.select %162, %160, %163 : vector<7x128xi1>, vector<7x128xf32>
    %cst_115 = arith.constant dense<0xFF800000> : vector<7xf32>
    %165 = vector.multi_reduction <maximumf>, %164, %cst_115 [1] : vector<7x128xf32> to vector<7xf32>
    %166 = vector.shape_cast %165 : vector<7xf32> to vector<7x1xf32>
    %167 = vector.broadcast %166 : vector<7x1xf32> to vector<7x128xf32>
    %168 = arith.subf %164, %167 : vector<7x128xf32>
    %169 = math.exp %168 : vector<7x128xf32>
    %cst_116 = arith.constant dense<0.000000e+00> : vector<7xf32>
    %170 = vector.multi_reduction <add>, %169, %cst_116 [1] : vector<7x128xf32> to vector<7xf32>
    %171 = vector.shape_cast %170 : vector<7xf32> to vector<7x1xf32>
    %172 = tpu.reciprocal %171 {approx = true} : vector<7x1xf32> -> vector<7x1xf32>
    %173 = vector.broadcast %172 : vector<7x1xf32> to vector<7x128xf32>
    %174 = arith.mulf %169, %173 : vector<7x128xf32>
    %175 = arith.truncf %174 : vector<7x128xf32> to vector<7x128xbf16>
    %cst_117 = arith.constant dense<0.000000e+00> : vector<7x32xf32>
    %176 = tpu.matmul %175, %5, %cst_117 {dimension_numbers = #tpu.dot_dimension_numbers<[1], [0], [0], [1], [0, 0, 1, 1], [], []>} : vector<7x128xbf16>, vector<128x32xbf16>, vector<7x32xf32> -> vector<7x32xf32>
    %c0_118 = arith.constant 0 : index
    %c0_119 = arith.constant 0 : index
    %177 = vector.load %arg13[%c0_118, %c0_119] : memref<32x32xbf16, #tpu.memory_space<vmem>>, vector<32x32xbf16>
    %178 = arith.truncf %176 : vector<7x32xf32> to vector<7x32xbf16>
    %cst_120 = arith.constant dense<0.000000e+00> : vector<7x32xf32>
    %179 = tpu.matmul %178, %177, %cst_120 {dimension_numbers = #tpu.dot_dimension_numbers<[1], [0], [0], [1], [0, 0, 1, 1], [], []>} : vector<7x32xbf16>, vector<32x32xbf16>, vector<7x32xf32> -> vector<7x32xf32>
    %c0_121 = arith.constant 0 : index
    %c0_122 = arith.constant 0 : index
    %180 = vector.load %arg14[%c0_121, %c0_122] : memref<1x32xf32, #tpu.memory_space<vmem>>, vector<1x32xf32>
    %181 = vector.broadcast %180 : vector<1x32xf32> to vector<7x32xf32>
    %182 = arith.addf %179, %181 : vector<7x32xf32>
    %183 = arith.addf %149, %182 : vector<7x32xf32>
    %cst_123 = arith.constant 0.707106769 : f32
    %184 = vector.broadcast %cst_123 : f32 to vector<7x32xf32>
    %185 = arith.mulf %183, %184 : vector<7x32xf32>
    %186 = arith.addf %185, %102 : vector<7x32xf32>
    %cst_124 = arith.constant 0.707106769 : f32
    %187 = vector.broadcast %cst_124 : f32 to vector<7x32xf32>
    %188 = arith.mulf %186, %187 : vector<7x32xf32>
    %c0_125 = arith.constant 0 : index
    %c0_126 = arith.constant 0 : index
    %189 = vector.load %arg15[%c0_125, %c0_126] : memref<32x32xbf16, #tpu.memory_space<vmem>>, vector<32x32xbf16>
    %190 = arith.truncf %188 : vector<7x32xf32> to vector<7x32xbf16>
    %cst_127 = arith.constant dense<0.000000e+00> : vector<7x32xf32>
    %191 = tpu.matmul %190, %189, %cst_127 {dimension_numbers = #tpu.dot_dimension_numbers<[1], [0], [0], [1], [0, 0, 1, 1], [], []>} : vector<7x32xbf16>, vector<32x32xbf16>, vector<7x32xf32> -> vector<7x32xf32>
    %c0_128 = arith.constant 0 : index
    %c0_129 = arith.constant 0 : index
    %192 = vector.load %arg16[%c0_128, %c0_129] : memref<1x32xf32, #tpu.memory_space<vmem>>, vector<1x32xf32>
    %193 = vector.broadcast %192 : vector<1x32xf32> to vector<7x32xf32>
    %194 = arith.addf %191, %193 : vector<7x32xf32>
    %c0_130 = arith.constant 0 : index
    %c0_131 = arith.constant 0 : index
    %195 = vector.load %arg17[%c0_130, %c0_131] : memref<32x128xbf16, #tpu.memory_space<vmem>>, vector<32x128xbf16>
    %196 = arith.truncf %194 : vector<7x32xf32> to vector<7x32xbf16>
    %cst_132 = arith.constant dense<0.000000e+00> : vector<7x128xf32>
    %197 = tpu.matmul %196, %195, %cst_132 {dimension_numbers = #tpu.dot_dimension_numbers<[1], [0], [0], [1], [0, 0, 1, 1], [], []>} : vector<7x32xbf16>, vector<32x128xbf16>, vector<7x128xf32> -> vector<7x128xf32>
    %c0_133 = arith.constant 0 : index
    %c0_134 = arith.constant 0 : index
    %198 = vector.load %arg18[%c0_133, %c0_134] : memref<1x128xf32, #tpu.memory_space<vmem>>, vector<1x128xf32>
    %199 = vector.broadcast %198 : vector<1x128xf32> to vector<7x128xf32>
    %200 = arith.addf %197, %199 : vector<7x128xf32>
    %c0_135 = arith.constant 0 : index
    %c0_136 = arith.constant 0 : index
    %c0_137 = arith.constant 0 : index
    %201 = vector.load %arg19[%c0_135, %c0_136, %c0_137] : memref<1x7x128xf32, #tpu.memory_space<vmem>>, vector<1x7x128xf32>
    %202 = vector.shape_cast %201 : vector<1x7x128xf32> to vector<7x128xf32>
    %203 = vector.shape_cast %200 : vector<7x128xf32> to vector<1x7x128xf32>
    tpu.vector_store %arg19[%c0_135, %c0_136, %c0_137], %203 {strides = array<i32>} : memref<1x7x128xf32, #tpu.memory_space<vmem>>, vector<1x7x128xf32>,
    %c0_138 = arith.constant 0 : index
    %c0_139 = arith.constant 0 : index
    %c0_140 = arith.constant 0 : index
    %204 = vector.load %arg20[%c0_138, %c0_139, %c0_140] : memref<1x7x128xf32, #tpu.memory_space<vmem>>, vector<1x7x128xf32>
    %205 = vector.shape_cast %204 : vector<1x7x128xf32> to vector<7x128xf32>
    %206 = vector.shape_cast %174 : vector<7x128xf32> to vector<1x7x128xf32>
    tpu.vector_store %arg20[%c0_138, %c0_139, %c0_140], %206 {strides = array<i32>} : memref<1x7x128xf32, #tpu.memory_space<vmem>>, vector<1x7x128xf32>,
    return
  }
  func.func @transform_0(%arg0: i32) -> (i32, i32, i32) {
    %c0_i32 = arith.constant 0 : i32
    %c0_i32_0 = arith.constant 0 : i32
    %c0_i32_1 = arith.constant 0 : i32
    return %arg0, %c0_i32, %c0_i32_0 : i32, i32, i32
  }
  func.func @transform_1(%arg0: i32) -> (i32, i32, i32) {
    %c0_i32 = arith.constant 0 : i32
    %c0_i32_0 = arith.constant 0 : i32
    %c0_i32_1 = arith.constant 0 : i32
    return %arg0, %c0_i32, %c0_i32_0 : i32, i32, i32
  }
  func.func @transform_2(%arg0: i32) -> (i32, i32, i32) {
    %c0_i32 = arith.constant 0 : i32
    %c0_i32_0 = arith.constant 0 : i32
    %c0_i32_1 = arith.constant 0 : i32
    return %arg0, %c0_i32, %c0_i32_0 : i32, i32, i32
  }
  func.func @transform_3(%arg0: i32) -> (i32, i32, i32) {
    %c0_i32 = arith.constant 0 : i32
    %c0_i32_0 = arith.constant 0 : i32
    %c0_i32_1 = arith.constant 0 : i32
    return %arg0, %c0_i32, %c0_i32_0 : i32, i32, i32
  }
  func.func @transform_4(%arg0: i32) -> (i32, i32) {
    %c0_i32 = arith.constant 0 : i32
    %c0_i32_0 = arith.constant 0 : i32
    %c0_i32_1 = arith.constant 0 : i32
    return %c0_i32, %c0_i32_0 : i32, i32
  }
  func.func @transform_5(%arg0: i32) -> (i32, i32) {
    %c0_i32 = arith.constant 0 : i32
    %c0_i32_0 = arith.constant 0 : i32
    %c0_i32_1 = arith.constant 0 : i32
    return %c0_i32, %c0_i32_0 : i32, i32
  }
  func.func @transform_6(%arg0: i32) -> (i32, i32, i32, i32) {
    %c0_i32 = arith.constant 0 : i32
    %c0_i32_0 = arith.constant 0 : i32
    %c0_i32_1 = arith.constant 0 : i32
    %c0_i32_2 = arith.constant 0 : i32
    %c0_i32_3 = arith.constant 0 : i32
    return %c0_i32, %c0_i32_0, %c0_i32_1, %c0_i32_2 : i32, i32, i32, i32
  }
  func.func @transform_7(%arg0: i32) -> (i32, i32, i32, i32) {
    %c0_i32 = arith.constant 0 : i32
    %c0_i32_0 = arith.constant 0 : i32
    %c0_i32_1 = arith.constant 0 : i32
    %c0_i32_2 = arith.constant 0 : i32
    %c0_i32_3 = arith.constant 0 : i32
    return %c0_i32, %c0_i32_0, %c0_i32_1, %c0_i32_2 : i32, i32, i32, i32
  }
  func.func @transform_8(%arg0: i32) -> (i32, i32, i32) {
    %c0_i32 = arith.constant 0 : i32
    %c0_i32_0 = arith.constant 0 : i32
    %c0_i32_1 = arith.constant 0 : i32
    %c0_i32_2 = arith.constant 0 : i32
    return %c0_i32, %c0_i32_0, %c0_i32_1 : i32, i32, i32
  }
  func.func @transform_9(%arg0: i32) -> (i32, i32, i32) {
    %c0_i32 = arith.constant 0 : i32
    %c0_i32_0 = arith.constant 0 : i32
    %c0_i32_1 = arith.constant 0 : i32
    %c0_i32_2 = arith.constant 0 : i32
    return %c0_i32, %c0_i32_0, %c0_i32_1 : i32, i32, i32
  }
  func.func @transform_10(%arg0: i32) -> (i32, i32) {
    %c0_i32 = arith.constant 0 : i32
    %c0_i32_0 = arith.constant 0 : i32
    %c0_i32_1 = arith.constant 0 : i32
    return %c0_i32, %c0_i32_0 : i32, i32
  }
  func.func @transform_11(%arg0: i32) -> (i32, i32) {
    %c0_i32 = arith.constant 0 : i32
    %c0_i32_0 = arith.constant 0 : i32
    %c0_i32_1 = arith.constant 0 : i32
    return %c0_i32, %c0_i32_0 : i32, i32
  }
  func.func @transform_12(%arg0: i32) -> (i32, i32) {
    %c0_i32 = arith.constant 0 : i32
    %c0_i32_0 = arith.constant 0 : i32
    %c0_i32_1 = arith.constant 0 : i32
    return %c0_i32, %c0_i32_0 : i32, i32
  }
  func.func @transform_13(%arg0: i32) -> (i32, i32) {
    %c0_i32 = arith.constant 0 : i32
    %c0_i32_0 = arith.constant 0 : i32
    %c0_i32_1 = arith.constant 0 : i32
    return %c0_i32, %c0_i32_0 : i32, i32
  }
  func.func @transform_14(%arg0: i32) -> (i32, i32) {
    %c0_i32 = arith.constant 0 : i32
    %c0_i32_0 = arith.constant 0 : i32
    %c0_i32_1 = arith.constant 0 : i32
    return %c0_i32, %c0_i32_0 : i32, i32
  }
  func.func @transform_15(%arg0: i32) -> (i32, i32) {
    %c0_i32 = arith.constant 0 : i32
    %c0_i32_0 = arith.constant 0 : i32
    %c0_i32_1 = arith.constant 0 : i32
    return %c0_i32, %c0_i32_0 : i32, i32
  }
  func.func @transform_16(%arg0: i32) -> (i32, i32) {
    %c0_i32 = arith.constant 0 : i32
    %c0_i32_0 = arith.constant 0 : i32
    %c0_i32_1 = arith.constant 0 : i32
    return %c0_i32, %c0_i32_0 : i32, i32
  }
  func.func @transform_17(%arg0: i32) -> (i32, i32) {
    %c0_i32 = arith.constant 0 : i32
    %c0_i32_0 = arith.constant 0 : i32
    %c0_i32_1 = arith.constant 0 : i32
    return %c0_i32, %c0_i32_0 : i32, i32
  }
  func.func @transform_18(%arg0: i32) -> (i32, i32, i32) {
    %c0_i32 = arith.constant 0 : i32
    %c0_i32_0 = arith.constant 0 : i32
    %c0_i32_1 = arith.constant 0 : i32
    return %arg0, %c0_i32, %c0_i32_0 : i32, i32, i32
  }
  func.func @transform_19(%arg0: i32) -> (i32, i32, i32) {
    %c0_i32 = arith.constant 0 : i32
    %c0_i32_0 = arith.constant 0 : i32
    %c0_i32_1 = arith.constant 0 : i32
    return %arg0, %c0_i32, %c0_i32_0 : i32, i32, i32
  }
}

</mosaic_0001>

<llo_original>
// kernel: _teacher_forced_forward.2
$region0: #{_teacher_forced_forward.2}
  #allocation0 [shape = 'u32[]', space=smem, size = 0x4, offset = 0x4, fixed_abs, tag = 'smem constant byte address 0x4 - core index']
  #allocation1 [shape = 'u32[144,128]{1,0:T(1,128)}', space=vmem, size = 0x12000, scoped, tag = 'internal scratch']
  %s0 = inlined_call_operand.vmem [shape: f32[2,8,32], index: 0, kind: input, shape index: {}]
  %s1 = inlined_call_operand.vmem [shape: bf16[32,32], index: 1, kind: input, shape index: {}]
  %s2 = inlined_call_operand.vmem [shape: f32[1,32], index: 2, kind: input, shape index: {}]
  %s3 = inlined_call_operand.vmem [shape: bf16[2,3,32,32], index: 3, kind: input, shape index: {}]
  %s4 = inlined_call_operand.vmem [shape: bf16[2,3,32,32], index: 4, kind: input, shape index: {}]
  %s5 = inlined_call_operand.vmem [shape: f32[2,1,32], index: 5, kind: input, shape index: {}]
  %s6 = inlined_call_operand.vmem [shape: f32[2,1,32], index: 6, kind: input, shape index: {}]
  %s7 = inlined_call_operand.vmem [shape: bf16[32,32], index: 7, kind: input, shape index: {}]
  %s8 = inlined_call_operand.vmem [shape: f32[1,32], index: 8, kind: input, shape index: {}]
  %s9 = inlined_call_operand.vmem [shape: bf16[2,8,32], index: 9, kind: output, shape index: {0}]
  %s10 = inlined_call_operand.vmem [shape: bf16[2,8,32], index: 10, kind: output, shape index: {1}]
  %11 = xla_tuple %s9, %s10
  %s12 = sld [smem:[#allocation0]]
  $region77: #{_teacher_forced_forward.2} parent=0
    _
  %s14 = ssub.s32 1, %s12
  %s15 = scalar_select 0, %s14, %s12
  loop: start=0, step=1, limit=4
  $region2: #{_teacher_forced_forward.2} parent=0 // loop_pre_header
    _
  $region3: #{_teacher_forced_forward.2} parent=0 // loop_header
    %s17 = sphi 0, %s21
    %p18 = scmp.ge.s32.totalorder %s17, 4
    %s27 = sphi 0, %s29
    %s30 = sphi 0, %s27
    %s31 = sphi 0, %s30
    %s47 = sphi 0, %s31
    %s51 = sphi 0, %s51
    %s53 = sphi 0, %s51
    %s54 = sphi 0, %s53
    %s68 = sphi 0, %s54
    %s72 = sphi 0, %s72
    %s74 = sphi 0, %s72
    %s75 = sphi 0, %s74
    %s89 = sphi 0, %s75
    %s93 = sphi 0, %s93
    %s95 = sphi 0, %s93
    %s96 = sphi 0, %s95
    %s110 = sphi 0, %s96
    %s114 = sphi 0, %s114
    %s116 = sphi 0, %s114
    %s117 = sphi 0, %s116
    %s131 = sphi 0, %s117
    %s135 = sphi 0, %s135
    %s137 = sphi 0, %s135
    %s138 = sphi 0, %s137
    %s152 = sphi 0, %s138
    %s156 = sphi 0, %s156
    %s158 = sphi 0, %s156
    %s159 = sphi 0, %s158
    %s173 = sphi 0, %s159
    %s177 = sphi 0, %s177
    %s179 = sphi 0, %s177
    %s180 = sphi 0, %s179
    %s194 = sphi 0, %s180
    %s198 = sphi 0, %s198
    %s200 = sphi 0, %s198
    %s201 = sphi 0, %s200
    %s215 = sphi 0, %s201
    %s221 = sphi 0, %s223
    %s224 = sphi 0, %s221
    %s225 = sphi 0, %s224
    %s241 = sphi 0, %s225
    %s247 = sphi 0, %s249
    %s250 = sphi 0, %s247
    %s251 = sphi 0, %s250
    %s267 = sphi 0, %s251
  $region4: #{_teacher_forced_forward.2} parent=0 // loop_header_branch
    %20 = sbr.rel (%p18) target = $region8
  $region5: #{_teacher_forced_forward.2} parent=0 // loop_body
    %s22 = ssub.s32 %s17, 1
    %s23 = ssub.s32 %s17, 2
    %s24 = sadd.s32 %s17, 1
    %s25 = ssub.s32 %s17, %s24
    %p26 = scmp.eq.s32.totalorder %s25, 0
    %s28 = sadd.s32 %s27, 1
    %s29 = scalar_select %p26, %s27, %s28
    %p32 = pneg %p26
    %p33 = scmp.eq.s32.totalorder %s17, 1
    %p34 = por %p32, %p33
    %p35 = scmp.ne.s32.totalorder %s27, %s30
    %p36 = scmp.eq.s32.totalorder %s17, 0
    %p37 = por %p35, %p36
    %p38 = scmp.ne.s32.totalorder %s27, %s30
    %p39 = scmp.eq.s32.totalorder %s22, 1
    %p40 = por %p38, %p39
    %p41 = scmp.ne.s32.totalorder %s30, %s31
    %p42 = scmp.eq.s32.totalorder %s22, 0
    %p43 = por %p41, %p42
    %p44 = scmp.ne.s32.totalorder %s30, %s31
    %p45 = scmp.eq.s32.totalorder %s23, 1
    %p46 = por %p44, %p45
    %p48 = scmp.ne.s32.totalorder %s31, %s47
    %p49 = scmp.eq.s32.totalorder %s23, 0
    %p50 = por %p48, %p49
    %s52 = sadd.s32 %s51, 1
    %p55 = scmp.eq.s32.totalorder %s17, 1
    %p56 = scmp.ne.s32.totalorder %s51, %s53
    %p57 = scmp.eq.s32.totalorder %s17, 0
    %p58 = por %p56, %p57
    %p59 = scmp.ne.s32.totalorder %s51, %s53
    %p60 = scmp.eq.s32.totalorder %s22, 1
    %p61 = por %p59, %p60
    %p62 = scmp.ne.s32.totalorder %s53, %s54
    %p63 = scmp.eq.s32.totalorder %s22, 0
    %p64 = por %p62, %p63
    %p65 = scmp.ne.s32.totalorder %s53, %s54
    %p66 = scmp.eq.s32.totalorder %s23, 1
    %p67 = por %p65, %p66
    %p69 = scmp.ne.s32.totalorder %s54, %s68
    %p70 = scmp.eq.s32.totalorder %s23, 0
    %p71 = por %p69, %p70
    %s73 = sadd.s32 %s72, 1
    %p76 = scmp.eq.s32.totalorder %s17, 1
    %p77 = scmp.ne.s32.totalorder %s72, %s74
    %p78 = scmp.eq.s32.totalorder %s17, 0
    %p79 = por %p77, %p78
    %p80 = scmp.ne.s32.totalorder %s72, %s74
    %p81 = scmp.eq.s32.totalorder %s22, 1
    %p82 = por %p80, %p81
    %p83 = scmp.ne.s32.totalorder %s74, %s75
    %p84 = scmp.eq.s32.totalorder %s22, 0
    %p85 = por %p83, %p84
    %p86 = scmp.ne.s32.totalorder %s74, %s75
    %p87 = scmp.eq.s32.totalorder %s23, 1
    %p88 = por %p86, %p87
    %p90 = scmp.ne.s32.totalorder %s75, %s89
    %p91 = scmp.eq.s32.totalorder %s23, 0
    %p92 = por %p90, %p91
    %s94 = sadd.s32 %s93, 1
    %p97 = scmp.eq.s32.totalorder %s17, 1
    %p98 = scmp.ne.s32.totalorder %s93, %s95
    %p99 = scmp.eq.s32.totalorder %s17, 0
    %p100 = por %p98, %p99
    %p101 = scmp.ne.s32.totalorder %s93, %s95
    %p102 = scmp.eq.s32.totalorder %s22, 1
    %p103 = por %p101, %p102
    %p104 = scmp.ne.s32.totalorder %s95, %s96
    %p105 = scmp.eq.s32.totalorder %s22, 0
    %p106 = por %p104, %p105
    %p107 = scmp.ne.s32.totalorder %s95, %s96
    %p108 = scmp.eq.s32.totalorder %s23, 1
    %p109 = por %p107, %p108
    %p111 = scmp.ne.s32.totalorder %s96, %s110
    %p112 = scmp.eq.s32.totalorder %s23, 0
    %p113 = por %p111, %p112
    %s115 = sadd.s32 %s114, 1
    %p118 = scmp.eq.s32.totalorder %s17, 1
    %p119 = scmp.ne.s32.totalorder %s114, %s116
    %p120 = scmp.eq.s32.totalorder %s17, 0
    %p121 = por %p119, %p120
    %p122 = scmp.ne.s32.totalorder %s114, %s116
    %p123 = scmp.eq.s32.totalorder %s22, 1
    %p124 = por %p122, %p123
    %p125 = scmp.ne.s32.totalorder %s116, %s117
    %p126 = scmp.eq.s32.totalorder %s22, 0
    %p127 = por %p125, %p126
    %p128 = scmp.ne.s32.totalorder %s116, %s117
    %p129 = scmp.eq.s32.totalorder %s23, 1
    %p130 = por %p128, %p129
    %p132 = scmp.ne.s32.totalorder %s117, %s131
    %p133 = scmp.eq.s32.totalorder %s23, 0
    %p134 = por %p132, %p133
    %s136 = sadd.s32 %s135, 1
    %p139 = scmp.eq.s32.totalorder %s17, 1
    %p140 = scmp.ne.s32.totalorder %s135, %s137
    %p141 = scmp.eq.s32.totalorder %s17, 0
    %p142 = por %p140, %p141
    %p143 = scmp.ne.s32.totalorder %s135, %s137
    %p144 = scmp.eq.s32.totalorder %s22, 1
    %p145 = por %p143, %p144
    %p146 = scmp.ne.s32.totalorder %s137, %s138
    %p147 = scmp.eq.s32.totalorder %s22, 0
    %p148 = por %p146, %p147
    %p149 = scmp.ne.s32.totalorder %s137, %s138
    %p150 = scmp.eq.s32.totalorder %s23, 1
    %p151 = por %p149, %p150
    %p153 = scmp.ne.s32.totalorder %s138, %s152
    %p154 = scmp.eq.s32.totalorder %s23, 0
    %p155 = por %p153, %p154
    %s157 = sadd.s32 %s156, 1
    %p160 = scmp.eq.s32.totalorder %s17, 1
    %p161 = scmp.ne.s32.totalorder %s156, %s158
    %p162 = scmp.eq.s32.totalorder %s17, 0
    %p163 = por %p161, %p162
    %p164 = scmp.ne.s32.totalorder %s156, %s158
    %p165 = scmp.eq.s32.totalorder %s22, 1
    %p166 = por %p164, %p165
    %p167 = scmp.ne.s32.totalorder %s158, %s159
    %p168 = scmp.eq.s32.totalorder %s22, 0
    %p169 = por %p167, %p168
    %p170 = scmp.ne.s32.totalorder %s158, %s159
    %p171 = scmp.eq.s32.totalorder %s23, 1
    %p172 = por %p170, %p171
    %p174 = scmp.ne.s32.totalorder %s159, %s173
    %p175 = scmp.eq.s32.totalorder %s23, 0
    %p176 = por %p174, %p175
    %s178 = sadd.s32 %s177, 1
    %p181 = scmp.eq.s32.totalorder %s17, 1
    %p182 = scmp.ne.s32.totalorder %s177, %s179
    %p183 = scmp.eq.s32.totalorder %s17, 0
    %p184 = por %p182, %p183
    %p185 = scmp.ne.s32.totalorder %s177, %s179
    %p186 = scmp.eq.s32.totalorder %s22, 1
    %p187 = por %p185, %p186
    %p188 = scmp.ne.s32.totalorder %s179, %s180
    %p189 = scmp.eq.s32.totalorder %s22, 0
    %p190 = por %p188, %p189
    %p191 = scmp.ne.s32.totalorder %s179, %s180
    %p192 = scmp.eq.s32.totalorder %s23, 1
    %p193 = por %p191, %p192
    %p195 = scmp.ne.s32.totalorder %s180, %s194
    %p196 = scmp.eq.s32.totalorder %s23, 0
    %p197 = por %p195, %p196
    %s199 = sadd.s32 %s198, 1
    %p202 = scmp.eq.s32.totalorder %s17, 1
    %p203 = scmp.ne.s32.totalorder %s198, %s200
    %p204 = scmp.eq.s32.totalorder %s17, 0
    %p205 = por %p203, %p204
    %p206 = scmp.ne.s32.totalorder %s198, %s200
    %p207 = scmp.eq.s32.totalorder %s22, 1
    %p208 = por %p206, %p207
    %p209 = scmp.ne.s32.totalorder %s200, %s201
    %p210 = scmp.eq.s32.totalorder %s22, 0
    %p211 = por %p209, %p210
    %p212 = scmp.ne.s32.totalorder %s200, %s201
    %p213 = scmp.eq.s32.totalorder %s23, 1
    %p214 = por %p212, %p213
    %p216 = scmp.ne.s32.totalorder %s201, %s215
    %p217 = scmp.eq.s32.totalorder %s23, 0
    %p218 = por %p216, %p217
    %s219 = ssub.s32 %s17, %s24
    %p220 = scmp.eq.s32.totalorder %s219, 0
    %s222 = sadd.s32 %s221, 1
    %s223 = scalar_select %p220, %s221, %s222
    %p226 = pneg %p220
    %p227 = scmp.eq.s32.totalorder %s17, 1
    %p228 = por %p226, %p227
    %p229 = scmp.ne.s32.totalorder %s221, %s224
    %p230 = scmp.eq.s32.totalorder %s17, 0
    %p231 = por %p229, %p230
    %p232 = scmp.ne.s32.totalorder %s221, %s224
    %p233 = scmp.eq.s32.totalorder %s22, 1
    %p234 = por %p232, %p233
    %p235 = scmp.ne.s32.totalorder %s224, %s225
    %p236 = scmp.eq.s32.totalorder %s22, 0
    %p237 = por %p235, %p236
    %p238 = scmp.ne.s32.totalorder %s224, %s225
    %p239 = scmp.eq.s32.totalorder %s23, 1
    %p240 = por %p238, %p239
    %p242 = scmp.ne.s32.totalorder %s225, %s241
    %p243 = scmp.eq.s32.totalorder %s23, 0
    %p244 = por %p242, %p243
    %s245 = ssub.s32 %s17, %s24
    %p246 = scmp.eq.s32.totalorder %s245, 0
    %s248 = sadd.s32 %s247, 1
    %s249 = scalar_select %p246, %s247, %s248
    %p252 = pneg %p246
    %p253 = scmp.eq.s32.totalorder %s17, 1
    %p254 = por %p252, %p253
    %p255 = scmp.ne.s32.totalorder %s247, %s250
    %p256 = scmp.eq.s32.totalorder %s17, 0
    %p257 = por %p255, %p256
    %p258 = scmp.ne.s32.totalorder %s247, %s250
    %p259 = scmp.eq.s32.totalorder %s22, 1
    %p260 = por %p258, %p259
    %p261 = scmp.ne.s32.totalorder %s250, %s251
    %p262 = scmp.eq.s32.totalorder %s22, 0
    %p263 = por %p261, %p262
    %p264 = scmp.ne.s32.totalorder %s250, %s251
    %p265 = scmp.eq.s32.totalorder %s23, 1
    %p266 = por %p264, %p265
    %p268 = scmp.ne.s32.totalorder %s251, %s267
    %p269 = scmp.eq.s32.totalorder %s23, 0
    %p270 = por %p268, %p269
    %p271 = scmp.le.s32.totalorder 1, %s17
    %p272 = scmp.lt.s32.totalorder %s17, 3
    %p273 = pnand %p271, %p272
    %p274 = pneg %p273
    // Predicated region
    $region9: #{_teacher_forced_forward.2} parent=5 // pred_check
      _
    $region10: #{_teacher_forced_forward.2} parent=5 // pred_check_branch
      %276 = sbr.rel (%p273) target = $region12
    $region11: #{_teacher_forced_forward.2} parent=5 // pred_region
      %s277 = ssub.s32 %s17, 1
      // Predicated region
      $region13: #{_teacher_forced_forward.2} parent=11 // pred_check
        %p278 = pneg %p64
      $region14: #{_teacher_forced_forward.2} parent=11 // pred_check_branch
        %280 = sbr.rel (%p278) target = $region16
      $region15: #{_teacher_forced_forward.2} parent=11 // pred_region
        _
      $region16: #{_teacher_forced_forward.2} parent=11 // pred_fallthru
        _
      // Predicated region
      $region17: #{_teacher_forced_forward.2} parent=11 // pred_check
        %p281 = pneg %p85
      $region18: #{_teacher_forced_forward.2} parent=11 // pred_check_branch
        %283 = sbr.rel (%p281) target = $region20
      $region19: #{_teacher_forced_forward.2} parent=11 // pred_region
        _
      $region20: #{_teacher_forced_forward.2} parent=11 // pred_fallthru
        _
      // Predicated region
      $region21: #{_teacher_forced_forward.2} parent=11 // pred_check
        %p284 = pneg %p106
      $region22: #{_teacher_forced_forward.2} parent=11 // pred_check_branch
        %286 = sbr.rel (%p284) target = $region24
      $region23: #{_teacher_forced_forward.2} parent=11 // pred_region
        _
      $region24: #{_teacher_forced_forward.2} parent=11 // pred_fallthru
        _
      // Predicated region
      $region25: #{_teacher_forced_forward.2} parent=11 // pred_check
        %p287 = pneg %p127
      $region26: #{_teacher_forced_forward.2} parent=11 // pred_check_branch
        %289 = sbr.rel (%p287) target = $region28
      $region27: #{_teacher_forced_forward.2} parent=11 // pred_region
        _
      $region28: #{_teacher_forced_forward.2} parent=11 // pred_fallthru
        _
      // Predicated region
      $region29: #{_teacher_forced_forward.2} parent=11 // pred_check
        %p290 = pneg %p148
      $region30: #{_teacher_forced_forward.2} parent=11 // pred_check_branch
        %292 = sbr.rel (%p290) target = $region32
      $region31: #{_teacher_forced_forward.2} parent=11 // pred_region
        _
      $region32: #{_teacher_forced_forward.2} parent=11 // pred_fallthru
        _
      // Predicated region
      $region33: #{_teacher_forced_forward.2} parent=11 // pred_check
        %p293 = pneg %p169
      $region34: #{_teacher_forced_forward.2} parent=11 // pred_check_branch
        %295 = sbr.rel (%p293) target = $region36
      $region35: #{_teacher_forced_forward.2} parent=11 // pred_region
        _
      $region36: #{_teacher_forced_forward.2} parent=11 // pred_fallthru
        _
      // Predicated region
      $region37: #{_teacher_forced_forward.2} parent=11 // pred_check
        %p296 = pneg %p190
      $region38: #{_teacher_forced_forward.2} parent=11 // pred_check_branch
        %298 = sbr.rel (%p296) target = $region40
      $region39: #{_teacher_forced_forward.2} parent=11 // pred_region
        _
      $region40: #{_teacher_forced_forward.2} parent=11 // pred_fallthru
        _
      // Predicated region
      $region41: #{_teacher_forced_forward.2} parent=11 // pred_check
        %p299 = pneg %p211
      $region42: #{_teacher_forced_forward.2} parent=11 // pred_check_branch
        %301 = sbr.rel (%p299) target = $region44
      $region43: #{_teacher_forced_forward.2} parent=11 // pred_region
        _
      $region44: #{_teacher_forced_forward.2} parent=11 // pred_fallthru
        _
    $region12: #{_teacher_forced_forward.2} parent=5 // pred_fallthru
      _
    %p302 = scmp.lt.s32.totalorder %s17, 2
    // Predicated region
    $region45: #{_teacher_forced_forward.2} parent=5 // pred_check
      %p303 = pneg %p302
    $region46: #{_teacher_forced_forward.2} parent=5 // pred_check_branch
      %305 = sbr.rel (%p303) target = $region48
    $region47: #{_teacher_forced_forward.2} parent=5 // pred_region
      // Predicated region
      $region49: #{_teacher_forced_forward.2} parent=47 // pred_check
        %p306 = pneg %p37
      $region50: #{_teacher_forced_forward.2} parent=47 // pred_check_branch
        %308 = sbr.rel (%p306) target = $region52
      $region51: #{_teacher_forced_forward.2} parent=47 // pred_region
        %p309 = scmp.lt.s32.totalorder %s17, 1
        %s310 = scalar_select %p309, %s17, 1
        %s311 = smul.addr %s310, 8
        %s312 = scalar_lea.vmem %s0, %s311
      $region52: #{_teacher_forced_forward.2} parent=47 // pred_fallthru
        _
    $region48: #{_teacher_forced_forward.2} parent=5 // pred_fallthru
      _
    %p313 = scmp.le.s32.totalorder 1, %s17
    %p314 = scmp.lt.s32.totalorder %s17, 3
    %p315 = pnand %p313, %p314
    %p316 = pneg %p315
    // Predicated region
    $region53: #{_teacher_forced_forward.2} parent=5 // pred_check
      _
    $region54: #{_teacher_forced_forward.2} parent=5 // pred_check_branch
      %318 = sbr.rel (%p315) target = $region56
    $region55: #{_teacher_forced_forward.2} parent=5 // pred_region
      %s319 = ssub.s32 %s17, 1
      %p320 = scmp.lt.s32.totalorder %s22, 1
      %s321 = scalar_select %p320, %s22, 1
      %s322 = smul.addr %s321, 8
      %s323 = scalar_lea.vmem %s0, %s322
      %p324 = pneg %p43
      %p325 = pneg %p40
      %p326 = pneg %p64
      %p327 = pneg %p61
      %p328 = pneg %p85
      %p329 = pneg %p82
      %p330 = pneg %p106
      %p331 = pneg %p103
      %p332 = pneg %p127
      %p333 = pneg %p124
      %p334 = pneg %p148
      %p335 = pneg %p145
      %p336 = pneg %p169
      %p337 = pneg %p166
      %p338 = pneg %p190
      %p339 = pneg %p187
      %p340 = pneg %p211
      %p341 = pneg %p208
      %p342 = pneg %p237
      %p343 = pneg %p234
      %p344 = scmp.lt.s32.totalorder %s22, 1
      %s345 = scalar_select %p344, %s22, 1
      %s346 = smul.addr %s345, 4
      %s347 = scalar_lea.vmem %s9, %s346
      %p348 = pneg %p263
      %p349 = pneg %p260
      %p350 = scmp.lt.s32.totalorder %s22, 1
      %s351 = scalar_select %p350, %s22, 1
      %s352 = smul.addr %s351, 4
      %s353 = scalar_lea.vmem %s10, %s352
      %p354 = scmp.lt.s32.totalorder %s22, 1
      %s355 = scalar_select %p354, %s22, 1
      %s356 = smul.addr %s355, 8
      %s357 = scalar_lea.vmem %s0, %s356
      %p358 = scmp.lt.s32.totalorder %s22, 1
      %s359 = scalar_select %p358, %s22, 1
      %s360 = smul.addr %s359, 4
      %s361 = scalar_lea.vmem %s9, %s360
      %p362 = scmp.lt.s32.totalorder %s22, 1
      %s363 = scalar_select %p362, %s22, 1
      %s364 = smul.addr %s363, 4
      %s365 = scalar_lea.vmem %s10, %s364
      %v367 = vld [vmem:[%s357] sm:$0xff]
      %v368 = vld [vmem:[%s1] sm:$0xf]
      %v369 = vld [vmem:[%s1 + $0x4] sm:$0xf]
      %v370 = vld [vmem:[%s1 + $0x8] sm:$0xf]
      %v371 = vld [vmem:[%s1 + $0xc] sm:$0xf]
      %v372 = vpack.c.bf16 %v367, %v367
      %v373 = vld [vmem:[%s2] sm:$0x1]
      %v375 = vlaneseq
      %v376 = vshrl.u32 %v375, 7
      %v377 = vsub.s32 0, %v376
      %v378 = vrot.slane %v373, %v377
      %v384 = vunpack.c.l.b16 %v368
      %v385 = vunpack.c.l.b16 %v369
      %v386 = vunpack.c.l.b16 %v370
      %v387 = vunpack.c.l.b16 %v371
      %v388 = vpack.c.b16 %v385, %v384
      %v389 = vpack.c.b16 %v387, %v386
      %vm392 = vcmask 261120
      %v394 = vsel %vm392, %v372, 0
      %396 = vmatprep.subr.bf16.mxu0 0
      %397 = vmatpush1.bf16.msra.mxu0 %v388
      %398 = vmatprep.subr.bf16.mxu0 0
      %399 = vmatpush1.bf16.msra.mxu0 %v389
      %400 = vmatprep.subr.bf16.mxu0 0
      %401 = vmatpush1.bf16.msra.mxu0 0
      %402 = vmatprep.subr.bf16.mxu0 0
      %403 = vmatpush1.bf16.msra.mxu0 0
      %404 = vmatprep.subr.bf16.mxu0 0
      %405 = vmatpush1.bf16.msra.mxu0 0
      %406 = vmatprep.subr.bf16.mxu0 0
      %407 = vmatpush1.bf16.msra.mxu0 0
      %408 = vmatprep.subr.bf16.mxu0 0
      %409 = vmatpush1.bf16.msra.mxu0 0
      %410 = vmatprep.subr.bf16.mxu0 0
      %411 = vmatpush1.bf16.msra.mxu0 0
      %412 = vmatprep.subr.bf16.mxu0 0
      %413 = vmatpush1.bf16.msra.mxu0 0
      %414 = vmatprep.subr.bf16.mxu0 0
      %415 = vmatpush1.bf16.msra.mxu0 0
      %416 = vmatprep.subr.bf16.mxu0 0
      %417 = vmatpush1.bf16.msra.mxu0 0
      %418 = vmatprep.subr.bf16.mxu0 0
      %419 = vmatpush1.bf16.msra.mxu0 0
      %420 = vmatprep.subr.bf16.mxu0 0
      %421 = vmatpush1.bf16.msra.mxu0 0
      %422 = vmatprep.subr.bf16.mxu0 0
      %423 = vmatpush1.bf16.msra.mxu0 0
      %424 = vmatprep.subr.bf16.mxu0 0
      %425 = vmatpush1.bf16.msra.mxu0 0
      %426 = vmatprep.subr.bf16.mxu0 0
      %427 = vmatpush1.bf16.msra.mxu0 0
      %428 = vmatprep.mubr.bf16.mxu0 0
      %429 = vmatmul.mubr.bf16.gmra.mrb[0].mxu0 %v394
      %v430 = vpop.f32.mrb[0].mxu0
      %v431 = vadd.f32 %v378, %v430
      %v432 = vpop.f32.mrb[0].mxu0
      %v433 = vpop.f32.mrb[0].mxu0
      %v434 = vpop.f32.mrb[0].mxu0
      %435 = vdwg.mxu0
      %v437 = vrot.slane %v431, 7
      %vm439 = vcmask 1040384
      %v440 = vsel %vm439, 0.0, %v437
      %v441 = vsel %vm439, %v437, 0.0
      %v442 = vld [vmem:[%s3] sm:$0xf]
      %v443 = vld [vmem:[%s3 + $0x4] sm:$0xf]
      %v444 = vld [vmem:[%s3 + $0x8] sm:$0xf]
      %v445 = vld [vmem:[%s3 + $0xc] sm:$0xf]
      %v446 = vpack.c.bf16 %v440, %v440
      %v447 = vld [vmem:[%s4] sm:$0xf]
      %v448 = vld [vmem:[%s4 + $0x4] sm:$0xf]
      %v449 = vld [vmem:[%s4 + $0x8] sm:$0xf]
      %v450 = vld [vmem:[%s4 + $0xc] sm:$0xf]
      %s451 = scalar_lea.vmem %s3, 16
      %v452 = vld [vmem:[%s451] sm:$0xf]
      %v453 = vld [vmem:[%s451 + $0x4] sm:$0xf]
      %v454 = vld [vmem:[%s451 + $0x8] sm:$0xf]
      %v455 = vld [vmem:[%s451 + $0xc] sm:$0xf]
      %v456 = vpack.c.bf16 %v441, %v440
      %v458 = vshrl.u32 %v456, 16
      %v460 = vshll.u32 %v456, 16
      %v462 = vrot.slane %v460, 1
      %v463 = vor.u32 %v458, %v462
      %v468 = vunpack.c.l.b16 %v452
      %v469 = vunpack.c.l.b16 %v453
      %v470 = vunpack.c.l.b16 %v454
      %v471 = vunpack.c.l.b16 %v455
      %v472 = vpack.c.b16 %v469, %v468
      %v473 = vpack.c.b16 %v471, %v470
      %v477 = vsel %vm392, %v463, 0
      %479 = vmatprep.subr.bf16.mxu0 0
      %480 = vmatpush1.bf16.msra.mxu0 %v472
      %481 = vmatprep.subr.bf16.mxu0 0
      %482 = vmatpush1.bf16.msra.mxu0 %v473
      %483 = vmatprep.subr.bf16.mxu0 0
      %484 = vmatpush1.bf16.msra.mxu0 0
      %485 = vmatprep.subr.bf16.mxu0 0
      %486 = vmatpush1.bf16.msra.mxu0 0
      %487 = vmatprep.subr.bf16.mxu0 0
      %488 = vmatpush1.bf16.msra.mxu0 0
      %489 = vmatprep.subr.bf16.mxu0 0
      %490 = vmatpush1.bf16.msra.mxu0 0
      %491 = vmatprep.subr.bf16.mxu0 0
      %492 = vmatpush1.bf16.msra.mxu0 0
      %493 = vmatprep.subr.bf16.mxu0 0
      %494 = vmatpush1.bf16.msra.mxu0 0
      %495 = vmatprep.subr.bf16.mxu0 0
      %496 = vmatpush1.bf16.msra.mxu0 0
      %497 = vmatprep.subr.bf16.mxu0 0
      %498 = vmatpush1.bf16.msra.mxu0 0
      %499 = vmatprep.subr.bf16.mxu0 0
      %500 = vmatpush1.bf16.msra.mxu0 0
      %501 = vmatprep.subr.bf16.mxu0 0
      %502 = vmatpush1.bf16.msra.mxu0 0
      %503 = vmatprep.subr.bf16.mxu0 0
      %504 = vmatpush1.bf16.msra.mxu0 0
      %505 = vmatprep.subr.bf16.mxu0 0
      %506 = vmatpush1.bf16.msra.mxu0 0
      %507 = vmatprep.subr.bf16.mxu0 0
      %508 = vmatpush1.bf16.msra.mxu0 0
      %509 = vmatprep.subr.bf16.mxu0 0
      %510 = vmatpush1.bf16.msra.mxu0 0
      %511 = vmatprep.mubr.bf16.mxu0 0
      %512 = vmatmul.mubr.bf16.gmra.mrb[0].mxu0 %v477
      %v513 = vpop.f32.mrb[0].mxu0
      %v514 = vadd.f32 0.0, %v513
      %v515 = vpop.f32.mrb[0].mxu0
      %v516 = vpop.f32.mrb[0].mxu0
      %v517 = vpop.f32.mrb[0].mxu0
      %518 = vdwg.mxu0
      %v523 = vunpack.c.l.b16 %v442
      %v524 = vunpack.c.l.b16 %v443
      %v525 = vunpack.c.l.b16 %v444
      %v526 = vunpack.c.l.b16 %v445
      %v527 = vpack.c.b16 %v524, %v523
      %v528 = vpack.c.b16 %v526, %v525
      %v532 = vsel %vm392, %v446, 0
      %534 = vmatprep.subr.bf16.mxu0 0
      %535 = vmatpush1.bf16.msra.mxu0 %v527
      %536 = vmatprep.subr.bf16.mxu0 0
      %537 = vmatpush1.bf16.msra.mxu0 %v528
      %538 = vmatprep.subr.bf16.mxu0 0
      %539 = vmatpush1.bf16.msra.mxu0 0
      %540 = vmatprep.subr.bf16.mxu0 0
      %541 = vmatpush1.bf16.msra.mxu0 0
      %542 = vmatprep.subr.bf16.mxu0 0
      %543 = vmatpush1.bf16.msra.mxu0 0
      %544 = vmatprep.subr.bf16.mxu0 0
      %545 = vmatpush1.bf16.msra.mxu0 0
      %546 = vmatprep.subr.bf16.mxu0 0
      %547 = vmatpush1.bf16.msra.mxu0 0
      %548 = vmatprep.subr.bf16.mxu0 0
      %549 = vmatpush1.bf16.msra.mxu0 0
      %550 = vmatprep.subr.bf16.mxu0 0
      %551 = vmatpush1.bf16.msra.mxu0 0
      %552 = vmatprep.subr.bf16.mxu0 0
      %553 = vmatpush1.bf16.msra.mxu0 0
      %554 = vmatprep.subr.bf16.mxu0 0
      %555 = vmatpush1.bf16.msra.mxu0 0
      %556 = vmatprep.subr.bf16.mxu0 0
      %557 = vmatpush1.bf16.msra.mxu0 0
      %558 = vmatprep.subr.bf16.mxu0 0
      %559 = vmatpush1.bf16.msra.mxu0 0
      %560 = vmatprep.subr.bf16.mxu0 0
      %561 = vmatpush1.bf16.msra.mxu0 0
      %562 = vmatprep.subr.bf16.mxu0 0
      %563 = vmatpush1.bf16.msra.mxu0 0
      %564 = vmatprep.subr.bf16.mxu0 0
      %565 = vmatpush1.bf16.msra.mxu0 0
      %566 = vmatprep.mubr.bf16.mxu0 0
      %567 = vmatmul.mubr.bf16.gmra.mrb[0].mxu0 %v532
      %v568 = vpop.f32.mrb[0].mxu0
      %v569 = vadd.f32 %v514, %v568
      %v570 = vpop.f32.mrb[0].mxu0
      %v571 = vpop.f32.mrb[0].mxu0
      %v572 = vpop.f32.mrb[0].mxu0
      %573 = vdwg.mxu0
      %s574 = scalar_lea.vmem %s4, 16
      %v575 = vld [vmem:[%s574] sm:$0xf]
      %v576 = vld [vmem:[%s574 + $0x4] sm:$0xf]
      %v577 = vld [vmem:[%s574 + $0x8] sm:$0xf]
      %v578 = vld [vmem:[%s574 + $0xc] sm:$0xf]
      %v583 = vunpack.c.l.b16 %v575
      %v584 = vunpack.c.l.b16 %v576
      %v585 = vunpack.c.l.b16 %v577
      %v586 = vunpack.c.l.b16 %v578
      %v587 = vpack.c.b16 %v584, %v583
      %v588 = vpack.c.b16 %v586, %v585
      %591 = vmatprep.subr.bf16.mxu0 0
      %592 = vmatpush1.bf16.msra.mxu0 %v587
      %593 = vmatprep.subr.bf16.mxu0 0
      %594 = vmatpush1.bf16.msra.mxu0 %v588
      %595 = vmatprep.subr.bf16.mxu0 0
      %596 = vmatpush1.bf16.msra.mxu0 0
      %597 = vmatprep.subr.bf16.mxu0 0
      %598 = vmatpush1.bf16.msra.mxu0 0
      %599 = vmatprep.subr.bf16.mxu0 0
      %600 = vmatpush1.bf16.msra.mxu0 0
      %601 = vmatprep.subr.bf16.mxu0 0
      %602 = vmatpush1.bf16.msra.mxu0 0
      %603 = vmatprep.subr.bf16.mxu0 0
      %604 = vmatpush1.bf16.msra.mxu0 0
      %605 = vmatprep.subr.bf16.mxu0 0
      %606 = vmatpush1.bf16.msra.mxu0 0
      %607 = vmatprep.subr.bf16.mxu0 0
      %608 = vmatpush1.bf16.msra.mxu0 0
      %609 = vmatprep.subr.bf16.mxu0 0
      %610 = vmatpush1.bf16.msra.mxu0 0
      %611 = vmatprep.subr.bf16.mxu0 0
      %612 = vmatpush1.bf16.msra.mxu0 0
      %613 = vmatprep.subr.bf16.mxu0 0
      %614 = vmatpush1.bf16.msra.mxu0 0
      %615 = vmatprep.subr.bf16.mxu0 0
      %616 = vmatpush1.bf16.msra.mxu0 0
      %617 = vmatprep.subr.bf16.mxu0 0
      %618 = vmatpush1.bf16.msra.mxu0 0
      %619 = vmatprep.subr.bf16.mxu0 0
      %620 = vmatpush1.bf16.msra.mxu0 0
      %621 = vmatprep.subr.bf16.mxu0 0
      %622 = vmatpush1.bf16.msra.mxu0 0
      %623 = vmatprep.mubr.bf16.mxu0 0
      %624 = vmatmul.mubr.bf16.gmra.mrb[0].mxu0 %v477
      %v625 = vpop.f32.mrb[0].mxu0
      %v626 = vadd.f32 0.0, %v625
      %v627 = vpop.f32.mrb[0].mxu0
      %v628 = vpop.f32.mrb[0].mxu0
      %v629 = vpop.f32.mrb[0].mxu0
      %630 = vdwg.mxu0
      %v635 = vunpack.c.l.b16 %v447
      %v636 = vunpack.c.l.b16 %v448
      %v637 = vunpack.c.l.b16 %v449
      %v638 = vunpack.c.l.b16 %v450
      %v639 = vpack.c.b16 %v636, %v635
      %v640 = vpack.c.b16 %v638, %v637
      %643 = vmatprep.subr.bf16.mxu0 0
      %644 = vmatpush1.bf16.msra.mxu0 %v639
      %645 = vmatprep.subr.bf16.mxu0 0
      %646 = vmatpush1.bf16.msra.mxu0 %v640
      %647 = vmatprep.subr.bf16.mxu0 0
      %648 = vmatpush1.bf16.msra.mxu0 0
      %649 = vmatprep.subr.bf16.mxu0 0
      %650 = vmatpush1.bf16.msra.mxu0 0
      %651 = vmatprep.subr.bf16.mxu0 0
      %652 = vmatpush1.bf16.msra.mxu0 0
      %653 = vmatprep.subr.bf16.mxu0 0
      %654 = vmatpush1.bf16.msra.mxu0 0
      %655 = vmatprep.subr.bf16.mxu0 0
      %656 = vmatpush1.bf16.msra.mxu0 0
      %657 = vmatprep.subr.bf16.mxu0 0
      %658 = vmatpush1.bf16.msra.mxu0 0
      %659 = vmatprep.subr.bf16.mxu0 0
      %660 = vmatpush1.bf16.msra.mxu0 0
      %661 = vmatprep.subr.bf16.mxu0 0
      %662 = vmatpush1.bf16.msra.mxu0 0
      %663 = vmatprep.subr.bf16.mxu0 0
      %664 = vmatpush1.bf16.msra.mxu0 0
      %665 = vmatprep.subr.bf16.mxu0 0
      %666 = vmatpush1.bf16.msra.mxu0 0
      %667 = vmatprep.subr.bf16.mxu0 0
      %668 = vmatpush1.bf16.msra.mxu0 0
      %669 = vmatprep.subr.bf16.mxu0 0
      %670 = vmatpush1.bf16.msra.mxu0 0
      %671 = vmatprep.subr.bf16.mxu0 0
      %672 = vmatpush1.bf16.msra.mxu0 0
      %673 = vmatprep.subr.bf16.mxu0 0
      %674 = vmatpush1.bf16.msra.mxu0 0
      %675 = vmatprep.mubr.bf16.mxu0 0
      %676 = vmatmul.mubr.bf16.gmra.mrb[0].mxu0 %v532
      %v677 = vpop.f32.mrb[0].mxu0
      %v678 = vadd.f32 %v626, %v677
      %v679 = vpop.f32.mrb[0].mxu0
      %v680 = vpop.f32.mrb[0].mxu0
      %v681 = vpop.f32.mrb[0].mxu0
      %682 = vdwg.mxu0
      %s683 = scalar_lea.vmem %s3, 32
      %v684 = vld [vmem:[%s683] sm:$0xf]
      %v685 = vld [vmem:[%s683 + $0x4] sm:$0xf]
      %v686 = vld [vmem:[%s683 + $0x8] sm:$0xf]
      %v687 = vld [vmem:[%s683 + $0xc] sm:$0xf]
      %v689 = vrot.slane %v456, 1
      %v694 = vunpack.c.l.b16 %v684
      %v695 = vunpack.c.l.b16 %v685
      %v696 = vunpack.c.l.b16 %v686
      %v697 = vunpack.c.l.b16 %v687
      %v698 = vpack.c.b16 %v695, %v694
      %v699 = vpack.c.b16 %v697, %v696
      %v703 = vsel %vm392, %v689, 0
      %705 = vmatprep.subr.bf16.mxu0 0
      %706 = vmatpush1.bf16.msra.mxu0 %v698
      %707 = vmatprep.subr.bf16.mxu0 0
      %708 = vmatpush1.bf16.msra.mxu0 %v699
      %709 = vmatprep.subr.bf16.mxu0 0
      %710 = vmatpush1.bf16.msra.mxu0 0
      %711 = vmatprep.subr.bf16.mxu0 0
      %712 = vmatpush1.bf16.msra.mxu0 0
      %713 = vmatprep.subr.bf16.mxu0 0
      %714 = vmatpush1.bf16.msra.mxu0 0
      %715 = vmatprep.subr.bf16.mxu0 0
      %716 = vmatpush1.bf16.msra.mxu0 0
      %717 = vmatprep.subr.bf16.mxu0 0
      %718 = vmatpush1.bf16.msra.mxu0 0
      %719 = vmatprep.subr.bf16.mxu0 0
      %720 = vmatpush1.bf16.msra.mxu0 0
      %721 = vmatprep.subr.bf16.mxu0 0
      %722 = vmatpush1.bf16.msra.mxu0 0
      %723 = vmatprep.subr.bf16.mxu0 0
      %724 = vmatpush1.bf16.msra.mxu0 0
      %725 = vmatprep.subr.bf16.mxu0 0
      %726 = vmatpush1.bf16.msra.mxu0 0
      %727 = vmatprep.subr.bf16.mxu0 0
      %728 = vmatpush1.bf16.msra.mxu0 0
      %729 = vmatprep.subr.bf16.mxu0 0
      %730 = vmatpush1.bf16.msra.mxu0 0
      %731 = vmatprep.subr.bf16.mxu0 0
      %732 = vmatpush1.bf16.msra.mxu0 0
      %733 = vmatprep.subr.bf16.mxu0 0
      %734 = vmatpush1.bf16.msra.mxu0 0
      %735 = vmatprep.subr.bf16.mxu0 0
      %736 = vmatpush1.bf16.msra.mxu0 0
      %737 = vmatprep.mubr.bf16.mxu0 0
      %738 = vmatmul.mubr.bf16.gmra.mrb[0].mxu0 %v703
      %v739 = vpop.f32.mrb[0].mxu0
      %v740 = vadd.f32 0.0, %v739
      %v741 = vpop.f32.mrb[0].mxu0
      %v742 = vpop.f32.mrb[0].mxu0
      %v743 = vpop.f32.mrb[0].mxu0
      %744 = vdwg.mxu0
      %v745 = vadd.f32 %v569, %v740
      %s746 = scalar_lea.vmem %s4, 32
      %v747 = vld [vmem:[%s746] sm:$0xf]
      %v748 = vld [vmem:[%s746 + $0x4] sm:$0xf]
      %v749 = vld [vmem:[%s746 + $0x8] sm:$0xf]
      %v750 = vld [vmem:[%s746 + $0xc] sm:$0xf]
      %v755 = vunpack.c.l.b16 %v747
      %v756 = vunpack.c.l.b16 %v748
      %v757 = vunpack.c.l.b16 %v749
      %v758 = vunpack.c.l.b16 %v750
      %v759 = vpack.c.b16 %v756, %v755
      %v760 = vpack.c.b16 %v758, %v757
      %763 = vmatprep.subr.bf16.mxu0 0
      %764 = vmatpush1.bf16.msra.mxu0 %v759
      %765 = vmatprep.subr.bf16.mxu0 0
      %766 = vmatpush1.bf16.msra.mxu0 %v760
      %767 = vmatprep.subr.bf16.mxu0 0
      %768 = vmatpush1.bf16.msra.mxu0 0
      %769 = vmatprep.subr.bf16.mxu0 0
      %770 = vmatpush1.bf16.msra.mxu0 0
      %771 = vmatprep.subr.bf16.mxu0 0
      %772 = vmatpush1.bf16.msra.mxu0 0
      %773 = vmatprep.subr.bf16.mxu0 0
      %774 = vmatpush1.bf16.msra.mxu0 0
      %775 = vmatprep.subr.bf16.mxu0 0
      %776 = vmatpush1.bf16.msra.mxu0 0
      %777 = vmatprep.subr.bf16.mxu0 0
      %778 = vmatpush1.bf16.msra.mxu0 0
      %779 = vmatprep.subr.bf16.mxu0 0
      %780 = vmatpush1.bf16.msra.mxu0 0
      %781 = vmatprep.subr.bf16.mxu0 0
      %782 = vmatpush1.bf16.msra.mxu0 0
      %783 = vmatprep.subr.bf16.mxu0 0
      %784 = vmatpush1.bf16.msra.mxu0 0
      %785 = vmatprep.subr.bf16.mxu0 0
      %786 = vmatpush1.bf16.msra.mxu0 0
      %787 = vmatprep.subr.bf16.mxu0 0
      %788 = vmatpush1.bf16.msra.mxu0 0
      %789 = vmatprep.subr.bf16.mxu0 0
      %790 = vmatpush1.bf16.msra.mxu0 0
      %791 = vmatprep.subr.bf16.mxu0 0
      %792 = vmatpush1.bf16.msra.mxu0 0
      %793 = vmatprep.subr.bf16.mxu0 0
      %794 = vmatpush1.bf16.msra.mxu0 0
      %795 = vmatprep.mubr.bf16.mxu0 0
      %796 = vmatmul.mubr.bf16.gmra.mrb[0].mxu0 %v703
      %v797 = vpop.f32.mrb[0].mxu0
      %v798 = vadd.f32 0.0, %v797
      %v799 = vpop.f32.mrb[0].mxu0
      %v800 = vpop.f32.mrb[0].mxu0
      %v801 = vpop.f32.mrb[0].mxu0
      %802 = vdwg.mxu0
      %v803 = vadd.f32 %v678, %v798
      %v804 = vld [vmem:[%s5] sm:$0x1]
      %v806 = vlaneseq
      %v807 = vshrl.u32 %v806, 7
      %v808 = vsub.s32 0, %v807
      %v809 = vrot.slane %v804, %v808
      %v811 = vadd.f32 %v745, %v809
      %v812 = vld [vmem:[%s6] sm:$0x1]
      %v814 = vlaneseq
      %v815 = vshrl.u32 %v814, 7
      %v816 = vsub.s32 0, %v815
      %v817 = vrot.slane %v812, %v816
      %v819 = vadd.f32 %v803, %v817
      %v820 = vxor.u32 %v819, 2147483648
      %v821 = vmul.f32 %v820, 1.442695
      %v822 = vpow.pop %v821
      %v823 = vadd.f32 %v822, 1.0
      %v824 = vrcp.pop %v823
      %v825 = vmul.f32 1.0, %v824
      %v826 = vmul.f32 %v811, %v825
      %v827 = vadd.f32 %v826, %v431
      %v828 = vmul.f32 %v827, 0.70710677
      %v830 = vrot.slane %v828, 7
      %v832 = vsel %vm439, 0.0, %v830
      %v833 = vsel %vm439, %v830, 0.0
      %s834 = scalar_lea.vmem %s3, 48
      %v835 = vld [vmem:[%s834] sm:$0xf]
      %v836 = vld [vmem:[%s834 + $0x4] sm:$0xf]
      %v837 = vld [vmem:[%s834 + $0x8] sm:$0xf]
      %v838 = vld [vmem:[%s834 + $0xc] sm:$0xf]
      %v839 = vpack.c.bf16 %v832, %v832
      %s840 = scalar_lea.vmem %s4, 48
      %v841 = vld [vmem:[%s840] sm:$0xf]
      %v842 = vld [vmem:[%s840 + $0x4] sm:$0xf]
      %v843 = vld [vmem:[%s840 + $0x8] sm:$0xf]
      %v844 = vld [vmem:[%s840 + $0xc] sm:$0xf]
      %s845 = scalar_lea.vmem %s3, 64
      %v846 = vld [vmem:[%s845] sm:$0xf]
      %v847 = vld [vmem:[%s845 + $0x4] sm:$0xf]
      %v848 = vld [vmem:[%s845 + $0x8] sm:$0xf]
      %v849 = vld [vmem:[%s845 + $0xc] sm:$0xf]
      %v850 = vpack.c.bf16 %v833, %v832
      %v852 = vshrl.u32 %v850, 16
      %v854 = vshll.u32 %v850, 16
      %v856 = vrot.slane %v854, 1
      %v857 = vor.u32 %v852, %v856
      %v862 = vunpack.c.l.b16 %v846
      %v863 = vunpack.c.l.b16 %v847
      %v864 = vunpack.c.l.b16 %v848
      %v865 = vunpack.c.l.b16 %v849
      %v866 = vpack.c.b16 %v863, %v862
      %v867 = vpack.c.b16 %v865, %v864
      %v871 = vsel %vm392, %v857, 0
      %873 = vmatprep.subr.bf16.mxu0 0
      %874 = vmatpush1.bf16.msra.mxu0 %v866
      %875 = vmatprep.subr.bf16.mxu0 0
      %876 = vmatpush1.bf16.msra.mxu0 %v867
      %877 = vmatprep.subr.bf16.mxu0 0
      %878 = vmatpush1.bf16.msra.mxu0 0
      %879 = vmatprep.subr.bf16.mxu0 0
      %880 = vmatpush1.bf16.msra.mxu0 0
      %881 = vmatprep.subr.bf16.mxu0 0
      %882 = vmatpush1.bf16.msra.mxu0 0
      %883 = vmatprep.subr.bf16.mxu0 0
      %884 = vmatpush1.bf16.msra.mxu0 0
      %885 = vmatprep.subr.bf16.mxu0 0
      %886 = vmatpush1.bf16.msra.mxu0 0
      %887 = vmatprep.subr.bf16.mxu0 0
      %888 = vmatpush1.bf16.msra.mxu0 0
      %889 = vmatprep.subr.bf16.mxu0 0
      %890 = vmatpush1.bf16.msra.mxu0 0
      %891 = vmatprep.subr.bf16.mxu0 0
      %892 = vmatpush1.bf16.msra.mxu0 0
      %893 = vmatprep.subr.bf16.mxu0 0
      %894 = vmatpush1.bf16.msra.mxu0 0
      %895 = vmatprep.subr.bf16.mxu0 0
      %896 = vmatpush1.bf16.msra.mxu0 0
      %897 = vmatprep.subr.bf16.mxu0 0
      %898 = vmatpush1.bf16.msra.mxu0 0
      %899 = vmatprep.subr.bf16.mxu0 0
      %900 = vmatpush1.bf16.msra.mxu0 0
      %901 = vmatprep.subr.bf16.mxu0 0
      %902 = vmatpush1.bf16.msra.mxu0 0
      %903 = vmatprep.subr.bf16.mxu0 0
      %904 = vmatpush1.bf16.msra.mxu0 0
      %905 = vmatprep.mubr.bf16.mxu0 0
      %906 = vmatmul.mubr.bf16.gmra.mrb[0].mxu0 %v871
      %v907 = vpop.f32.mrb[0].mxu0
      %v908 = vadd.f32 0.0, %v907
      %v909 = vpop.f32.mrb[0].mxu0
      %v910 = vpop.f32.mrb[0].mxu0
      %v911 = vpop.f32.mrb[0].mxu0
      %912 = vdwg.mxu0
      %v917 = vunpack.c.l.b16 %v835
      %v918 = vunpack.c.l.b16 %v836
      %v919 = vunpack.c.l.b16 %v837
      %v920 = vunpack.c.l.b16 %v838
      %v921 = vpack.c.b16 %v918, %v917
      %v922 = vpack.c.b16 %v920, %v919
      %v926 = vsel %vm392, %v839, 0
      %928 = vmatprep.subr.bf16.mxu0 0
      %929 = vmatpush1.bf16.msra.mxu0 %v921
      %930 = vmatprep.subr.bf16.mxu0 0
      %931 = vmatpush1.bf16.msra.mxu0 %v922
      %932 = vmatprep.subr.bf16.mxu0 0
      %933 = vmatpush1.bf16.msra.mxu0 0
      %934 = vmatprep.subr.bf16.mxu0 0
      %935 = vmatpush1.bf16.msra.mxu0 0
      %936 = vmatprep.subr.bf16.mxu0 0
      %937 = vmatpush1.bf16.msra.mxu0 0
      %938 = vmatprep.subr.bf16.mxu0 0
      %939 = vmatpush1.bf16.msra.mxu0 0
      %940 = vmatprep.subr.bf16.mxu0 0
      %941 = vmatpush1.bf16.msra.mxu0 0
      %942 = vmatprep.subr.bf16.mxu0 0
      %943 = vmatpush1.bf16.msra.mxu0 0
      %944 = vmatprep.subr.bf16.mxu0 0
      %945 = vmatpush1.bf16.msra.mxu0 0
      %946 = vmatprep.subr.bf16.mxu0 0
      %947 = vmatpush1.bf16.msra.mxu0 0
      %948 = vmatprep.subr.bf16.mxu0 0
      %949 = vmatpush1.bf16.msra.mxu0 0
      %950 = vmatprep.subr.bf16.mxu0 0
      %951 = vmatpush1.bf16.msra.mxu0 0
      %952 = vmatprep.subr.bf16.mxu0 0
      %953 = vmatpush1.bf16.msra.mxu0 0
      %954 = vmatprep.subr.bf16.mxu0 0
      %955 = vmatpush1.bf16.msra.mxu0 0
      %956 = vmatprep.subr.bf16.mxu0 0
      %957 = vmatpush1.bf16.msra.mxu0 0
      %958 = vmatprep.subr.bf16.mxu0 0
      %959 = vmatpush1.bf16.msra.mxu0 0
      %960 = vmatprep.mubr.bf16.mxu0 0
      %961 = vmatmul.mubr.bf16.gmra.mrb[0].mxu0 %v926
      %v962 = vpop.f32.mrb[0].mxu0
      %v963 = vadd.f32 %v908, %v962
      %v964 = vpop.f32.mrb[0].mxu0
      %v965 = vpop.f32.mrb[0].mxu0
      %v966 = vpop.f32.mrb[0].mxu0
      %967 = vdwg.mxu0
      %s968 = scalar_lea.vmem %s4, 64
      %v969 = vld [vmem:[%s968] sm:$0xf]
      %v970 = vld [vmem:[%s968 + $0x4] sm:$0xf]
      %v971 = vld [vmem:[%s968 + $0x8] sm:$0xf]
      %v972 = vld [vmem:[%s968 + $0xc] sm:$0xf]
      %v977 = vunpack.c.l.b16 %v969
      %v978 = vunpack.c.l.b16 %v970
      %v979 = vunpack.c.l.b16 %v971
      %v980 = vunpack.c.l.b16 %v972
      %v981 = vpack.c.b16 %v978, %v977
      %v982 = vpack.c.b16 %v980, %v979
      %985 = vmatprep.subr.bf16.mxu0 0
      %986 = vmatpush1.bf16.msra.mxu0 %v981
      %987 = vmatprep.subr.bf16.mxu0 0
      %988 = vmatpush1.bf16.msra.mxu0 %v982
      %989 = vmatprep.subr.bf16.mxu0 0
      %990 = vmatpush1.bf16.msra.mxu0 0
      %991 = vmatprep.subr.bf16.mxu0 0
      %992 = vmatpush1.bf16.msra.mxu0 0
      %993 = vmatprep.subr.bf16.mxu0 0
      %994 = vmatpush1.bf16.msra.mxu0 0
      %995 = vmatprep.subr.bf16.mxu0 0
      %996 = vmatpush1.bf16.msra.mxu0 0
      %997 = vmatprep.subr.bf16.mxu0 0
      %998 = vmatpush1.bf16.msra.mxu0 0
      %999 = vmatprep.subr.bf16.mxu0 0
      %1000 = vmatpush1.bf16.msra.mxu0 0
      %1001 = vmatprep.subr.bf16.mxu0 0
      %1002 = vmatpush1.bf16.msra.mxu0 0
      %1003 = vmatprep.subr.bf16.mxu0 0
      %1004 = vmatpush1.bf16.msra.mxu0 0
      %1005 = vmatprep.subr.bf16.mxu0 0
      %1006 = vmatpush1.bf16.msra.mxu0 0
      %1007 = vmatprep.subr.bf16.mxu0 0
      %1008 = vmatpush1.bf16.msra.mxu0 0
      %1009 = vmatprep.subr.bf16.mxu0 0
      %1010 = vmatpush1.bf16.msra.mxu0 0
      %1011 = vmatprep.subr.bf16.mxu0 0
      %1012 = vmatpush1.bf16.msra.mxu0 0
      %1013 = vmatprep.subr.bf16.mxu0 0
      %1014 = vmatpush1.bf16.msra.mxu0 0
      %1015 = vmatprep.subr.bf16.mxu0 0
      %1016 = vmatpush1.bf16.msra.mxu0 0
      %1017 = vmatprep.mubr.bf16.mxu0 0
      %1018 = vmatmul.mubr.bf16.gmra.mrb[0].mxu0 %v871
      %v1019 = vpop.f32.mrb[0].mxu0
      %v1020 = vadd.f32 0.0, %v1019
      %v1021 = vpop.f32.mrb[0].mxu0
      %v1022 = vpop.f32.mrb[0].mxu0
      %v1023 = vpop.f32.mrb[0].mxu0
      %1024 = vdwg.mxu0
      %v1029 = vunpack.c.l.b16 %v841
      %v1030 = vunpack.c.l.b16 %v842
      %v1031 = vunpack.c.l.b16 %v843
      %v1032 = vunpack.c.l.b16 %v844
      %v1033 = vpack.c.b16 %v1030, %v1029
      %v1034 = vpack.c.b16 %v1032, %v1031
      %1037 = vmatprep.subr.bf16.mxu0 0
      %1038 = vmatpush1.bf16.msra.mxu0 %v1033
      %1039 = vmatprep.subr.bf16.mxu0 0
      %1040 = vmatpush1.bf16.msra.mxu0 %v1034
      %1041 = vmatprep.subr.bf16.mxu0 0
      %1042 = vmatpush1.bf16.msra.mxu0 0
      %1043 = vmatprep.subr.bf16.mxu0 0
      %1044 = vmatpush1.bf16.msra.mxu0 0
      %1045 = vmatprep.subr.bf16.mxu0 0
      %1046 = vmatpush1.bf16.msra.mxu0 0
      %1047 = vmatprep.subr.bf16.mxu0 0
      %1048 = vmatpush1.bf16.msra.mxu0 0
      %1049 = vmatprep.subr.bf16.mxu0 0
      %1050 = vmatpush1.bf16.msra.mxu0 0
      %1051 = vmatprep.subr.bf16.mxu0 0
      %1052 = vmatpush1.bf16.msra.mxu0 0
      %1053 = vmatprep.subr.bf16.mxu0 0
      %1054 = vmatpush1.bf16.msra.mxu0 0
      %1055 = vmatprep.subr.bf16.mxu0 0
      %1056 = vmatpush1.bf16.msra.mxu0 0
      %1057 = vmatprep.subr.bf16.mxu0 0
      %1058 = vmatpush1.bf16.msra.mxu0 0
      %1059 = vmatprep.subr.bf16.mxu0 0
      %1060 = vmatpush1.bf16.msra.mxu0 0
      %1061 = vmatprep.subr.bf16.mxu0 0
      %1062 = vmatpush1.bf16.msra.mxu0 0
      %1063 = vmatprep.subr.bf16.mxu0 0
      %1064 = vmatpush1.bf16.msra.mxu0 0
      %1065 = vmatprep.subr.bf16.mxu0 0
      %1066 = vmatpush1.bf16.msra.mxu0 0
      %1067 = vmatprep.subr.bf16.mxu0 0
      %1068 = vmatpush1.bf16.msra.mxu0 0
      %1069 = vmatprep.mubr.bf16.mxu0 0
      %1070 = vmatmul.mubr.bf16.gmra.mrb[0].mxu0 %v926
      %v1071 = vpop.f32.mrb[0].mxu0
      %v1072 = vadd.f32 %v1020, %v1071
      %v1073 = vpop.f32.mrb[0].mxu0
      %v1074 = vpop.f32.mrb[0].mxu0
      %v1075 = vpop.f32.mrb[0].mxu0
      %1076 = vdwg.mxu0
      %s1077 = scalar_lea.vmem %s3, 80
      %v1078 = vld [vmem:[%s1077] sm:$0xf]
      %v1079 = vld [vmem:[%s1077 + $0x4] sm:$0xf]
      %v1080 = vld [vmem:[%s1077 + $0x8] sm:$0xf]
      %v1081 = vld [vmem:[%s1077 + $0xc] sm:$0xf]
      %v1083 = vrot.slane %v850, 1
      %v1088 = vunpack.c.l.b16 %v1078
      %v1089 = vunpack.c.l.b16 %v1079
      %v1090 = vunpack.c.l.b16 %v1080
      %v1091 = vunpack.c.l.b16 %v1081
      %v1092 = vpack.c.b16 %v1089, %v1088
      %v1093 = vpack.c.b16 %v1091, %v1090
      %v1097 = vsel %vm392, %v1083, 0
      %1099 = vmatprep.subr.bf16.mxu0 0
      %1100 = vmatpush1.bf16.msra.mxu0 %v1092
      %1101 = vmatprep.subr.bf16.mxu0 0
      %1102 = vmatpush1.bf16.msra.mxu0 %v1093
      %1103 = vmatprep.subr.bf16.mxu0 0
      %1104 = vmatpush1.bf16.msra.mxu0 0
      %1105 = vmatprep.subr.bf16.mxu0 0
      %1106 = vmatpush1.bf16.msra.mxu0 0
      %1107 = vmatprep.subr.bf16.mxu0 0
      %1108 = vmatpush1.bf16.msra.mxu0 0
      %1109 = vmatprep.subr.bf16.mxu0 0
      %1110 = vmatpush1.bf16.msra.mxu0 0
      %1111 = vmatprep.subr.bf16.mxu0 0
      %1112 = vmatpush1.bf16.msra.mxu0 0
      %1113 = vmatprep.subr.bf16.mxu0 0
      %1114 = vmatpush1.bf16.msra.mxu0 0
      %1115 = vmatprep.subr.bf16.mxu0 0
      %1116 = vmatpush1.bf16.msra.mxu0 0
      %1117 = vmatprep.subr.bf16.mxu0 0
      %1118 = vmatpush1.bf16.msra.mxu0 0
      %1119 = vmatprep.subr.bf16.mxu0 0
      %1120 = vmatpush1.bf16.msra.mxu0 0
      %1121 = vmatprep.subr.bf16.mxu0 0
      %1122 = vmatpush1.bf16.msra.mxu0 0
      %1123 = vmatprep.subr.bf16.mxu0 0
      %1124 = vmatpush1.bf16.msra.mxu0 0
      %1125 = vmatprep.subr.bf16.mxu0 0
      %1126 = vmatpush1.bf16.msra.mxu0 0
      %1127 = vmatprep.subr.bf16.mxu0 0
      %1128 = vmatpush1.bf16.msra.mxu0 0
      %1129 = vmatprep.subr.bf16.mxu0 0
      %1130 = vmatpush1.bf16.msra.mxu0 0
      %1131 = vmatprep.mubr.bf16.mxu0 0
      %1132 = vmatmul.mubr.bf16.gmra.mrb[0].mxu0 %v1097
      %v1133 = vpop.f32.mrb[0].mxu0
      %v1134 = vadd.f32 0.0, %v1133
      %v1135 = vpop.f32.mrb[0].mxu0
      %v1136 = vpop.f32.mrb[0].mxu0
      %v1137 = vpop.f32.mrb[0].mxu0
      %1138 = vdwg.mxu0
      %v1139 = vadd.f32 %v963, %v1134
      %s1140 = scalar_lea.vmem %s4, 80
      %v1141 = vld [vmem:[%s1140] sm:$0xf]
      %v1142 = vld [vmem:[%s1140 + $0x4] sm:$0xf]
      %v1143 = vld [vmem:[%s1140 + $0x8] sm:$0xf]
      %v1144 = vld [vmem:[%s1140 + $0xc] sm:$0xf]
      %v1149 = vunpack.c.l.b16 %v1141
      %v1150 = vunpack.c.l.b16 %v1142
      %v1151 = vunpack.c.l.b16 %v1143
      %v1152 = vunpack.c.l.b16 %v1144
      %v1153 = vpack.c.b16 %v1150, %v1149
      %v1154 = vpack.c.b16 %v1152, %v1151
      %1157 = vmatprep.subr.bf16.mxu0 0
      %1158 = vmatpush1.bf16.msra.mxu0 %v1153
      %1159 = vmatprep.subr.bf16.mxu0 0
      %1160 = vmatpush1.bf16.msra.mxu0 %v1154
      %1161 = vmatprep.subr.bf16.mxu0 0
      %1162 = vmatpush1.bf16.msra.mxu0 0
      %1163 = vmatprep.subr.bf16.mxu0 0
      %1164 = vmatpush1.bf16.msra.mxu0 0
      %1165 = vmatprep.subr.bf16.mxu0 0
      %1166 = vmatpush1.bf16.msra.mxu0 0
      %1167 = vmatprep.subr.bf16.mxu0 0
      %1168 = vmatpush1.bf16.msra.mxu0 0
      %1169 = vmatprep.subr.bf16.mxu0 0
      %1170 = vmatpush1.bf16.msra.mxu0 0
      %1171 = vmatprep.subr.bf16.mxu0 0
      %1172 = vmatpush1.bf16.msra.mxu0 0
      %1173 = vmatprep.subr.bf16.mxu0 0
      %1174 = vmatpush1.bf16.msra.mxu0 0
      %1175 = vmatprep.subr.bf16.mxu0 0
      %1176 = vmatpush1.bf16.msra.mxu0 0
      %1177 = vmatprep.subr.bf16.mxu0 0
      %1178 = vmatpush1.bf16.msra.mxu0 0
      %1179 = vmatprep.subr.bf16.mxu0 0
      %1180 = vmatpush1.bf16.msra.mxu0 0
      %1181 = vmatprep.subr.bf16.mxu0 0
      %1182 = vmatpush1.bf16.msra.mxu0 0
      %1183 = vmatprep.subr.bf16.mxu0 0
      %1184 = vmatpush1.bf16.msra.mxu0 0
      %1185 = vmatprep.subr.bf16.mxu0 0
      %1186 = vmatpush1.bf16.msra.mxu0 0
      %1187 = vmatprep.subr.bf16.mxu0 0
      %1188 = vmatpush1.bf16.msra.mxu0 0
      %1189 = vmatprep.mubr.bf16.mxu0 0
      %1190 = vmatmul.mubr.bf16.gmra.mrb[0].mxu0 %v1097
      %v1191 = vpop.f32.mrb[0].mxu0
      %v1192 = vadd.f32 0.0, %v1191
      %v1193 = vpop.f32.mrb[0].mxu0
      %v1194 = vpop.f32.mrb[0].mxu0
      %v1195 = vpop.f32.mrb[0].mxu0
      %1196 = vdwg.mxu0
      %v1197 = vadd.f32 %v1072, %v1192
      %s1198 = scalar_lea.vmem %s5, 1
      %v1199 = vld [vmem:[%s1198] sm:$0x1]
      %v1201 = vlaneseq
      %v1202 = vshrl.u32 %v1201, 7
      %v1203 = vsub.s32 0, %v1202
      %v1204 = vrot.slane %v1199, %v1203
      %v1206 = vadd.f32 %v1139, %v1204
      %s1207 = scalar_lea.vmem %s6, 1
      %v1208 = vld [vmem:[%s1207] sm:$0x1]
      %v1210 = vlaneseq
      %v1211 = vshrl.u32 %v1210, 7
      %v1212 = vsub.s32 0, %v1211
      %v1213 = vrot.slane %v1208, %v1212
      %v1215 = vadd.f32 %v1197, %v1213
      %v1216 = vxor.u32 %v1215, 2147483648
      %v1217 = vmul.f32 %v1216, 1.442695
      %v1218 = vpow.pop %v1217
      %v1219 = vadd.f32 %v1218, 1.0
      %v1220 = vrcp.pop %v1219
      %v1221 = vmul.f32 1.0, %v1220
      %v1222 = vmul.f32 %v1206, %v1221
      %v1223 = vadd.f32 %v1222, %v828
      %v1224 = vmul.f32 %v1223, 0.70710677
      %v1225 = vld [vmem:[%s7] sm:$0xf]
      %v1226 = vld [vmem:[%s7 + $0x4] sm:$0xf]
      %v1227 = vld [vmem:[%s7 + $0x8] sm:$0xf]
      %v1228 = vld [vmem:[%s7 + $0xc] sm:$0xf]
      %v1229 = vpack.c.bf16 %v1224, %v1224
      %v1230 = vld [vmem:[%s8] sm:$0x1]
      %v1232 = vlaneseq
      %v1233 = vshrl.u32 %v1232, 7
      %v1234 = vsub.s32 0, %v1233
      %v1235 = vrot.slane %v1230, %v1234
      %v1241 = vunpack.c.l.b16 %v1225
      %v1242 = vunpack.c.l.b16 %v1226
      %v1243 = vunpack.c.l.b16 %v1227
      %v1244 = vunpack.c.l.b16 %v1228
      %v1245 = vpack.c.b16 %v1242, %v1241
      %v1246 = vpack.c.b16 %v1244, %v1243
      %v1250 = vsel %vm392, %v1229, 0
      %1252 = vmatprep.subr.bf16.mxu0 0
      %1253 = vmatpush1.bf16.msra.mxu0 %v1245
      %1254 = vmatprep.subr.bf16.mxu0 0
      %1255 = vmatpush1.bf16.msra.mxu0 %v1246
      %1256 = vmatprep.subr.bf16.mxu0 0
      %1257 = vmatpush1.bf16.msra.mxu0 0
      %1258 = vmatprep.subr.bf16.mxu0 0
      %1259 = vmatpush1.bf16.msra.mxu0 0
      %1260 = vmatprep.subr.bf16.mxu0 0
      %1261 = vmatpush1.bf16.msra.mxu0 0
      %1262 = vmatprep.subr.bf16.mxu0 0
      %1263 = vmatpush1.bf16.msra.mxu0 0
      %1264 = vmatprep.subr.bf16.mxu0 0
      %1265 = vmatpush1.bf16.msra.mxu0 0
      %1266 = vmatprep.subr.bf16.mxu0 0
      %1267 = vmatpush1.bf16.msra.mxu0 0
      %1268 = vmatprep.subr.bf16.mxu0 0
      %1269 = vmatpush1.bf16.msra.mxu0 0
      %1270 = vmatprep.subr.bf16.mxu0 0
      %1271 = vmatpush1.bf16.msra.mxu0 0
      %1272 = vmatprep.subr.bf16.mxu0 0
      %1273 = vmatpush1.bf16.msra.mxu0 0
      %1274 = vmatprep.subr.bf16.mxu0 0
      %1275 = vmatpush1.bf16.msra.mxu0 0
      %1276 = vmatprep.subr.bf16.mxu0 0
      %1277 = vmatpush1.bf16.msra.mxu0 0
      %1278 = vmatprep.subr.bf16.mxu0 0
      %1279 = vmatpush1.bf16.msra.mxu0 0
      %1280 = vmatprep.subr.bf16.mxu0 0
      %1281 = vmatpush1.bf16.msra.mxu0 0
      %1282 = vmatprep.subr.bf16.mxu0 0
      %1283 = vmatpush1.bf16.msra.mxu0 0
      %1284 = vmatprep.mubr.bf16.mxu0 0
      %1285 = vmatmul.mubr.bf16.gmra.mrb[0].mxu0 %v1250
      %v1286 = vpop.f32.mrb[0].mxu0
      %v1287 = vadd.f32 %v1235, %v1286
      %v1288 = vpop.f32.mrb[0].mxu0
      %v1289 = vpop.f32.mrb[0].mxu0
      %v1290 = vpop.f32.mrb[0].mxu0
      %1291 = vdwg.mxu0
      %v1292 = vpack.c.bf16 %v1287, %v1287
      %vm1293 = vcmask 257024
      %1294 = vst.msk [vmem:[%s361] sm:$0xf] %vm1293, %v1292
      %v1295 = vadd.f32 %v1287, %v367
      %v1296 = vmul.f32 %v1295, 0.70710677
      %v1297 = vpack.c.bf16 %v1296, %v1296
      %1298 = vst.msk [vmem:[%s365] sm:$0xf] %vm1293, %v1297
      %p1299 = scmp.lt.s32.totalorder %s22, 1
      %s1300 = scalar_select %p1299, %s22, 1
      %s1301 = smul.addr %s1300, 4
      %s1302 = scalar_lea.vmem %s9, %s1301
      %p1303 = scmp.lt.s32.totalorder %s22, 1
      %s1304 = scalar_select %p1303, %s22, 1
      %s1305 = smul.addr %s1304, 4
      %s1306 = scalar_lea.vmem %s10, %s1305
      // Predicated region
      $region57: #{_teacher_forced_forward.2} parent=55 // pred_check
        %p1307 = pneg %p234
      $region58: #{_teacher_forced_forward.2} parent=55 // pred_check_branch
        %1309 = sbr.rel (%p1307) target = $region60
      $region59: #{_teacher_forced_forward.2} parent=55 // pred_region
        _
      $region60: #{_teacher_forced_forward.2} parent=55 // pred_fallthru
        _
      // Predicated region
      $region61: #{_teacher_forced_forward.2} parent=55 // pred_check
        %p1310 = pneg %p260
      $region62: #{_teacher_forced_forward.2} parent=55 // pred_check_branch
        %1312 = sbr.rel (%p1310) target = $region64
      $region63: #{_teacher_forced_forward.2} parent=55 // pred_region
        _
      $region64: #{_teacher_forced_forward.2} parent=55 // pred_fallthru
        _
    $region56: #{_teacher_forced_forward.2} parent=5 // pred_fallthru
      _
    %p1313 = scmp.le.s32.totalorder 2, %s17
    // Predicated region
    $region65: #{_teacher_forced_forward.2} parent=5 // pred_check
      %p1314 = pneg %p1313
    $region66: #{_teacher_forced_forward.2} parent=5 // pred_check_branch
      %1316 = sbr.rel (%p1314) target = $region68
    $region67: #{_teacher_forced_forward.2} parent=5 // pred_region
      %s1317 = ssub.s32 %s17, 2
      // Predicated region
      $region69: #{_teacher_forced_forward.2} parent=67 // pred_check
        %p1318 = pneg %p240
      $region70: #{_teacher_forced_forward.2} parent=67 // pred_check_branch
        %1320 = sbr.rel (%p1318) target = $region72
      $region71: #{_teacher_forced_forward.2} parent=67 // pred_region
        %p1321 = scmp.lt.s32.totalorder %s23, 1
        %s1322 = scalar_select %p1321, %s23, 1
        %s1323 = smul.addr %s1322, 4
        %s1324 = scalar_lea.vmem %s9, %s1323
      $region72: #{_teacher_forced_forward.2} parent=67 // pred_fallthru
        _
      // Predicated region
      $region73: #{_teacher_forced_forward.2} parent=67 // pred_check
        %p1325 = pneg %p266
      $region74: #{_teacher_forced_forward.2} parent=67 // pred_check_branch
        %1327 = sbr.rel (%p1325) target = $region76
      $region75: #{_teacher_forced_forward.2} parent=67 // pred_region
        %p1328 = scmp.lt.s32.totalorder %s23, 1
        %s1329 = scalar_select %p1328, %s23, 1
        %s1330 = smul.addr %s1329, 4
        %s1331 = scalar_lea.vmem %s10, %s1330
      $region76: #{_teacher_forced_forward.2} parent=67 // pred_fallthru
        _
    $region68: #{_teacher_forced_forward.2} parent=5 // pred_fallthru
      _
  $region6: #{_teacher_forced_forward.2} parent=0 // loop_footer
    %s21 = sadd.s32 1, %s17
  $region7: #{_teacher_forced_forward.2} parent=0 // loop_footer_branch
    %16 = sbr.rel target = $region3
  $region8: #{_teacher_forced_forward.2} parent=0 // loop_exit
    _

// kernel: _teacher_forced_forward.3
$region0: #{_teacher_forced_forward.3}
  #allocation0 [shape = 'u32[]', space=smem, size = 0x4, offset = 0x4, fixed_abs, tag = 'smem constant byte address 0x4 - core index']
  #allocation1 [shape = 'u32[144,128]{1,0:T(1,128)}', space=vmem, size = 0x12000, scoped, tag = 'internal scratch']
  %s0 = inlined_call_operand.vmem [shape: f32[2,7,32], index: 0, kind: input, shape index: {}]
  %s1 = inlined_call_operand.vmem [shape: bf16[2,128,32], index: 1, kind: input, shape index: {}]
  %s2 = inlined_call_operand.vmem [shape: bf16[2,128,32], index: 2, kind: input, shape index: {}]
  %s3 = inlined_call_operand.vmem [shape: f32[2,1,128], index: 3, kind: input, shape index: {}]
  %s4 = inlined_call_operand.vmem [shape: bf16[32,32], index: 4, kind: input, shape index: {}]
  %s5 = inlined_call_operand.vmem [shape: f32[1,32], index: 5, kind: input, shape index: {}]
  %s6 = inlined_call_operand.vmem [shape: bf16[2,3,32,32], index: 6, kind: input, shape index: {}]
  %s7 = inlined_call_operand.vmem [shape: bf16[2,3,32,32], index: 7, kind: input, shape index: {}]
  %s8 = inlined_call_operand.vmem [shape: f32[2,1,32], index: 8, kind: input, shape index: {}]
  %s9 = inlined_call_operand.vmem [shape: f32[2,1,32], index: 9, kind: input, shape index: {}]
  %s10 = inlined_call_operand.vmem [shape: bf16[32,32], index: 10, kind: input, shape index: {}]
  %s11 = inlined_call_operand.vmem [shape: f32[1,32], index: 11, kind: input, shape index: {}]
  %s12 = inlined_call_operand.vmem [shape: bf16[32,32], index: 12, kind: input, shape index: {}]
  %s13 = inlined_call_operand.vmem [shape: f32[1,32], index: 13, kind: input, shape index: {}]
  %s14 = inlined_call_operand.vmem [shape: bf16[32,32], index: 14, kind: input, shape index: {}]
  %s15 = inlined_call_operand.vmem [shape: f32[1,32], index: 15, kind: input, shape index: {}]
  %s16 = inlined_call_operand.vmem [shape: bf16[32,128], index: 16, kind: input, shape index: {}]
  %s17 = inlined_call_operand.vmem [shape: f32[1,128], index: 17, kind: input, shape index: {}]
  %s18 = inlined_call_operand.vmem [shape: f32[2,7,128], index: 18, kind: output, shape index: {0}]
  %s19 = inlined_call_operand.vmem [shape: f32[2,7,128], index: 19, kind: output, shape index: {1}]
  %20 = xla_tuple %s18, %s19
  %s21 = sld [smem:[#allocation0]]
  $region113: #{_teacher_forced_forward.3} parent=0
    _
  %s23 = ssub.s32 1, %s21
  %s24 = scalar_select 0, %s23, %s21
  loop: start=0, step=1, limit=4
  $region2: #{_teacher_forced_forward.3} parent=0 // loop_pre_header
    _
  $region3: #{_teacher_forced_forward.3} parent=0 // loop_header
    %s26 = sphi 0, %s30
    %p27 = scmp.ge.s32.totalorder %s26, 4
    %s36 = sphi 0, %s38
    %s39 = sphi 0, %s36
    %s40 = sphi 0, %s39
    %s56 = sphi 0, %s40
    %s62 = sphi 0, %s64
    %s65 = sphi 0, %s62
    %s66 = sphi 0, %s65
    %s82 = sphi 0, %s66
    %s88 = sphi 0, %s90
    %s91 = sphi 0, %s88
    %s92 = sphi 0, %s91
    %s108 = sphi 0, %s92
    %s114 = sphi 0, %s116
    %s117 = sphi 0, %s114
    %s118 = sphi 0, %s117
    %s134 = sphi 0, %s118
    %s138 = sphi 0, %s138
    %s140 = sphi 0, %s138
    %s141 = sphi 0, %s140
    %s155 = sphi 0, %s141
    %s159 = sphi 0, %s159
    %s161 = sphi 0, %s159
    %s162 = sphi 0, %s161
    %s176 = sphi 0, %s162
    %s180 = sphi 0, %s180
    %s182 = sphi 0, %s180
    %s183 = sphi 0, %s182
    %s197 = sphi 0, %s183
    %s201 = sphi 0, %s201
    %s203 = sphi 0, %s201
    %s204 = sphi 0, %s203
    %s218 = sphi 0, %s204
    %s222 = sphi 0, %s222
    %s224 = sphi 0, %s222
    %s225 = sphi 0, %s224
    %s239 = sphi 0, %s225
    %s243 = sphi 0, %s243
    %s245 = sphi 0, %s243
    %s246 = sphi 0, %s245
    %s260 = sphi 0, %s246
    %s264 = sphi 0, %s264
    %s266 = sphi 0, %s264
    %s267 = sphi 0, %s266
    %s281 = sphi 0, %s267
    %s285 = sphi 0, %s285
    %s287 = sphi 0, %s285
    %s288 = sphi 0, %s287
    %s302 = sphi 0, %s288
    %s306 = sphi 0, %s306
    %s308 = sphi 0, %s306
    %s309 = sphi 0, %s308
    %s323 = sphi 0, %s309
    %s327 = sphi 0, %s327
    %s329 = sphi 0, %s327
    %s330 = sphi 0, %s329
    %s344 = sphi 0, %s330
    %s348 = sphi 0, %s348
    %s350 = sphi 0, %s348
    %s351 = sphi 0, %s350
    %s365 = sphi 0, %s351
    %s369 = sphi 0, %s369
    %s371 = sphi 0, %s369
    %s372 = sphi 0, %s371
    %s386 = sphi 0, %s372
    %s390 = sphi 0, %s390
    %s392 = sphi 0, %s390
    %s393 = sphi 0, %s392
    %s407 = sphi 0, %s393
    %s411 = sphi 0, %s411
    %s413 = sphi 0, %s411
    %s414 = sphi 0, %s413
    %s428 = sphi 0, %s414
    %s434 = sphi 0, %s436
    %s437 = sphi 0, %s434
    %s438 = sphi 0, %s437
    %s454 = sphi 0, %s438
    %s460 = sphi 0, %s462
    %s463 = sphi 0, %s460
    %s464 = sphi 0, %s463
    %s480 = sphi 0, %s464
  $region4: #{_teacher_forced_forward.3} parent=0 // loop_header_branch
    %29 = sbr.rel (%p27) target = $region8
  $region5: #{_teacher_forced_forward.3} parent=0 // loop_body
    %s31 = ssub.s32 %s26, 1
    %s32 = ssub.s32 %s26, 2
    %s33 = sadd.s32 %s26, 1
    %s34 = ssub.s32 %s26, %s33
    %p35 = scmp.eq.s32.totalorder %s34, 0
    %s37 = sadd.s32 %s36, 1
    %s38 = scalar_select %p35, %s36, %s37
    %p41 = pneg %p35
    %p42 = scmp.eq.s32.totalorder %s26, 1
    %p43 = por %p41, %p42
    %p44 = scmp.ne.s32.totalorder %s36, %s39
    %p45 = scmp.eq.s32.totalorder %s26, 0
    %p46 = por %p44, %p45
    %p47 = scmp.ne.s32.totalorder %s36, %s39
    %p48 = scmp.eq.s32.totalorder %s31, 1
    %p49 = por %p47, %p48
    %p50 = scmp.ne.s32.totalorder %s39, %s40
    %p51 = scmp.eq.s32.totalorder %s31, 0
    %p52 = por %p50, %p51
    %p53 = scmp.ne.s32.totalorder %s39, %s40
    %p54 = scmp.eq.s32.totalorder %s32, 1
    %p55 = por %p53, %p54
    %p57 = scmp.ne.s32.totalorder %s40, %s56
    %p58 = scmp.eq.s32.totalorder %s32, 0
    %p59 = por %p57, %p58
    %s60 = ssub.s32 %s26, %s33
    %p61 = scmp.eq.s32.totalorder %s60, 0
    %s63 = sadd.s32 %s62, 1
    %s64 = scalar_select %p61, %s62, %s63
    %p67 = pneg %p61
    %p68 = scmp.eq.s32.totalorder %s26, 1
    %p69 = por %p67, %p68
    %p70 = scmp.ne.s32.totalorder %s62, %s65
    %p71 = scmp.eq.s32.totalorder %s26, 0
    %p72 = por %p70, %p71
    %p73 = scmp.ne.s32.totalorder %s62, %s65
    %p74 = scmp.eq.s32.totalorder %s31, 1
    %p75 = por %p73, %p74
    %p76 = scmp.ne.s32.totalorder %s65, %s66
    %p77 = scmp.eq.s32.totalorder %s31, 0
    %p78 = por %p76, %p77
    %p79 = scmp.ne.s32.totalorder %s65, %s66
    %p80 = scmp.eq.s32.totalorder %s32, 1
    %p81 = por %p79, %p80
    %p83 = scmp.ne.s32.totalorder %s66, %s82
    %p84 = scmp.eq.s32.totalorder %s32, 0
    %p85 = por %p83, %p84
    %s86 = ssub.s32 %s26, %s33
    %p87 = scmp.eq.s32.totalorder %s86, 0
    %s89 = sadd.s32 %s88, 1
    %s90 = scalar_select %p87, %s88, %s89
    %p93 = pneg %p87
    %p94 = scmp.eq.s32.totalorder %s26, 1
    %p95 = por %p93, %p94
    %p96 = scmp.ne.s32.totalorder %s88, %s91
    %p97 = scmp.eq.s32.totalorder %s26, 0
    %p98 = por %p96, %p97
    %p99 = scmp.ne.s32.totalorder %s88, %s91
    %p100 = scmp.eq.s32.totalorder %s31, 1
    %p101 = por %p99, %p100
    %p102 = scmp.ne.s32.totalorder %s91, %s92
    %p103 = scmp.eq.s32.totalorder %s31, 0
    %p104 = por %p102, %p103
    %p105 = scmp.ne.s32.totalorder %s91, %s92
    %p106 = scmp.eq.s32.totalorder %s32, 1
    %p107 = por %p105, %p106
    %p109 = scmp.ne.s32.totalorder %s92, %s108
    %p110 = scmp.eq.s32.totalorder %s32, 0
    %p111 = por %p109, %p110
    %s112 = ssub.s32 %s26, %s33
    %p113 = scmp.eq.s32.totalorder %s112, 0
    %s115 = sadd.s32 %s114, 1
    %s116 = scalar_select %p113, %s114, %s115
    %p119 = pneg %p113
    %p120 = scmp.eq.s32.totalorder %s26, 1
    %p121 = por %p119, %p120
    %p122 = scmp.ne.s32.totalorder %s114, %s117
    %p123 = scmp.eq.s32.totalorder %s26, 0
    %p124 = por %p122, %p123
    %p125 = scmp.ne.s32.totalorder %s114, %s117
    %p126 = scmp.eq.s32.totalorder %s31, 1
    %p127 = por %p125, %p126
    %p128 = scmp.ne.s32.totalorder %s117, %s118
    %p129 = scmp.eq.s32.totalorder %s31, 0
    %p130 = por %p128, %p129
    %p131 = scmp.ne.s32.totalorder %s117, %s118
    %p132 = scmp.eq.s32.totalorder %s32, 1
    %p133 = por %p131, %p132
    %p135 = scmp.ne.s32.totalorder %s118, %s134
    %p136 = scmp.eq.s32.totalorder %s32, 0
    %p137 = por %p135, %p136
    %s139 = sadd.s32 %s138, 1
    %p142 = scmp.eq.s32.totalorder %s26, 1
    %p143 = scmp.ne.s32.totalorder %s138, %s140
    %p144 = scmp.eq.s32.totalorder %s26, 0
    %p145 = por %p143, %p144
    %p146 = scmp.ne.s32.totalorder %s138, %s140
    %p147 = scmp.eq.s32.totalorder %s31, 1
    %p148 = por %p146, %p147
    %p149 = scmp.ne.s32.totalorder %s140, %s141
    %p150 = scmp.eq.s32.totalorder %s31, 0
    %p151 = por %p149, %p150
    %p152 = scmp.ne.s32.totalorder %s140, %s141
    %p153 = scmp.eq.s32.totalorder %s32, 1
    %p154 = por %p152, %p153
    %p156 = scmp.ne.s32.totalorder %s141, %s155
    %p157 = scmp.eq.s32.totalorder %s32, 0
    %p158 = por %p156, %p157
    %s160 = sadd.s32 %s159, 1
    %p163 = scmp.eq.s32.totalorder %s26, 1
    %p164 = scmp.ne.s32.totalorder %s159, %s161
    %p165 = scmp.eq.s32.totalorder %s26, 0
    %p166 = por %p164, %p165
    %p167 = scmp.ne.s32.totalorder %s159, %s161
    %p168 = scmp.eq.s32.totalorder %s31, 1
    %p169 = por %p167, %p168
    %p170 = scmp.ne.s32.totalorder %s161, %s162
    %p171 = scmp.eq.s32.totalorder %s31, 0
    %p172 = por %p170, %p171
    %p173 = scmp.ne.s32.totalorder %s161, %s162
    %p174 = scmp.eq.s32.totalorder %s32, 1
    %p175 = por %p173, %p174
    %p177 = scmp.ne.s32.totalorder %s162, %s176
    %p178 = scmp.eq.s32.totalorder %s32, 0
    %p179 = por %p177, %p178
    %s181 = sadd.s32 %s180, 1
    %p184 = scmp.eq.s32.totalorder %s26, 1
    %p185 = scmp.ne.s32.totalorder %s180, %s182
    %p186 = scmp.eq.s32.totalorder %s26, 0
    %p187 = por %p185, %p186
    %p188 = scmp.ne.s32.totalorder %s180, %s182
    %p189 = scmp.eq.s32.totalorder %s31, 1
    %p190 = por %p188, %p189
    %p191 = scmp.ne.s32.totalorder %s182, %s183
    %p192 = scmp.eq.s32.totalorder %s31, 0
    %p193 = por %p191, %p192
    %p194 = scmp.ne.s32.totalorder %s182, %s183
    %p195 = scmp.eq.s32.totalorder %s32, 1
    %p196 = por %p194, %p195
    %p198 = scmp.ne.s32.totalorder %s183, %s197
    %p199 = scmp.eq.s32.totalorder %s32, 0
    %p200 = por %p198, %p199
    %s202 = sadd.s32 %s201, 1
    %p205 = scmp.eq.s32.totalorder %s26, 1
    %p206 = scmp.ne.s32.totalorder %s201, %s203
    %p207 = scmp.eq.s32.totalorder %s26, 0
    %p208 = por %p206, %p207
    %p209 = scmp.ne.s32.totalorder %s201, %s203
    %p210 = scmp.eq.s32.totalorder %s31, 1
    %p211 = por %p209, %p210
    %p212 = scmp.ne.s32.totalorder %s203, %s204
    %p213 = scmp.eq.s32.totalorder %s31, 0
    %p214 = por %p212, %p213
    %p215 = scmp.ne.s32.totalorder %s203, %s204
    %p216 = scmp.eq.s32.totalorder %s32, 1
    %p217 = por %p215, %p216
    %p219 = scmp.ne.s32.totalorder %s204, %s218
    %p220 = scmp.eq.s32.totalorder %s32, 0
    %p221 = por %p219, %p220
    %s223 = sadd.s32 %s222, 1
    %p226 = scmp.eq.s32.totalorder %s26, 1
    %p227 = scmp.ne.s32.totalorder %s222, %s224
    %p228 = scmp.eq.s32.totalorder %s26, 0
    %p229 = por %p227, %p228
    %p230 = scmp.ne.s32.totalorder %s222, %s224
    %p231 = scmp.eq.s32.totalorder %s31, 1
    %p232 = por %p230, %p231
    %p233 = scmp.ne.s32.totalorder %s224, %s225
    %p234 = scmp.eq.s32.totalorder %s31, 0
    %p235 = por %p233, %p234
    %p236 = scmp.ne.s32.totalorder %s224, %s225
    %p237 = scmp.eq.s32.totalorder %s32, 1
    %p238 = por %p236, %p237
    %p240 = scmp.ne.s32.totalorder %s225, %s239
    %p241 = scmp.eq.s32.totalorder %s32, 0
    %p242 = por %p240, %p241
    %s244 = sadd.s32 %s243, 1
    %p247 = scmp.eq.s32.totalorder %s26, 1
    %p248 = scmp.ne.s32.totalorder %s243, %s245
    %p249 = scmp.eq.s32.totalorder %s26, 0
    %p250 = por %p248, %p249
    %p251 = scmp.ne.s32.totalorder %s243, %s245
    %p252 = scmp.eq.s32.totalorder %s31, 1
    %p253 = por %p251, %p252
    %p254 = scmp.ne.s32.totalorder %s245, %s246
    %p255 = scmp.eq.s32.totalorder %s31, 0
    %p256 = por %p254, %p255
    %p257 = scmp.ne.s32.totalorder %s245, %s246
    %p258 = scmp.eq.s32.totalorder %s32, 1
    %p259 = por %p257, %p258
    %p261 = scmp.ne.s32.totalorder %s246, %s260
    %p262 = scmp.eq.s32.totalorder %s32, 0
    %p263 = por %p261, %p262
    %s265 = sadd.s32 %s264, 1
    %p268 = scmp.eq.s32.totalorder %s26, 1
    %p269 = scmp.ne.s32.totalorder %s264, %s266
    %p270 = scmp.eq.s32.totalorder %s26, 0
    %p271 = por %p269, %p270
    %p272 = scmp.ne.s32.totalorder %s264, %s266
    %p273 = scmp.eq.s32.totalorder %s31, 1
    %p274 = por %p272, %p273
    %p275 = scmp.ne.s32.totalorder %s266, %s267
    %p276 = scmp.eq.s32.totalorder %s31, 0
    %p277 = por %p275, %p276
    %p278 = scmp.ne.s32.totalorder %s266, %s267
    %p279 = scmp.eq.s32.totalorder %s32, 1
    %p280 = por %p278, %p279
    %p282 = scmp.ne.s32.totalorder %s267, %s281
    %p283 = scmp.eq.s32.totalorder %s32, 0
    %p284 = por %p282, %p283
    %s286 = sadd.s32 %s285, 1
    %p289 = scmp.eq.s32.totalorder %s26, 1
    %p290 = scmp.ne.s32.totalorder %s285, %s287
    %p291 = scmp.eq.s32.totalorder %s26, 0
    %p292 = por %p290, %p291
    %p293 = scmp.ne.s32.totalorder %s285, %s287
    %p294 = scmp.eq.s32.totalorder %s31, 1
    %p295 = por %p293, %p294
    %p296 = scmp.ne.s32.totalorder %s287, %s288
    %p297 = scmp.eq.s32.totalorder %s31, 0
    %p298 = por %p296, %p297
    %p299 = scmp.ne.s32.totalorder %s287, %s288
    %p300 = scmp.eq.s32.totalorder %s32, 1
    %p301 = por %p299, %p300
    %p303 = scmp.ne.s32.totalorder %s288, %s302
    %p304 = scmp.eq.s32.totalorder %s32, 0
    %p305 = por %p303, %p304
    %s307 = sadd.s32 %s306, 1
    %p310 = scmp.eq.s32.totalorder %s26, 1
    %p311 = scmp.ne.s32.totalorder %s306, %s308
    %p312 = scmp.eq.s32.totalorder %s26, 0
    %p313 = por %p311, %p312
    %p314 = scmp.ne.s32.totalorder %s306, %s308
    %p315 = scmp.eq.s32.totalorder %s31, 1
    %p316 = por %p314, %p315
    %p317 = scmp.ne.s32.totalorder %s308, %s309
    %p318 = scmp.eq.s32.totalorder %s31, 0
    %p319 = por %p317, %p318
    %p320 = scmp.ne.s32.totalorder %s308, %s309
    %p321 = scmp.eq.s32.totalorder %s32, 1
    %p322 = por %p320, %p321
    %p324 = scmp.ne.s32.totalorder %s309, %s323
    %p325 = scmp.eq.s32.totalorder %s32, 0
    %p326 = por %p324, %p325
    %s328 = sadd.s32 %s327, 1
    %p331 = scmp.eq.s32.totalorder %s26, 1
    %p332 = scmp.ne.s32.totalorder %s327, %s329
    %p333 = scmp.eq.s32.totalorder %s26, 0
    %p334 = por %p332, %p333
    %p335 = scmp.ne.s32.totalorder %s327, %s329
    %p336 = scmp.eq.s32.totalorder %s31, 1
    %p337 = por %p335, %p336
    %p338 = scmp.ne.s32.totalorder %s329, %s330
    %p339 = scmp.eq.s32.totalorder %s31, 0
    %p340 = por %p338, %p339
    %p341 = scmp.ne.s32.totalorder %s329, %s330
    %p342 = scmp.eq.s32.totalorder %s32, 1
    %p343 = por %p341, %p342
    %p345 = scmp.ne.s32.totalorder %s330, %s344
    %p346 = scmp.eq.s32.totalorder %s32, 0
    %p347 = por %p345, %p346
    %s349 = sadd.s32 %s348, 1
    %p352 = scmp.eq.s32.totalorder %s26, 1
    %p353 = scmp.ne.s32.totalorder %s348, %s350
    %p354 = scmp.eq.s32.totalorder %s26, 0
    %p355 = por %p353, %p354
    %p356 = scmp.ne.s32.totalorder %s348, %s350
    %p357 = scmp.eq.s32.totalorder %s31, 1
    %p358 = por %p356, %p357
    %p359 = scmp.ne.s32.totalorder %s350, %s351
    %p360 = scmp.eq.s32.totalorder %s31, 0
    %p361 = por %p359, %p360
    %p362 = scmp.ne.s32.totalorder %s350, %s351
    %p363 = scmp.eq.s32.totalorder %s32, 1
    %p364 = por %p362, %p363
    %p366 = scmp.ne.s32.totalorder %s351, %s365
    %p367 = scmp.eq.s32.totalorder %s32, 0
    %p368 = por %p366, %p367
    %s370 = sadd.s32 %s369, 1
    %p373 = scmp.eq.s32.totalorder %s26, 1
    %p374 = scmp.ne.s32.totalorder %s369, %s371
    %p375 = scmp.eq.s32.totalorder %s26, 0
    %p376 = por %p374, %p375
    %p377 = scmp.ne.s32.totalorder %s369, %s371
    %p378 = scmp.eq.s32.totalorder %s31, 1
    %p379 = por %p377, %p378
    %p380 = scmp.ne.s32.totalorder %s371, %s372
    %p381 = scmp.eq.s32.totalorder %s31, 0
    %p382 = por %p380, %p381
    %p383 = scmp.ne.s32.totalorder %s371, %s372
    %p384 = scmp.eq.s32.totalorder %s32, 1
    %p385 = por %p383, %p384
    %p387 = scmp.ne.s32.totalorder %s372, %s386
    %p388 = scmp.eq.s32.totalorder %s32, 0
    %p389 = por %p387, %p388
    %s391 = sadd.s32 %s390, 1
    %p394 = scmp.eq.s32.totalorder %s26, 1
    %p395 = scmp.ne.s32.totalorder %s390, %s392
    %p396 = scmp.eq.s32.totalorder %s26, 0
    %p397 = por %p395, %p396
    %p398 = scmp.ne.s32.totalorder %s390, %s392
    %p399 = scmp.eq.s32.totalorder %s31, 1
    %p400 = por %p398, %p399
    %p401 = scmp.ne.s32.totalorder %s392, %s393
    %p402 = scmp.eq.s32.totalorder %s31, 0
    %p403 = por %p401, %p402
    %p404 = scmp.ne.s32.totalorder %s392, %s393
    %p405 = scmp.eq.s32.totalorder %s32, 1
    %p406 = por %p404, %p405
    %p408 = scmp.ne.s32.totalorder %s393, %s407
    %p409 = scmp.eq.s32.totalorder %s32, 0
    %p410 = por %p408, %p409
    %s412 = sadd.s32 %s411, 1
    %p415 = scmp.eq.s32.totalorder %s26, 1
    %p416 = scmp.ne.s32.totalorder %s411, %s413
    %p417 = scmp.eq.s32.totalorder %s26, 0
    %p418 = por %p416, %p417
    %p419 = scmp.ne.s32.totalorder %s411, %s413
    %p420 = scmp.eq.s32.totalorder %s31, 1
    %p421 = por %p419, %p420
    %p422 = scmp.ne.s32.totalorder %s413, %s414
    %p423 = scmp.eq.s32.totalorder %s31, 0
    %p424 = por %p422, %p423
    %p425 = scmp.ne.s32.totalorder %s413, %s414
    %p426 = scmp.eq.s32.totalorder %s32, 1
    %p427 = por %p425, %p426
    %p429 = scmp.ne.s32.totalorder %s414, %s428
    %p430 = scmp.eq.s32.totalorder %s32, 0
    %p431 = por %p429, %p430
    %s432 = ssub.s32 %s26, %s33
    %p433 = scmp.eq.s32.totalorder %s432, 0
    %s435 = sadd.s32 %s434, 1
    %s436 = scalar_select %p433, %s434, %s435
    %p439 = pneg %p433
    %p440 = scmp.eq.s32.totalorder %s26, 1
    %p441 = por %p439, %p440
    %p442 = scmp.ne.s32.totalorder %s434, %s437
    %p443 = scmp.eq.s32.totalorder %s26, 0
    %p444 = por %p442, %p443
    %p445 = scmp.ne.s32.totalorder %s434, %s437
    %p446 = scmp.eq.s32.totalorder %s31, 1
    %p447 = por %p445, %p446
    %p448 = scmp.ne.s32.totalorder %s437, %s438
    %p449 = scmp.eq.s32.totalorder %s31, 0
    %p450 = por %p448, %p449
    %p451 = scmp.ne.s32.totalorder %s437, %s438
    %p452 = scmp.eq.s32.totalorder %s32, 1
    %p453 = por %p451, %p452
    %p455 = scmp.ne.s32.totalorder %s438, %s454
    %p456 = scmp.eq.s32.totalorder %s32, 0
    %p457 = por %p455, %p456
    %s458 = ssub.s32 %s26, %s33
    %p459 = scmp.eq.s32.totalorder %s458, 0
    %s461 = sadd.s32 %s460, 1
    %s462 = scalar_select %p459, %s460, %s461
    %p465 = pneg %p459
    %p466 = scmp.eq.s32.totalorder %s26, 1
    %p467 = por %p465, %p466
    %p468 = scmp.ne.s32.totalorder %s460, %s463
    %p469 = scmp.eq.s32.totalorder %s26, 0
    %p470 = por %p468, %p469
    %p471 = scmp.ne.s32.totalorder %s460, %s463
    %p472 = scmp.eq.s32.totalorder %s31, 1
    %p473 = por %p471, %p472
    %p474 = scmp.ne.s32.totalorder %s463, %s464
    %p475 = scmp.eq.s32.totalorder %s31, 0
    %p476 = por %p474, %p475
    %p477 = scmp.ne.s32.totalorder %s463, %s464
    %p478 = scmp.eq.s32.totalorder %s32, 1
    %p479 = por %p477, %p478
    %p481 = scmp.ne.s32.totalorder %s464, %s480
    %p482 = scmp.eq.s32.totalorder %s32, 0
    %p483 = por %p481, %p482
    %p484 = scmp.le.s32.totalorder 1, %s26
    %p485 = scmp.lt.s32.totalorder %s26, 3
    %p486 = pnand %p484, %p485
    %p487 = pneg %p486
    // Predicated region
    $region9: #{_teacher_forced_forward.3} parent=5 // pred_check
      _
    $region10: #{_teacher_forced_forward.3} parent=5 // pred_check_branch
      %489 = sbr.rel (%p486) target = $region12
    $region11: #{_teacher_forced_forward.3} parent=5 // pred_region
      %s490 = ssub.s32 %s26, 1
      // Predicated region
      $region13: #{_teacher_forced_forward.3} parent=11 // pred_check
        %p491 = pneg %p151
      $region14: #{_teacher_forced_forward.3} parent=11 // pred_check_branch
        %493 = sbr.rel (%p491) target = $region16
      $region15: #{_teacher_forced_forward.3} parent=11 // pred_region
        _
      $region16: #{_teacher_forced_forward.3} parent=11 // pred_fallthru
        _
      // Predicated region
      $region17: #{_teacher_forced_forward.3} parent=11 // pred_check
        %p494 = pneg %p172
      $region18: #{_teacher_forced_forward.3} parent=11 // pred_check_branch
        %496 = sbr.rel (%p494) target = $region20
      $region19: #{_teacher_forced_forward.3} parent=11 // pred_region
        _
      $region20: #{_teacher_forced_forward.3} parent=11 // pred_fallthru
        _
      // Predicated region
      $region21: #{_teacher_forced_forward.3} parent=11 // pred_check
        %p497 = pneg %p193
      $region22: #{_teacher_forced_forward.3} parent=11 // pred_check_branch
        %499 = sbr.rel (%p497) target = $region24
      $region23: #{_teacher_forced_forward.3} parent=11 // pred_region
        _
      $region24: #{_teacher_forced_forward.3} parent=11 // pred_fallthru
        _
      // Predicated region
      $region25: #{_teacher_forced_forward.3} parent=11 // pred_check
        %p500 = pneg %p214
      $region26: #{_teacher_forced_forward.3} parent=11 // pred_check_branch
        %502 = sbr.rel (%p500) target = $region28
      $region27: #{_teacher_forced_forward.3} parent=11 // pred_region
        _
      $region28: #{_teacher_forced_forward.3} parent=11 // pred_fallthru
        _
      // Predicated region
      $region29: #{_teacher_forced_forward.3} parent=11 // pred_check
        %p503 = pneg %p235
      $region30: #{_teacher_forced_forward.3} parent=11 // pred_check_branch
        %505 = sbr.rel (%p503) target = $region32
      $region31: #{_teacher_forced_forward.3} parent=11 // pred_region
        _
      $region32: #{_teacher_forced_forward.3} parent=11 // pred_fallthru
        _
      // Predicated region
      $region33: #{_teacher_forced_forward.3} parent=11 // pred_check
        %p506 = pneg %p256
      $region34: #{_teacher_forced_forward.3} parent=11 // pred_check_branch
        %508 = sbr.rel (%p506) target = $region36
      $region35: #{_teacher_forced_forward.3} parent=11 // pred_region
        _
      $region36: #{_teacher_forced_forward.3} parent=11 // pred_fallthru
        _
      // Predicated region
      $region37: #{_teacher_forced_forward.3} parent=11 // pred_check
        %p509 = pneg %p277
      $region38: #{_teacher_forced_forward.3} parent=11 // pred_check_branch
        %511 = sbr.rel (%p509) target = $region40
      $region39: #{_teacher_forced_forward.3} parent=11 // pred_region
        _
      $region40: #{_teacher_forced_forward.3} parent=11 // pred_fallthru
        _
      // Predicated region
      $region41: #{_teacher_forced_forward.3} parent=11 // pred_check
        %p512 = pneg %p298
      $region42: #{_teacher_forced_forward.3} parent=11 // pred_check_branch
        %514 = sbr.rel (%p512) target = $region44
      $region43: #{_teacher_forced_forward.3} parent=11 // pred_region
        _
      $region44: #{_teacher_forced_forward.3} parent=11 // pred_fallthru
        _
      // Predicated region
      $region45: #{_teacher_forced_forward.3} parent=11 // pred_check
        %p515 = pneg %p319
      $region46: #{_teacher_forced_forward.3} parent=11 // pred_check_branch
        %517 = sbr.rel (%p515) target = $region48
      $region47: #{_teacher_forced_forward.3} parent=11 // pred_region
        _
      $region48: #{_teacher_forced_forward.3} parent=11 // pred_fallthru
        _
      // Predicated region
      $region49: #{_teacher_forced_forward.3} parent=11 // pred_check
        %p518 = pneg %p340
      $region50: #{_teacher_forced_forward.3} parent=11 // pred_check_branch
        %520 = sbr.rel (%p518) target = $region52
      $region51: #{_teacher_forced_forward.3} parent=11 // pred_region
        _
      $region52: #{_teacher_forced_forward.3} parent=11 // pred_fallthru
        _
      // Predicated region
      $region53: #{_teacher_forced_forward.3} parent=11 // pred_check
        %p521 = pneg %p361
      $region54: #{_teacher_forced_forward.3} parent=11 // pred_check_branch
        %523 = sbr.rel (%p521) target = $region56
      $region55: #{_teacher_forced_forward.3} parent=11 // pred_region
        _
      $region56: #{_teacher_forced_forward.3} parent=11 // pred_fallthru
        _
      // Predicated region
      $region57: #{_teacher_forced_forward.3} parent=11 // pred_check
        %p524 = pneg %p382
      $region58: #{_teacher_forced_forward.3} parent=11 // pred_check_branch
        %526 = sbr.rel (%p524) target = $region60
      $region59: #{_teacher_forced_forward.3} parent=11 // pred_region
        _
      $region60: #{_teacher_forced_forward.3} parent=11 // pred_fallthru
        _
      // Predicated region
      $region61: #{_teacher_forced_forward.3} parent=11 // pred_check
        %p527 = pneg %p403
      $region62: #{_teacher_forced_forward.3} parent=11 // pred_check_branch
        %529 = sbr.rel (%p527) target = $region64
      $region63: #{_teacher_forced_forward.3} parent=11 // pred_region
        _
      $region64: #{_teacher_forced_forward.3} parent=11 // pred_fallthru
        _
      // Predicated region
      $region65: #{_teacher_forced_forward.3} parent=11 // pred_check
        %p530 = pneg %p424
      $region66: #{_teacher_forced_forward.3} parent=11 // pred_check_branch
        %532 = sbr.rel (%p530) target = $region68
      $region67: #{_teacher_forced_forward.3} parent=11 // pred_region
        _
      $region68: #{_teacher_forced_forward.3} parent=11 // pred_fallthru
        _
    $region12: #{_teacher_forced_forward.3} parent=5 // pred_fallthru
      _
    %p533 = scmp.lt.s32.totalorder %s26, 2
    // Predicated region
    $region69: #{_teacher_forced_forward.3} parent=5 // pred_check
      %p534 = pneg %p533
    $region70: #{_teacher_forced_forward.3} parent=5 // pred_check_branch
      %536 = sbr.rel (%p534) target = $region72
    $region71: #{_teacher_forced_forward.3} parent=5 // pred_region
      // Predicated region
      $region73: #{_teacher_forced_forward.3} parent=71 // pred_check
        %p537 = pneg %p46
      $region74: #{_teacher_forced_forward.3} parent=71 // pred_check_branch
        %539 = sbr.rel (%p537) target = $region76
      $region75: #{_teacher_forced_forward.3} parent=71 // pred_region
        %p540 = scmp.lt.s32.totalorder %s26, 1
        %s541 = scalar_select %p540, %s26, 1
        %s542 = smul.addr %s541, 8
        %s543 = scalar_lea.vmem %s0, %s542
      $region76: #{_teacher_forced_forward.3} parent=71 // pred_fallthru
        _
      // Predicated region
      $region77: #{_teacher_forced_forward.3} parent=71 // pred_check
        %p544 = pneg %p72
      $region78: #{_teacher_forced_forward.3} parent=71 // pred_check_branch
        %546 = sbr.rel (%p544) target = $region80
      $region79: #{_teacher_forced_forward.3} parent=71 // pred_region
        %p547 = scmp.lt.s32.totalorder %s26, 1
        %s548 = scalar_select %p547, %s26, 1
        %s549 = smul.addr %s548, 16
        %s550 = smul.addr %s549, 4
        %s551 = scalar_lea.vmem %s1, %s550
      $region80: #{_teacher_forced_forward.3} parent=71 // pred_fallthru
        _
      // Predicated region
      $region81: #{_teacher_forced_forward.3} parent=71 // pred_check
        %p552 = pneg %p98
      $region82: #{_teacher_forced_forward.3} parent=71 // pred_check_branch
        %554 = sbr.rel (%p552) target = $region84
      $region83: #{_teacher_forced_forward.3} parent=71 // pred_region
        %p555 = scmp.lt.s32.totalorder %s26, 1
        %s556 = scalar_select %p555, %s26, 1
        %s557 = smul.addr %s556, 16
        %s558 = smul.addr %s557, 4
        %s559 = scalar_lea.vmem %s2, %s558
      $region84: #{_teacher_forced_forward.3} parent=71 // pred_fallthru
        _
      // Predicated region
      $region85: #{_teacher_forced_forward.3} parent=71 // pred_check
        %p560 = pneg %p124
      $region86: #{_teacher_forced_forward.3} parent=71 // pred_check_branch
        %562 = sbr.rel (%p560) target = $region88
      $region87: #{_teacher_forced_forward.3} parent=71 // pred_region
        %p563 = scmp.lt.s32.totalorder %s26, 1
        %s564 = scalar_select %p563, %s26, 1
        %s565 = scalar_lea.vmem %s3, %s564
      $region88: #{_teacher_forced_forward.3} parent=71 // pred_fallthru
        _
    $region72: #{_teacher_forced_forward.3} parent=5 // pred_fallthru
      _
    %p566 = scmp.le.s32.totalorder 1, %s26
    %p567 = scmp.lt.s32.totalorder %s26, 3
    %p568 = pnand %p566, %p567
    %p569 = pneg %p568
    // Predicated region
    $region89: #{_teacher_forced_forward.3} parent=5 // pred_check
      _
    $region90: #{_teacher_forced_forward.3} parent=5 // pred_check_branch
      %571 = sbr.rel (%p568) target = $region92
    $region91: #{_teacher_forced_forward.3} parent=5 // pred_region
      %s572 = ssub.s32 %s26, 1
      %p573 = scmp.lt.s32.totalorder %s31, 1
      %s574 = scalar_select %p573, %s31, 1
      %s575 = smul.addr %s574, 8
      %s576 = scalar_lea.vmem %s0, %s575
      %p577 = pneg %p52
      %p578 = pneg %p49
      %p579 = scmp.lt.s32.totalorder %s31, 1
      %s580 = scalar_select %p579, %s31, 1
      %s581 = smul.addr %s580, 16
      %s582 = smul.addr %s581, 4
      %s583 = scalar_lea.vmem %s1, %s582
      %p584 = pneg %p78
      %p585 = pneg %p75
      %p586 = scmp.lt.s32.totalorder %s31, 1
      %s587 = scalar_select %p586, %s31, 1
      %s588 = smul.addr %s587, 16
      %s589 = smul.addr %s588, 4
      %s590 = scalar_lea.vmem %s2, %s589
      %p591 = pneg %p104
      %p592 = pneg %p101
      %p593 = scmp.lt.s32.totalorder %s31, 1
      %s594 = scalar_select %p593, %s31, 1
      %s595 = scalar_lea.vmem %s3, %s594
      %p596 = pneg %p130
      %p597 = pneg %p127
      %p598 = pneg %p151
      %p599 = pneg %p148
      %p600 = pneg %p172
      %p601 = pneg %p169
      %p602 = pneg %p193
      %p603 = pneg %p190
      %p604 = pneg %p214
      %p605 = pneg %p211
      %p606 = pneg %p235
      %p607 = pneg %p232
      %p608 = pneg %p256
      %p609 = pneg %p253
      %p610 = pneg %p277
      %p611 = pneg %p274
      %p612 = pneg %p298
      %p613 = pneg %p295
      %p614 = pneg %p319
      %p615 = pneg %p316
      %p616 = pneg %p340
      %p617 = pneg %p337
      %p618 = pneg %p361
      %p619 = pneg %p358
      %p620 = pneg %p382
      %p621 = pneg %p379
      %p622 = pneg %p403
      %p623 = pneg %p400
      %p624 = pneg %p424
      %p625 = pneg %p421
      %p626 = pneg %p450
      %p627 = pneg %p447
      %p628 = scmp.lt.s32.totalorder %s31, 1
      %s629 = scalar_select %p628, %s31, 1
      %s630 = smul.addr %s629, 8
      %s631 = scalar_lea.vmem %s18, %s630
      %p632 = pneg %p476
      %p633 = pneg %p473
      %p634 = scmp.lt.s32.totalorder %s31, 1
      %s635 = scalar_select %p634, %s31, 1
      %s636 = smul.addr %s635, 8
      %s637 = scalar_lea.vmem %s19, %s636
      %p638 = scmp.lt.s32.totalorder %s31, 1
      %s639 = scalar_select %p638, %s31, 1
      %s640 = smul.addr %s639, 8
      %s641 = scalar_lea.vmem %s0, %s640
      %p642 = scmp.lt.s32.totalorder %s31, 1
      %s643 = scalar_select %p642, %s31, 1
      %s644 = smul.addr %s643, 16
      %s645 = smul.addr %s644, 4
      %s646 = scalar_lea.vmem %s1, %s645
      %p647 = scmp.lt.s32.totalorder %s31, 1
      %s648 = scalar_select %p647, %s31, 1
      %s649 = smul.addr %s648, 16
      %s650 = smul.addr %s649, 4
      %s651 = scalar_lea.vmem %s2, %s650
      %p652 = scmp.lt.s32.totalorder %s31, 1
      %s653 = scalar_select %p652, %s31, 1
      %s654 = scalar_lea.vmem %s3, %s653
      %p655 = scmp.lt.s32.totalorder %s31, 1
      %s656 = scalar_select %p655, %s31, 1
      %s657 = smul.addr %s656, 8
      %s658 = scalar_lea.vmem %s18, %s657
      %p659 = scmp.lt.s32.totalorder %s31, 1
      %s660 = scalar_select %p659, %s31, 1
      %s661 = smul.addr %s660, 8
      %s662 = scalar_lea.vmem %s19, %s661
      %v664 = vld [vmem:[%s641] sm:$0x7f]
      %v665 = vld [vmem:[%s646] sm:$0xf]
      %v666 = vld [vmem:[%s646 + $0x4] sm:$0xf]
      %v667 = vld [vmem:[%s646 + $0x8] sm:$0xf]
      %v668 = vld [vmem:[%s646 + $0xc] sm:$0xf]
      %v669 = vld [vmem:[%s646 + $0x10] sm:$0xf]
      %v670 = vld [vmem:[%s646 + $0x14] sm:$0xf]
      %v671 = vld [vmem:[%s646 + $0x18] sm:$0xf]
      %v672 = vld [vmem:[%s646 + $0x1c] sm:$0xf]
      %v673 = vld [vmem:[%s646 + $0x20] sm:$0xf]
      %v674 = vld [vmem:[%s646 + $0x24] sm:$0xf]
      %v675 = vld [vmem:[%s646 + $0x28] sm:$0xf]
      %v676 = vld [vmem:[%s646 + $0x2c] sm:$0xf]
      %v677 = vld [vmem:[%s646 + $0x30] sm:$0xf]
      %v678 = vld [vmem:[%s646 + $0x34] sm:$0xf]
      %v679 = vld [vmem:[%s646 + $0x38] sm:$0xf]
      %v680 = vld [vmem:[%s646 + $0x3c] sm:$0xf]
      %v681 = vld [vmem:[%s651] sm:$0xf]
      %v682 = vld [vmem:[%s651 + $0x4] sm:$0xf]
      %v683 = vld [vmem:[%s651 + $0x8] sm:$0xf]
      %v684 = vld [vmem:[%s651 + $0xc] sm:$0xf]
      %v685 = vld [vmem:[%s651 + $0x10] sm:$0xf]
      %v686 = vld [vmem:[%s651 + $0x14] sm:$0xf]
      %v687 = vld [vmem:[%s651 + $0x18] sm:$0xf]
      %v688 = vld [vmem:[%s651 + $0x1c] sm:$0xf]
      %v689 = vld [vmem:[%s651 + $0x20] sm:$0xf]
      %v690 = vld [vmem:[%s651 + $0x24] sm:$0xf]
      %v691 = vld [vmem:[%s651 + $0x28] sm:$0xf]
      %v692 = vld [vmem:[%s651 + $0x2c] sm:$0xf]
      %v693 = vld [vmem:[%s651 + $0x30] sm:$0xf]
      %v694 = vld [vmem:[%s651 + $0x34] sm:$0xf]
      %v695 = vld [vmem:[%s651 + $0x38] sm:$0xf]
      %v696 = vld [vmem:[%s651 + $0x3c] sm:$0xf]
      %v697 = vld [vmem:[%s654] sm:$0x1]
      %vm698 = vcmp.gt.f32.partialorder %v697, 0.5
      %v699 = vld [vmem:[%s4] sm:$0xf]
      %v700 = vld [vmem:[%s4 + $0x4] sm:$0xf]
      %v701 = vld [vmem:[%s4 + $0x8] sm:$0xf]
      %v702 = vld [vmem:[%s4 + $0xc] sm:$0xf]
      %v703 = vpack.c.bf16 %v664, %v664
      %v704 = vld [vmem:[%s5] sm:$0x1]
      %v706 = vlaneseq
      %v707 = vshrl.u32 %v706, 7
      %v708 = vsub.s32 0, %v707
      %v709 = vrot.slane %v704, %v708
      %v715 = vunpack.c.l.b16 %v699
      %v716 = vunpack.c.l.b16 %v700
      %v717 = vunpack.c.l.b16 %v701
      %v718 = vunpack.c.l.b16 %v702
      %v719 = vpack.c.b16 %v716, %v715
      %v720 = vpack.c.b16 %v718, %v717
      %vm723 = vcmask 261120
      %v725 = vsel %vm723, %v703, 0
      %727 = vmatprep.subr.bf16.mxu0 0
      %728 = vmatpush1.bf16.msra.mxu0 %v719
      %729 = vmatprep.subr.bf16.mxu0 0
      %730 = vmatpush1.bf16.msra.mxu0 %v720
      %731 = vmatprep.subr.bf16.mxu0 0
      %732 = vmatpush1.bf16.msra.mxu0 0
      %733 = vmatprep.subr.bf16.mxu0 0
      %734 = vmatpush1.bf16.msra.mxu0 0
      %735 = vmatprep.subr.bf16.mxu0 0
      %736 = vmatpush1.bf16.msra.mxu0 0
      %737 = vmatprep.subr.bf16.mxu0 0
      %738 = vmatpush1.bf16.msra.mxu0 0
      %739 = vmatprep.subr.bf16.mxu0 0
      %740 = vmatpush1.bf16.msra.mxu0 0
      %741 = vmatprep.subr.bf16.mxu0 0
      %742 = vmatpush1.bf16.msra.mxu0 0
      %743 = vmatprep.subr.bf16.mxu0 0
      %744 = vmatpush1.bf16.msra.mxu0 0
      %745 = vmatprep.subr.bf16.mxu0 0
      %746 = vmatpush1.bf16.msra.mxu0 0
      %747 = vmatprep.subr.bf16.mxu0 0
      %748 = vmatpush1.bf16.msra.mxu0 0
      %749 = vmatprep.subr.bf16.mxu0 0
      %750 = vmatpush1.bf16.msra.mxu0 0
      %751 = vmatprep.subr.bf16.mxu0 0
      %752 = vmatpush1.bf16.msra.mxu0 0
      %753 = vmatprep.subr.bf16.mxu0 0
      %754 = vmatpush1.bf16.msra.mxu0 0
      %755 = vmatprep.subr.bf16.mxu0 0
      %756 = vmatpush1.bf16.msra.mxu0 0
      %757 = vmatprep.subr.bf16.mxu0 0
      %758 = vmatpush1.bf16.msra.mxu0 0
      %759 = vmatprep.mubr.bf16.mxu0 0
      %760 = vmatmul.mubr.bf16.gmra.mrb[0].mxu0 %v725
      %v761 = vpop.f32.mrb[0].mxu0
      %v762 = vadd.f32 %v709, %v761
      %v763 = vpop.f32.mrb[0].mxu0
      %v764 = vpop.f32.mrb[0].mxu0
      %v765 = vpop.f32.mrb[0].mxu0
      %766 = vdwg.mxu0
      %v768 = vrot.slane %v762, 6
      %vm770 = vcmask 1041408
      %v771 = vsel %vm770, 0.0, %v768
      %v772 = vld [vmem:[%s6] sm:$0xf]
      %v773 = vld [vmem:[%s6 + $0x4] sm:$0xf]
      %v774 = vld [vmem:[%s6 + $0x8] sm:$0xf]
      %v775 = vld [vmem:[%s6 + $0xc] sm:$0xf]
      %v776 = vpack.c.bf16 %v771, %v771
      %v777 = vld [vmem:[%s7] sm:$0xf]
      %v778 = vld [vmem:[%s7 + $0x4] sm:$0xf]
      %v779 = vld [vmem:[%s7 + $0x8] sm:$0xf]
      %v780 = vld [vmem:[%s7 + $0xc] sm:$0xf]
      %s781 = scalar_lea.vmem %s6, 16
      %v782 = vld [vmem:[%s781] sm:$0xf]
      %v783 = vld [vmem:[%s781 + $0x4] sm:$0xf]
      %v784 = vld [vmem:[%s781 + $0x8] sm:$0xf]
      %v785 = vld [vmem:[%s781 + $0xc] sm:$0xf]
      %v787 = vshrl.u32 %v776, 16
      %v789 = vshll.u32 %v776, 16
      %v791 = vrot.slane %v789, 1
      %v792 = vor.u32 %v787, %v791
      %v797 = vunpack.c.l.b16 %v782
      %v798 = vunpack.c.l.b16 %v783
      %v799 = vunpack.c.l.b16 %v784
      %v800 = vunpack.c.l.b16 %v785
      %v801 = vpack.c.b16 %v798, %v797
      %v802 = vpack.c.b16 %v800, %v799
      %v806 = vsel %vm723, %v792, 0
      %808 = vmatprep.subr.bf16.mxu0 0
      %809 = vmatpush1.bf16.msra.mxu0 %v801
      %810 = vmatprep.subr.bf16.mxu0 0
      %811 = vmatpush1.bf16.msra.mxu0 %v802
      %812 = vmatprep.subr.bf16.mxu0 0
      %813 = vmatpush1.bf16.msra.mxu0 0
      %814 = vmatprep.subr.bf16.mxu0 0
      %815 = vmatpush1.bf16.msra.mxu0 0
      %816 = vmatprep.subr.bf16.mxu0 0
      %817 = vmatpush1.bf16.msra.mxu0 0
      %818 = vmatprep.subr.bf16.mxu0 0
      %819 = vmatpush1.bf16.msra.mxu0 0
      %820 = vmatprep.subr.bf16.mxu0 0
      %821 = vmatpush1.bf16.msra.mxu0 0
      %822 = vmatprep.subr.bf16.mxu0 0
      %823 = vmatpush1.bf16.msra.mxu0 0
      %824 = vmatprep.subr.bf16.mxu0 0
      %825 = vmatpush1.bf16.msra.mxu0 0
      %826 = vmatprep.subr.bf16.mxu0 0
      %827 = vmatpush1.bf16.msra.mxu0 0
      %828 = vmatprep.subr.bf16.mxu0 0
      %829 = vmatpush1.bf16.msra.mxu0 0
      %830 = vmatprep.subr.bf16.mxu0 0
      %831 = vmatpush1.bf16.msra.mxu0 0
      %832 = vmatprep.subr.bf16.mxu0 0
      %833 = vmatpush1.bf16.msra.mxu0 0
      %834 = vmatprep.subr.bf16.mxu0 0
      %835 = vmatpush1.bf16.msra.mxu0 0
      %836 = vmatprep.subr.bf16.mxu0 0
      %837 = vmatpush1.bf16.msra.mxu0 0
      %838 = vmatprep.subr.bf16.mxu0 0
      %839 = vmatpush1.bf16.msra.mxu0 0
      %840 = vmatprep.mubr.bf16.mxu0 0
      %841 = vmatmul.mubr.bf16.gmra.mrb[0].mxu0 %v806
      %v842 = vpop.f32.mrb[0].mxu0
      %v843 = vadd.f32 0.0, %v842
      %v844 = vpop.f32.mrb[0].mxu0
      %v845 = vpop.f32.mrb[0].mxu0
      %v846 = vpop.f32.mrb[0].mxu0
      %847 = vdwg.mxu0
      %v852 = vunpack.c.l.b16 %v772
      %v853 = vunpack.c.l.b16 %v773
      %v854 = vunpack.c.l.b16 %v774
      %v855 = vunpack.c.l.b16 %v775
      %v856 = vpack.c.b16 %v853, %v852
      %v857 = vpack.c.b16 %v855, %v854
      %v860 = vsel %vm723, %v776, 0
      %862 = vmatprep.subr.bf16.mxu0 0
      %863 = vmatpush1.bf16.msra.mxu0 %v856
      %864 = vmatprep.subr.bf16.mxu0 0
      %865 = vmatpush1.bf16.msra.mxu0 %v857
      %866 = vmatprep.subr.bf16.mxu0 0
      %867 = vmatpush1.bf16.msra.mxu0 0
      %868 = vmatprep.subr.bf16.mxu0 0
      %869 = vmatpush1.bf16.msra.mxu0 0
      %870 = vmatprep.subr.bf16.mxu0 0
      %871 = vmatpush1.bf16.msra.mxu0 0
      %872 = vmatprep.subr.bf16.mxu0 0
      %873 = vmatpush1.bf16.msra.mxu0 0
      %874 = vmatprep.subr.bf16.mxu0 0
      %875 = vmatpush1.bf16.msra.mxu0 0
      %876 = vmatprep.subr.bf16.mxu0 0
      %877 = vmatpush1.bf16.msra.mxu0 0
      %878 = vmatprep.subr.bf16.mxu0 0
      %879 = vmatpush1.bf16.msra.mxu0 0
      %880 = vmatprep.subr.bf16.mxu0 0
      %881 = vmatpush1.bf16.msra.mxu0 0
      %882 = vmatprep.subr.bf16.mxu0 0
      %883 = vmatpush1.bf16.msra.mxu0 0
      %884 = vmatprep.subr.bf16.mxu0 0
      %885 = vmatpush1.bf16.msra.mxu0 0
      %886 = vmatprep.subr.bf16.mxu0 0
      %887 = vmatpush1.bf16.msra.mxu0 0
      %888 = vmatprep.subr.bf16.mxu0 0
      %889 = vmatpush1.bf16.msra.mxu0 0
      %890 = vmatprep.subr.bf16.mxu0 0
      %891 = vmatpush1.bf16.msra.mxu0 0
      %892 = vmatprep.subr.bf16.mxu0 0
      %893 = vmatpush1.bf16.msra.mxu0 0
      %894 = vmatprep.mubr.bf16.mxu0 0
      %895 = vmatmul.mubr.bf16.gmra.mrb[0].mxu0 %v860
      %v896 = vpop.f32.mrb[0].mxu0
      %v897 = vadd.f32 %v843, %v896
      %v898 = vpop.f32.mrb[0].mxu0
      %v899 = vpop.f32.mrb[0].mxu0
      %v900 = vpop.f32.mrb[0].mxu0
      %901 = vdwg.mxu0
      %s902 = scalar_lea.vmem %s7, 16
      %v903 = vld [vmem:[%s902] sm:$0xf]
      %v904 = vld [vmem:[%s902 + $0x4] sm:$0xf]
      %v905 = vld [vmem:[%s902 + $0x8] sm:$0xf]
      %v906 = vld [vmem:[%s902 + $0xc] sm:$0xf]
      %v911 = vunpack.c.l.b16 %v903
      %v912 = vunpack.c.l.b16 %v904
      %v913 = vunpack.c.l.b16 %v905
      %v914 = vunpack.c.l.b16 %v906
      %v915 = vpack.c.b16 %v912, %v911
      %v916 = vpack.c.b16 %v914, %v913
      %919 = vmatprep.subr.bf16.mxu0 0
      %920 = vmatpush1.bf16.msra.mxu0 %v915
      %921 = vmatprep.subr.bf16.mxu0 0
      %922 = vmatpush1.bf16.msra.mxu0 %v916
      %923 = vmatprep.subr.bf16.mxu0 0
      %924 = vmatpush1.bf16.msra.mxu0 0
      %925 = vmatprep.subr.bf16.mxu0 0
      %926 = vmatpush1.bf16.msra.mxu0 0
      %927 = vmatprep.subr.bf16.mxu0 0
      %928 = vmatpush1.bf16.msra.mxu0 0
      %929 = vmatprep.subr.bf16.mxu0 0
      %930 = vmatpush1.bf16.msra.mxu0 0
      %931 = vmatprep.subr.bf16.mxu0 0
      %932 = vmatpush1.bf16.msra.mxu0 0
      %933 = vmatprep.subr.bf16.mxu0 0
      %934 = vmatpush1.bf16.msra.mxu0 0
      %935 = vmatprep.subr.bf16.mxu0 0
      %936 = vmatpush1.bf16.msra.mxu0 0
      %937 = vmatprep.subr.bf16.mxu0 0
      %938 = vmatpush1.bf16.msra.mxu0 0
      %939 = vmatprep.subr.bf16.mxu0 0
      %940 = vmatpush1.bf16.msra.mxu0 0
      %941 = vmatprep.subr.bf16.mxu0 0
      %942 = vmatpush1.bf16.msra.mxu0 0
      %943 = vmatprep.subr.bf16.mxu0 0
      %944 = vmatpush1.bf16.msra.mxu0 0
      %945 = vmatprep.subr.bf16.mxu0 0
      %946 = vmatpush1.bf16.msra.mxu0 0
      %947 = vmatprep.subr.bf16.mxu0 0
      %948 = vmatpush1.bf16.msra.mxu0 0
      %949 = vmatprep.subr.bf16.mxu0 0
      %950 = vmatpush1.bf16.msra.mxu0 0
      %951 = vmatprep.mubr.bf16.mxu0 0
      %952 = vmatmul.mubr.bf16.gmra.mrb[0].mxu0 %v806
      %v953 = vpop.f32.mrb[0].mxu0
      %v954 = vadd.f32 0.0, %v953
      %v955 = vpop.f32.mrb[0].mxu0
      %v956 = vpop.f32.mrb[0].mxu0
      %v957 = vpop.f32.mrb[0].mxu0
      %958 = vdwg.mxu0
      %v963 = vunpack.c.l.b16 %v777
      %v964 = vunpack.c.l.b16 %v778
      %v965 = vunpack.c.l.b16 %v779
      %v966 = vunpack.c.l.b16 %v780
      %v967 = vpack.c.b16 %v964, %v963
      %v968 = vpack.c.b16 %v966, %v965
      %971 = vmatprep.subr.bf16.mxu0 0
      %972 = vmatpush1.bf16.msra.mxu0 %v967
      %973 = vmatprep.subr.bf16.mxu0 0
      %974 = vmatpush1.bf16.msra.mxu0 %v968
      %975 = vmatprep.subr.bf16.mxu0 0
      %976 = vmatpush1.bf16.msra.mxu0 0
      %977 = vmatprep.subr.bf16.mxu0 0
      %978 = vmatpush1.bf16.msra.mxu0 0
      %979 = vmatprep.subr.bf16.mxu0 0
      %980 = vmatpush1.bf16.msra.mxu0 0
      %981 = vmatprep.subr.bf16.mxu0 0
      %982 = vmatpush1.bf16.msra.mxu0 0
      %983 = vmatprep.subr.bf16.mxu0 0
      %984 = vmatpush1.bf16.msra.mxu0 0
      %985 = vmatprep.subr.bf16.mxu0 0
      %986 = vmatpush1.bf16.msra.mxu0 0
      %987 = vmatprep.subr.bf16.mxu0 0
      %988 = vmatpush1.bf16.msra.mxu0 0
      %989 = vmatprep.subr.bf16.mxu0 0
      %990 = vmatpush1.bf16.msra.mxu0 0
      %991 = vmatprep.subr.bf16.mxu0 0
      %992 = vmatpush1.bf16.msra.mxu0 0
      %993 = vmatprep.subr.bf16.mxu0 0
      %994 = vmatpush1.bf16.msra.mxu0 0
      %995 = vmatprep.subr.bf16.mxu0 0
      %996 = vmatpush1.bf16.msra.mxu0 0
      %997 = vmatprep.subr.bf16.mxu0 0
      %998 = vmatpush1.bf16.msra.mxu0 0
      %999 = vmatprep.subr.bf16.mxu0 0
      %1000 = vmatpush1.bf16.msra.mxu0 0
      %1001 = vmatprep.subr.bf16.mxu0 0
      %1002 = vmatpush1.bf16.msra.mxu0 0
      %1003 = vmatprep.mubr.bf16.mxu0 0
      %1004 = vmatmul.mubr.bf16.gmra.mrb[0].mxu0 %v860
      %v1005 = vpop.f32.mrb[0].mxu0
      %v1006 = vadd.f32 %v954, %v1005
      %v1007 = vpop.f32.mrb[0].mxu0
      %v1008 = vpop.f32.mrb[0].mxu0
      %v1009 = vpop.f32.mrb[0].mxu0
      %1010 = vdwg.mxu0
      %s1011 = scalar_lea.vmem %s6, 32
      %v1012 = vld [vmem:[%s1011] sm:$0xf]
      %v1013 = vld [vmem:[%s1011 + $0x4] sm:$0xf]
      %v1014 = vld [vmem:[%s1011 + $0x8] sm:$0xf]
      %v1015 = vld [vmem:[%s1011 + $0xc] sm:$0xf]
      %v1016 = vpack.c.bf16 %v768, %v771
      %v1018 = vrot.slane %v1016, 1
      %v1023 = vunpack.c.l.b16 %v1012
      %v1024 = vunpack.c.l.b16 %v1013
      %v1025 = vunpack.c.l.b16 %v1014
      %v1026 = vunpack.c.l.b16 %v1015
      %v1027 = vpack.c.b16 %v1024, %v1023
      %v1028 = vpack.c.b16 %v1026, %v1025
      %v1032 = vsel %vm723, %v1018, 0
      %1034 = vmatprep.subr.bf16.mxu0 0
      %1035 = vmatpush1.bf16.msra.mxu0 %v1027
      %1036 = vmatprep.subr.bf16.mxu0 0
      %1037 = vmatpush1.bf16.msra.mxu0 %v1028
      %1038 = vmatprep.subr.bf16.mxu0 0
      %1039 = vmatpush1.bf16.msra.mxu0 0
      %1040 = vmatprep.subr.bf16.mxu0 0
      %1041 = vmatpush1.bf16.msra.mxu0 0
      %1042 = vmatprep.subr.bf16.mxu0 0
      %1043 = vmatpush1.bf16.msra.mxu0 0
      %1044 = vmatprep.subr.bf16.mxu0 0
      %1045 = vmatpush1.bf16.msra.mxu0 0
      %1046 = vmatprep.subr.bf16.mxu0 0
      %1047 = vmatpush1.bf16.msra.mxu0 0
      %1048 = vmatprep.subr.bf16.mxu0 0
      %1049 = vmatpush1.bf16.msra.mxu0 0
      %1050 = vmatprep.subr.bf16.mxu0 0
      %1051 = vmatpush1.bf16.msra.mxu0 0
      %1052 = vmatprep.subr.bf16.mxu0 0
      %1053 = vmatpush1.bf16.msra.mxu0 0
      %1054 = vmatprep.subr.bf16.mxu0 0
      %1055 = vmatpush1.bf16.msra.mxu0 0
      %1056 = vmatprep.subr.bf16.mxu0 0
      %1057 = vmatpush1.bf16.msra.mxu0 0
      %1058 = vmatprep.subr.bf16.mxu0 0
      %1059 = vmatpush1.bf16.msra.mxu0 0
      %1060 = vmatprep.subr.bf16.mxu0 0
      %1061 = vmatpush1.bf16.msra.mxu0 0
      %1062 = vmatprep.subr.bf16.mxu0 0
      %1063 = vmatpush1.bf16.msra.mxu0 0
      %1064 = vmatprep.subr.bf16.mxu0 0
      %1065 = vmatpush1.bf16.msra.mxu0 0
      %1066 = vmatprep.mubr.bf16.mxu0 0
      %1067 = vmatmul.mubr.bf16.gmra.mrb[0].mxu0 %v1032
      %v1068 = vpop.f32.mrb[0].mxu0
      %v1069 = vadd.f32 0.0, %v1068
      %v1070 = vpop.f32.mrb[0].mxu0
      %v1071 = vpop.f32.mrb[0].mxu0
      %v1072 = vpop.f32.mrb[0].mxu0
      %1073 = vdwg.mxu0
      %v1074 = vadd.f32 %v897, %v1069
      %s1075 = scalar_lea.vmem %s7, 32
      %v1076 = vld [vmem:[%s1075] sm:$0xf]
      %v1077 = vld [vmem:[%s1075 + $0x4] sm:$0xf]
      %v1078 = vld [vmem:[%s1075 + $0x8] sm:$0xf]
      %v1079 = vld [vmem:[%s1075 + $0xc] sm:$0xf]
      %v1084 = vunpack.c.l.b16 %v1076
      %v1085 = vunpack.c.l.b16 %v1077
      %v1086 = vunpack.c.l.b16 %v1078
      %v1087 = vunpack.c.l.b16 %v1079
      %v1088 = vpack.c.b16 %v1085, %v1084
      %v1089 = vpack.c.b16 %v1087, %v1086
      %1092 = vmatprep.subr.bf16.mxu0 0
      %1093 = vmatpush1.bf16.msra.mxu0 %v1088
      %1094 = vmatprep.subr.bf16.mxu0 0
      %1095 = vmatpush1.bf16.msra.mxu0 %v1089
      %1096 = vmatprep.subr.bf16.mxu0 0
      %1097 = vmatpush1.bf16.msra.mxu0 0
      %1098 = vmatprep.subr.bf16.mxu0 0
      %1099 = vmatpush1.bf16.msra.mxu0 0
      %1100 = vmatprep.subr.bf16.mxu0 0
      %1101 = vmatpush1.bf16.msra.mxu0 0
      %1102 = vmatprep.subr.bf16.mxu0 0
      %1103 = vmatpush1.bf16.msra.mxu0 0
      %1104 = vmatprep.subr.bf16.mxu0 0
      %1105 = vmatpush1.bf16.msra.mxu0 0
      %1106 = vmatprep.subr.bf16.mxu0 0
      %1107 = vmatpush1.bf16.msra.mxu0 0
      %1108 = vmatprep.subr.bf16.mxu0 0
      %1109 = vmatpush1.bf16.msra.mxu0 0
      %1110 = vmatprep.subr.bf16.mxu0 0
      %1111 = vmatpush1.bf16.msra.mxu0 0
      %1112 = vmatprep.subr.bf16.mxu0 0
      %1113 = vmatpush1.bf16.msra.mxu0 0
      %1114 = vmatprep.subr.bf16.mxu0 0
      %1115 = vmatpush1.bf16.msra.mxu0 0
      %1116 = vmatprep.subr.bf16.mxu0 0
      %1117 = vmatpush1.bf16.msra.mxu0 0
      %1118 = vmatprep.subr.bf16.mxu0 0
      %1119 = vmatpush1.bf16.msra.mxu0 0
      %1120 = vmatprep.subr.bf16.mxu0 0
      %1121 = vmatpush1.bf16.msra.mxu0 0
      %1122 = vmatprep.subr.bf16.mxu0 0
      %1123 = vmatpush1.bf16.msra.mxu0 0
      %1124 = vmatprep.mubr.bf16.mxu0 0
      %1125 = vmatmul.mubr.bf16.gmra.mrb[0].mxu0 %v1032
      %v1126 = vpop.f32.mrb[0].mxu0
      %v1127 = vadd.f32 0.0, %v1126
      %v1128 = vpop.f32.mrb[0].mxu0
      %v1129 = vpop.f32.mrb[0].mxu0
      %v1130 = vpop.f32.mrb[0].mxu0
      %1131 = vdwg.mxu0
      %v1132 = vadd.f32 %v1006, %v1127
      %v1133 = vld [vmem:[%s8] sm:$0x1]
      %v1135 = vlaneseq
      %v1136 = vshrl.u32 %v1135, 7
      %v1137 = vsub.s32 0, %v1136
      %v1138 = vrot.slane %v1133, %v1137
      %v1140 = vadd.f32 %v1074, %v1138
      %v1141 = vld [vmem:[%s9] sm:$0x1]
      %v1143 = vlaneseq
      %v1144 = vshrl.u32 %v1143, 7
      %v1145 = vsub.s32 0, %v1144
      %v1146 = vrot.slane %v1141, %v1145
      %v1148 = vadd.f32 %v1132, %v1146
      %v1149 = vxor.u32 %v1148, 2147483648
      %v1150 = vmul.f32 %v1149, 1.442695
      %v1151 = vpow.pop %v1150
      %v1152 = vadd.f32 %v1151, 1.0
      %v1153 = vrcp.pop %v1152
      %v1154 = vmul.f32 1.0, %v1153
      %v1155 = vmul.f32 %v1140, %v1154
      %v1156 = vld [vmem:[%s10] sm:$0xf]
      %v1157 = vld [vmem:[%s10 + $0x4] sm:$0xf]
      %v1158 = vld [vmem:[%s10 + $0x8] sm:$0xf]
      %v1159 = vld [vmem:[%s10 + $0xc] sm:$0xf]
      %v1160 = vpack.c.bf16 %v1155, %v1155
      %v1161 = vld [vmem:[%s11] sm:$0x1]
      %v1163 = vlaneseq
      %v1164 = vshrl.u32 %v1163, 7
      %v1165 = vsub.s32 0, %v1164
      %v1166 = vrot.slane %v1161, %v1165
      %v1172 = vunpack.c.l.b16 %v1156
      %v1173 = vunpack.c.l.b16 %v1157
      %v1174 = vunpack.c.l.b16 %v1158
      %v1175 = vunpack.c.l.b16 %v1159
      %v1176 = vpack.c.b16 %v1173, %v1172
      %v1177 = vpack.c.b16 %v1175, %v1174
      %v1181 = vsel %vm723, %v1160, 0
      %1183 = vmatprep.subr.bf16.mxu0 0
      %1184 = vmatpush1.bf16.msra.mxu0 %v1176
      %1185 = vmatprep.subr.bf16.mxu0 0
      %1186 = vmatpush1.bf16.msra.mxu0 %v1177
      %1187 = vmatprep.subr.bf16.mxu0 0
      %1188 = vmatpush1.bf16.msra.mxu0 0
      %1189 = vmatprep.subr.bf16.mxu0 0
      %1190 = vmatpush1.bf16.msra.mxu0 0
      %1191 = vmatprep.subr.bf16.mxu0 0
      %1192 = vmatpush1.bf16.msra.mxu0 0
      %1193 = vmatprep.subr.bf16.mxu0 0
      %1194 = vmatpush1.bf16.msra.mxu0 0
      %1195 = vmatprep.subr.bf16.mxu0 0
      %1196 = vmatpush1.bf16.msra.mxu0 0
      %1197 = vmatprep.subr.bf16.mxu0 0
      %1198 = vmatpush1.bf16.msra.mxu0 0
      %1199 = vmatprep.subr.bf16.mxu0 0
      %1200 = vmatpush1.bf16.msra.mxu0 0
      %1201 = vmatprep.subr.bf16.mxu0 0
      %1202 = vmatpush1.bf16.msra.mxu0 0
      %1203 = vmatprep.subr.bf16.mxu0 0
      %1204 = vmatpush1.bf16.msra.mxu0 0
      %1205 = vmatprep.subr.bf16.mxu0 0
      %1206 = vmatpush1.bf16.msra.mxu0 0
      %1207 = vmatprep.subr.bf16.mxu0 0
      %1208 = vmatpush1.bf16.msra.mxu0 0
      %1209 = vmatprep.subr.bf16.mxu0 0
      %1210 = vmatpush1.bf16.msra.mxu0 0
      %1211 = vmatprep.subr.bf16.mxu0 0
      %1212 = vmatpush1.bf16.msra.mxu0 0
      %1213 = vmatprep.subr.bf16.mxu0 0
      %1214 = vmatpush1.bf16.msra.mxu0 0
      %1215 = vmatprep.mubr.bf16.mxu0 0
      %1216 = vmatmul.mubr.bf16.gmra.mrb[0].mxu0 %v1181
      %v1217 = vpop.f32.mrb[0].mxu0
      %v1218 = vadd.f32 %v1166, %v1217
      %v1219 = vpop.f32.mrb[0].mxu0
      %v1220 = vpop.f32.mrb[0].mxu0
      %v1221 = vpop.f32.mrb[0].mxu0
      %1222 = vdwg.mxu0
      %v1223 = vadd.f32 %v1218, %v664
      %v1224 = vmul.f32 %v1223, 0.70710677
      %v1225 = vpack.c.bf16 %v1224, %v1224
      %v1242 = vunpack.c.l.b16 %v665
      %v1243 = vunpack.c.l.b16 %v666
      %v1244 = vunpack.c.l.b16 %v667
      %v1245 = vunpack.c.l.b16 %v668
      %v1246 = vunpack.c.l.b16 %v669
      %v1247 = vunpack.c.l.b16 %v670
      %v1248 = vunpack.c.l.b16 %v671
      %v1249 = vunpack.c.l.b16 %v672
      %v1250 = vunpack.c.l.b16 %v673
      %v1251 = vunpack.c.l.b16 %v674
      %v1252 = vunpack.c.l.b16 %v675
      %v1253 = vunpack.c.l.b16 %v676
      %v1254 = vunpack.c.l.b16 %v677
      %v1255 = vunpack.c.l.b16 %v678
      %v1256 = vunpack.c.l.b16 %v679
      %v1257 = vunpack.c.l.b16 %v680
      %v1258 = vpack.c.b16 %v1243, %v1242
      %v1259 = vpack.c.b16 %v1245, %v1244
      %v1260 = vpack.c.b16 %v1247, %v1246
      %v1261 = vpack.c.b16 %v1249, %v1248
      %v1262 = vpack.c.b16 %v1251, %v1250
      %v1263 = vpack.c.b16 %v1253, %v1252
      %v1264 = vpack.c.b16 %v1255, %v1254
      %v1265 = vpack.c.b16 %v1257, %v1256
      %v1267 = vsel %vm723, %v1225, 0
      %v1270 = vsel %vm723, %v1258, 0
      %v1273 = vsel %vm723, %v1259, 0
      %v1276 = vsel %vm723, %v1260, 0
      %v1279 = vsel %vm723, %v1261, 0
      %v1282 = vsel %vm723, %v1262, 0
      %v1285 = vsel %vm723, %v1263, 0
      %v1288 = vsel %vm723, %v1264, 0
      %v1291 = vsel %vm723, %v1265, 0
      %1293 = vmatprep.subr.bf16.mxu0 0
      %1294 = vmatpush1.bf16.xpose.msra.mxu0 %v1270
      %1295 = vmatprep.subr.bf16.mxu0 0
      %1296 = vmatpush1.bf16.xpose.msra.mxu0 %v1273
      %1297 = vmatprep.subr.bf16.mxu0 0
      %1298 = vmatpush1.bf16.xpose.msra.mxu0 %v1276
      %1299 = vmatprep.subr.bf16.mxu0 0
      %1300 = vmatpush1.bf16.xpose.msra.mxu0 %v1279
      %1301 = vmatprep.subr.bf16.mxu0 0
      %1302 = vmatpush1.bf16.xpose.msra.mxu0 %v1282
      %1303 = vmatprep.subr.bf16.mxu0 0
      %1304 = vmatpush1.bf16.xpose.msra.mxu0 %v1285
      %1305 = vmatprep.subr.bf16.mxu0 0
      %1306 = vmatpush1.bf16.xpose.msra.mxu0 %v1288
      %1307 = vmatprep.subr.bf16.mxu0 0
      %1308 = vmatpush1.bf16.xpose.msra.mxu0 %v1291
      %1309 = vmatprep.subr.bf16.mxu0 0
      %1310 = vmatpush1.bf16.xpose.msra.mxu0 0
      %1311 = vmatprep.subr.bf16.mxu0 0
      %1312 = vmatpush1.bf16.xpose.msra.mxu0 0
      %1313 = vmatprep.subr.bf16.mxu0 0
      %1314 = vmatpush1.bf16.xpose.msra.mxu0 0
      %1315 = vmatprep.subr.bf16.mxu0 0
      %1316 = vmatpush1.bf16.xpose.msra.mxu0 0
      %1317 = vmatprep.subr.bf16.mxu0 0
      %1318 = vmatpush1.bf16.xpose.msra.mxu0 0
      %1319 = vmatprep.subr.bf16.mxu0 0
      %1320 = vmatpush1.bf16.xpose.msra.mxu0 0
      %1321 = vmatprep.subr.bf16.mxu0 0
      %1322 = vmatpush1.bf16.xpose.msra.mxu0 0
      %1323 = vmatprep.subr.bf16.mxu0 0
      %1324 = vmatpush1.bf16.xpose.msra.mxu0 0
      %1325 = vmatprep.mubr.bf16.mxu0 0
      %1326 = vmatmul.mubr.bf16.gmra.mrb[0].mxu0 %v1267
      %v1327 = vpop.f32.mrb[0].mxu0
      %v1328 = vadd.f32 0.0, %v1327
      %v1329 = vpop.f32.mrb[0].mxu0
      %v1330 = vpop.f32.mrb[0].mxu0
      %v1331 = vpop.f32.mrb[0].mxu0
      %1332 = vdwg.mxu0
      %v1333 = vsel %vm698, 1, 0
      %v1334 = vlaneseq
      %v1335 = vshrl.u32 %v1334, 7
      %v1336 = vsub.s32 0, %v1335
      %v1337 = vrot.slane %v1333, %v1336
      %vm1338 = vcmp.eq.s32.totalorder %v1337, 1
      %v1339 = vsel %vm1338, %v1328, -1e+09
      %vm1340 = vcmask 1046528
      %v1341 = vsel %vm1340, %v1339, -inf
      %1342 = vmax.xlane.f32.xlu0 %v1341
      %v1343 = vpop.xlane.xlu0 %1342
      %v1344 = vsub.f32 %v1339, %v1343
      %v1345 = vmul.f32 %v1344, 1.442695
      %v1346 = vpow.pop %v1345
      %v1347 = vsel %vm1340, %v1346, 0.0
      %1348 = vadd.xlane.f32.xlu0 %v1347
      %v1349 = vpop.xlane.xlu0 %1348
      %v1350 = vrcp.pop %v1349
      %v1351 = vmul.f32 %v1346, %v1350
      %v1352 = vpack.c.bf16 %v1351, %v1351
      %v1369 = vunpack.c.l.b16 %v681
      %v1370 = vunpack.c.l.b16 %v682
      %v1371 = vunpack.c.l.b16 %v683
      %v1372 = vunpack.c.l.b16 %v684
      %v1373 = vunpack.c.l.b16 %v685
      %v1374 = vunpack.c.l.b16 %v686
      %v1375 = vunpack.c.l.b16 %v687
      %v1376 = vunpack.c.l.b16 %v688
      %v1377 = vunpack.c.l.b16 %v689
      %v1378 = vunpack.c.l.b16 %v690
      %v1379 = vunpack.c.l.b16 %v691
      %v1380 = vunpack.c.l.b16 %v692
      %v1381 = vunpack.c.l.b16 %v693
      %v1382 = vunpack.c.l.b16 %v694
      %v1383 = vunpack.c.l.b16 %v695
      %v1384 = vunpack.c.l.b16 %v696
      %v1385 = vpack.c.b16 %v1370, %v1369
      %v1386 = vpack.c.b16 %v1372, %v1371
      %v1387 = vpack.c.b16 %v1374, %v1373
      %v1388 = vpack.c.b16 %v1376, %v1375
      %v1389 = vpack.c.b16 %v1378, %v1377
      %v1390 = vpack.c.b16 %v1380, %v1379
      %v1391 = vpack.c.b16 %v1382, %v1381
      %v1392 = vpack.c.b16 %v1384, %v1383
      %1401 = vmatprep.subr.bf16.mxu0 0
      %1402 = vmatpush1.bf16.msra.mxu0 %v1385
      %1403 = vmatprep.subr.bf16.mxu0 0
      %1404 = vmatpush1.bf16.msra.mxu0 %v1386
      %1405 = vmatprep.subr.bf16.mxu0 0
      %1406 = vmatpush1.bf16.msra.mxu0 %v1387
      %1407 = vmatprep.subr.bf16.mxu0 0
      %1408 = vmatpush1.bf16.msra.mxu0 %v1388
      %1409 = vmatprep.subr.bf16.mxu0 0
      %1410 = vmatpush1.bf16.msra.mxu0 %v1389
      %1411 = vmatprep.subr.bf16.mxu0 0
      %1412 = vmatpush1.bf16.msra.mxu0 %v1390
      %1413 = vmatprep.subr.bf16.mxu0 0
      %1414 = vmatpush1.bf16.msra.mxu0 %v1391
      %1415 = vmatprep.subr.bf16.mxu0 0
      %1416 = vmatpush1.bf16.msra.mxu0 %v1392
      %1417 = vmatprep.subr.bf16.mxu0 0
      %1418 = vmatpush1.bf16.msra.mxu0 0
      %1419 = vmatprep.subr.bf16.mxu0 0
      %1420 = vmatpush1.bf16.msra.mxu0 0
      %1421 = vmatprep.subr.bf16.mxu0 0
      %1422 = vmatpush1.bf16.msra.mxu0 0
      %1423 = vmatprep.subr.bf16.mxu0 0
      %1424 = vmatpush1.bf16.msra.mxu0 0
      %1425 = vmatprep.subr.bf16.mxu0 0
      %1426 = vmatpush1.bf16.msra.mxu0 0
      %1427 = vmatprep.subr.bf16.mxu0 0
      %1428 = vmatpush1.bf16.msra.mxu0 0
      %1429 = vmatprep.subr.bf16.mxu0 0
      %1430 = vmatpush1.bf16.msra.mxu0 0
      %1431 = vmatprep.subr.bf16.mxu0 0
      %1432 = vmatpush1.bf16.msra.mxu0 0
      %1433 = vmatprep.mubr.bf16.mxu0 0
      %1434 = vmatmul.mubr.bf16.gmra.mrb[0].mxu0 %v1352
      %v1435 = vpop.f32.mrb[0].mxu0
      %v1436 = vadd.f32 0.0, %v1435
      %v1437 = vpop.f32.mrb[0].mxu0
      %v1438 = vpop.f32.mrb[0].mxu0
      %v1439 = vpop.f32.mrb[0].mxu0
      %1440 = vdwg.mxu0
      %v1441 = vld [vmem:[%s12] sm:$0xf]
      %v1442 = vld [vmem:[%s12 + $0x4] sm:$0xf]
      %v1443 = vld [vmem:[%s12 + $0x8] sm:$0xf]
      %v1444 = vld [vmem:[%s12 + $0xc] sm:$0xf]
      %v1445 = vpack.c.bf16 %v1436, %v1436
      %v1446 = vld [vmem:[%s13] sm:$0x1]
      %v1448 = vlaneseq
      %v1449 = vshrl.u32 %v1448, 7
      %v1450 = vsub.s32 0, %v1449
      %v1451 = vrot.slane %v1446, %v1450
      %v1457 = vunpack.c.l.b16 %v1441
      %v1458 = vunpack.c.l.b16 %v1442
      %v1459 = vunpack.c.l.b16 %v1443
      %v1460 = vunpack.c.l.b16 %v1444
      %v1461 = vpack.c.b16 %v1458, %v1457
      %v1462 = vpack.c.b16 %v1460, %v1459
      %v1466 = vsel %vm723, %v1445, 0
      %1468 = vmatprep.subr.bf16.mxu0 0
      %1469 = vmatpush1.bf16.msra.mxu0 %v1461
      %1470 = vmatprep.subr.bf16.mxu0 0
      %1471 = vmatpush1.bf16.msra.mxu0 %v1462
      %1472 = vmatprep.subr.bf16.mxu0 0
      %1473 = vmatpush1.bf16.msra.mxu0 0
      %1474 = vmatprep.subr.bf16.mxu0 0
      %1475 = vmatpush1.bf16.msra.mxu0 0
      %1476 = vmatprep.subr.bf16.mxu0 0
      %1477 = vmatpush1.bf16.msra.mxu0 0
      %1478 = vmatprep.subr.bf16.mxu0 0
      %1479 = vmatpush1.bf16.msra.mxu0 0
      %1480 = vmatprep.subr.bf16.mxu0 0
      %1481 = vmatpush1.bf16.msra.mxu0 0
      %1482 = vmatprep.subr.bf16.mxu0 0
      %1483 = vmatpush1.bf16.msra.mxu0 0
      %1484 = vmatprep.subr.bf16.mxu0 0
      %1485 = vmatpush1.bf16.msra.mxu0 0
      %1486 = vmatprep.subr.bf16.mxu0 0
      %1487 = vmatpush1.bf16.msra.mxu0 0
      %1488 = vmatprep.subr.bf16.mxu0 0
      %1489 = vmatpush1.bf16.msra.mxu0 0
      %1490 = vmatprep.subr.bf16.mxu0 0
      %1491 = vmatpush1.bf16.msra.mxu0 0
      %1492 = vmatprep.subr.bf16.mxu0 0
      %1493 = vmatpush1.bf16.msra.mxu0 0
      %1494 = vmatprep.subr.bf16.mxu0 0
      %1495 = vmatpush1.bf16.msra.mxu0 0
      %1496 = vmatprep.subr.bf16.mxu0 0
      %1497 = vmatpush1.bf16.msra.mxu0 0
      %1498 = vmatprep.subr.bf16.mxu0 0
      %1499 = vmatpush1.bf16.msra.mxu0 0
      %1500 = vmatprep.mubr.bf16.mxu0 0
      %1501 = vmatmul.mubr.bf16.gmra.mrb[0].mxu0 %v1466
      %v1502 = vpop.f32.mrb[0].mxu0
      %v1503 = vadd.f32 %v1451, %v1502
      %v1504 = vpop.f32.mrb[0].mxu0
      %v1505 = vpop.f32.mrb[0].mxu0
      %v1506 = vpop.f32.mrb[0].mxu0
      %1507 = vdwg.mxu0
      %v1508 = vadd.f32 %v1155, %v1503
      %v1509 = vmul.f32 %v1508, 0.70710677
      %v1510 = vadd.f32 %v1509, %v762
      %v1511 = vmul.f32 %v1510, 0.70710677
      %v1513 = vrot.slane %v1511, 6
      %v1515 = vsel %vm770, 0.0, %v1513
      %s1516 = scalar_lea.vmem %s6, 48
      %v1517 = vld [vmem:[%s1516] sm:$0xf]
      %v1518 = vld [vmem:[%s1516 + $0x4] sm:$0xf]
      %v1519 = vld [vmem:[%s1516 + $0x8] sm:$0xf]
      %v1520 = vld [vmem:[%s1516 + $0xc] sm:$0xf]
      %v1521 = vpack.c.bf16 %v1515, %v1515
      %s1522 = scalar_lea.vmem %s7, 48
      %v1523 = vld [vmem:[%s1522] sm:$0xf]
      %v1524 = vld [vmem:[%s1522 + $0x4] sm:$0xf]
      %v1525 = vld [vmem:[%s1522 + $0x8] sm:$0xf]
      %v1526 = vld [vmem:[%s1522 + $0xc] sm:$0xf]
      %s1527 = scalar_lea.vmem %s6, 64
      %v1528 = vld [vmem:[%s1527] sm:$0xf]
      %v1529 = vld [vmem:[%s1527 + $0x4] sm:$0xf]
      %v1530 = vld [vmem:[%s1527 + $0x8] sm:$0xf]
      %v1531 = vld [vmem:[%s1527 + $0xc] sm:$0xf]
      %v1533 = vshrl.u32 %v1521, 16
      %v1535 = vshll.u32 %v1521, 16
      %v1537 = vrot.slane %v1535, 1
      %v1538 = vor.u32 %v1533, %v1537
      %v1543 = vunpack.c.l.b16 %v1528
      %v1544 = vunpack.c.l.b16 %v1529
      %v1545 = vunpack.c.l.b16 %v1530
      %v1546 = vunpack.c.l.b16 %v1531
      %v1547 = vpack.c.b16 %v1544, %v1543
      %v1548 = vpack.c.b16 %v1546, %v1545
      %v1552 = vsel %vm723, %v1538, 0
      %1554 = vmatprep.subr.bf16.mxu0 0
      %1555 = vmatpush1.bf16.msra.mxu0 %v1547
      %1556 = vmatprep.subr.bf16.mxu0 0
      %1557 = vmatpush1.bf16.msra.mxu0 %v1548
      %1558 = vmatprep.subr.bf16.mxu0 0
      %1559 = vmatpush1.bf16.msra.mxu0 0
      %1560 = vmatprep.subr.bf16.mxu0 0
      %1561 = vmatpush1.bf16.msra.mxu0 0
      %1562 = vmatprep.subr.bf16.mxu0 0
      %1563 = vmatpush1.bf16.msra.mxu0 0
      %1564 = vmatprep.subr.bf16.mxu0 0
      %1565 = vmatpush1.bf16.msra.mxu0 0
      %1566 = vmatprep.subr.bf16.mxu0 0
      %1567 = vmatpush1.bf16.msra.mxu0 0
      %1568 = vmatprep.subr.bf16.mxu0 0
      %1569 = vmatpush1.bf16.msra.mxu0 0
      %1570 = vmatprep.subr.bf16.mxu0 0
      %1571 = vmatpush1.bf16.msra.mxu0 0
      %1572 = vmatprep.subr.bf16.mxu0 0
      %1573 = vmatpush1.bf16.msra.mxu0 0
      %1574 = vmatprep.subr.bf16.mxu0 0
      %1575 = vmatpush1.bf16.msra.mxu0 0
      %1576 = vmatprep.subr.bf16.mxu0 0
      %1577 = vmatpush1.bf16.msra.mxu0 0
      %1578 = vmatprep.subr.bf16.mxu0 0
      %1579 = vmatpush1.bf16.msra.mxu0 0
      %1580 = vmatprep.subr.bf16.mxu0 0
      %1581 = vmatpush1.bf16.msra.mxu0 0
      %1582 = vmatprep.subr.bf16.mxu0 0
      %1583 = vmatpush1.bf16.msra.mxu0 0
      %1584 = vmatprep.subr.bf16.mxu0 0
      %1585 = vmatpush1.bf16.msra.mxu0 0
      %1586 = vmatprep.mubr.bf16.mxu0 0
      %1587 = vmatmul.mubr.bf16.gmra.mrb[0].mxu0 %v1552
      %v1588 = vpop.f32.mrb[0].mxu0
      %v1589 = vadd.f32 0.0, %v1588
      %v1590 = vpop.f32.mrb[0].mxu0
      %v1591 = vpop.f32.mrb[0].mxu0
      %v1592 = vpop.f32.mrb[0].mxu0
      %1593 = vdwg.mxu0
      %v1598 = vunpack.c.l.b16 %v1517
      %v1599 = vunpack.c.l.b16 %v1518
      %v1600 = vunpack.c.l.b16 %v1519
      %v1601 = vunpack.c.l.b16 %v1520
      %v1602 = vpack.c.b16 %v1599, %v1598
      %v1603 = vpack.c.b16 %v1601, %v1600
      %v1606 = vsel %vm723, %v1521, 0
      %1608 = vmatprep.subr.bf16.mxu0 0
      %1609 = vmatpush1.bf16.msra.mxu0 %v1602
      %1610 = vmatprep.subr.bf16.mxu0 0
      %1611 = vmatpush1.bf16.msra.mxu0 %v1603
      %1612 = vmatprep.subr.bf16.mxu0 0
      %1613 = vmatpush1.bf16.msra.mxu0 0
      %1614 = vmatprep.subr.bf16.mxu0 0
      %1615 = vmatpush1.bf16.msra.mxu0 0
      %1616 = vmatprep.subr.bf16.mxu0 0
      %1617 = vmatpush1.bf16.msra.mxu0 0
      %1618 = vmatprep.subr.bf16.mxu0 0
      %1619 = vmatpush1.bf16.msra.mxu0 0
      %1620 = vmatprep.subr.bf16.mxu0 0
      %1621 = vmatpush1.bf16.msra.mxu0 0
      %1622 = vmatprep.subr.bf16.mxu0 0
      %1623 = vmatpush1.bf16.msra.mxu0 0
      %1624 = vmatprep.subr.bf16.mxu0 0
      %1625 = vmatpush1.bf16.msra.mxu0 0
      %1626 = vmatprep.subr.bf16.mxu0 0
      %1627 = vmatpush1.bf16.msra.mxu0 0
      %1628 = vmatprep.subr.bf16.mxu0 0
      %1629 = vmatpush1.bf16.msra.mxu0 0
      %1630 = vmatprep.subr.bf16.mxu0 0
      %1631 = vmatpush1.bf16.msra.mxu0 0
      %1632 = vmatprep.subr.bf16.mxu0 0
      %1633 = vmatpush1.bf16.msra.mxu0 0
      %1634 = vmatprep.subr.bf16.mxu0 0
      %1635 = vmatpush1.bf16.msra.mxu0 0
      %1636 = vmatprep.subr.bf16.mxu0 0
      %1637 = vmatpush1.bf16.msra.mxu0 0
      %1638 = vmatprep.subr.bf16.mxu0 0
      %1639 = vmatpush1.bf16.msra.mxu0 0
      %1640 = vmatprep.mubr.bf16.mxu0 0
      %1641 = vmatmul.mubr.bf16.gmra.mrb[0].mxu0 %v1606
      %v1642 = vpop.f32.mrb[0].mxu0
      %v1643 = vadd.f32 %v1589, %v1642
      %v1644 = vpop.f32.mrb[0].mxu0
      %v1645 = vpop.f32.mrb[0].mxu0
      %v1646 = vpop.f32.mrb[0].mxu0
      %1647 = vdwg.mxu0
      %s1648 = scalar_lea.vmem %s7, 64
      %v1649 = vld [vmem:[%s1648] sm:$0xf]
      %v1650 = vld [vmem:[%s1648 + $0x4] sm:$0xf]
      %v1651 = vld [vmem:[%s1648 + $0x8] sm:$0xf]
      %v1652 = vld [vmem:[%s1648 + $0xc] sm:$0xf]
      %v1657 = vunpack.c.l.b16 %v1649
      %v1658 = vunpack.c.l.b16 %v1650
      %v1659 = vunpack.c.l.b16 %v1651
      %v1660 = vunpack.c.l.b16 %v1652
      %v1661 = vpack.c.b16 %v1658, %v1657
      %v1662 = vpack.c.b16 %v1660, %v1659
      %1665 = vmatprep.subr.bf16.mxu0 0
      %1666 = vmatpush1.bf16.msra.mxu0 %v1661
      %1667 = vmatprep.subr.bf16.mxu0 0
      %1668 = vmatpush1.bf16.msra.mxu0 %v1662
      %1669 = vmatprep.subr.bf16.mxu0 0
      %1670 = vmatpush1.bf16.msra.mxu0 0
      %1671 = vmatprep.subr.bf16.mxu0 0
      %1672 = vmatpush1.bf16.msra.mxu0 0
      %1673 = vmatprep.subr.bf16.mxu0 0
      %1674 = vmatpush1.bf16.msra.mxu0 0
      %1675 = vmatprep.subr.bf16.mxu0 0
      %1676 = vmatpush1.bf16.msra.mxu0 0
      %1677 = vmatprep.subr.bf16.mxu0 0
      %1678 = vmatpush1.bf16.msra.mxu0 0
      %1679 = vmatprep.subr.bf16.mxu0 0
      %1680 = vmatpush1.bf16.msra.mxu0 0
      %1681 = vmatprep.subr.bf16.mxu0 0
      %1682 = vmatpush1.bf16.msra.mxu0 0
      %1683 = vmatprep.subr.bf16.mxu0 0
      %1684 = vmatpush1.bf16.msra.mxu0 0
      %1685 = vmatprep.subr.bf16.mxu0 0
      %1686 = vmatpush1.bf16.msra.mxu0 0
      %1687 = vmatprep.subr.bf16.mxu0 0
      %1688 = vmatpush1.bf16.msra.mxu0 0
      %1689 = vmatprep.subr.bf16.mxu0 0
      %1690 = vmatpush1.bf16.msra.mxu0 0
      %1691 = vmatprep.subr.bf16.mxu0 0
      %1692 = vmatpush1.bf16.msra.mxu0 0
      %1693 = vmatprep.subr.bf16.mxu0 0
      %1694 = vmatpush1.bf16.msra.mxu0 0
      %1695 = vmatprep.subr.bf16.mxu0 0
      %1696 = vmatpush1.bf16.msra.mxu0 0
      %1697 = vmatprep.mubr.bf16.mxu0 0
      %1698 = vmatmul.mubr.bf16.gmra.mrb[0].mxu0 %v1552
      %v1699 = vpop.f32.mrb[0].mxu0
      %v1700 = vadd.f32 0.0, %v1699
      %v1701 = vpop.f32.mrb[0].mxu0
      %v1702 = vpop.f32.mrb[0].mxu0
      %v1703 = vpop.f32.mrb[0].mxu0
      %1704 = vdwg.mxu0
      %v1709 = vunpack.c.l.b16 %v1523
      %v1710 = vunpack.c.l.b16 %v1524
      %v1711 = vunpack.c.l.b16 %v1525
      %v1712 = vunpack.c.l.b16 %v1526
      %v1713 = vpack.c.b16 %v1710, %v1709
      %v1714 = vpack.c.b16 %v1712, %v1711
      %1717 = vmatprep.subr.bf16.mxu0 0
      %1718 = vmatpush1.bf16.msra.mxu0 %v1713
      %1719 = vmatprep.subr.bf16.mxu0 0
      %1720 = vmatpush1.bf16.msra.mxu0 %v1714
      %1721 = vmatprep.subr.bf16.mxu0 0
      %1722 = vmatpush1.bf16.msra.mxu0 0
      %1723 = vmatprep.subr.bf16.mxu0 0
      %1724 = vmatpush1.bf16.msra.mxu0 0
      %1725 = vmatprep.subr.bf16.mxu0 0
      %1726 = vmatpush1.bf16.msra.mxu0 0
      %1727 = vmatprep.subr.bf16.mxu0 0
      %1728 = vmatpush1.bf16.msra.mxu0 0
      %1729 = vmatprep.subr.bf16.mxu0 0
      %1730 = vmatpush1.bf16.msra.mxu0 0
      %1731 = vmatprep.subr.bf16.mxu0 0
      %1732 = vmatpush1.bf16.msra.mxu0 0
      %1733 = vmatprep.subr.bf16.mxu0 0
      %1734 = vmatpush1.bf16.msra.mxu0 0
      %1735 = vmatprep.subr.bf16.mxu0 0
      %1736 = vmatpush1.bf16.msra.mxu0 0
      %1737 = vmatprep.subr.bf16.mxu0 0
      %1738 = vmatpush1.bf16.msra.mxu0 0
      %1739 = vmatprep.subr.bf16.mxu0 0
      %1740 = vmatpush1.bf16.msra.mxu0 0
      %1741 = vmatprep.subr.bf16.mxu0 0
      %1742 = vmatpush1.bf16.msra.mxu0 0
      %1743 = vmatprep.subr.bf16.mxu0 0
      %1744 = vmatpush1.bf16.msra.mxu0 0
      %1745 = vmatprep.subr.bf16.mxu0 0
      %1746 = vmatpush1.bf16.msra.mxu0 0
      %1747 = vmatprep.subr.bf16.mxu0 0
      %1748 = vmatpush1.bf16.msra.mxu0 0
      %1749 = vmatprep.mubr.bf16.mxu0 0
      %1750 = vmatmul.mubr.bf16.gmra.mrb[0].mxu0 %v1606
      %v1751 = vpop.f32.mrb[0].mxu0
      %v1752 = vadd.f32 %v1700, %v1751
      %v1753 = vpop.f32.mrb[0].mxu0
      %v1754 = vpop.f32.mrb[0].mxu0
      %v1755 = vpop.f32.mrb[0].mxu0
      %1756 = vdwg.mxu0
      %s1757 = scalar_lea.vmem %s6, 80
      %v1758 = vld [vmem:[%s1757] sm:$0xf]
      %v1759 = vld [vmem:[%s1757 + $0x4] sm:$0xf]
      %v1760 = vld [vmem:[%s1757 + $0x8] sm:$0xf]
      %v1761 = vld [vmem:[%s1757 + $0xc] sm:$0xf]
      %v1762 = vpack.c.bf16 %v1513, %v1515
      %v1764 = vrot.slane %v1762, 1
      %v1769 = vunpack.c.l.b16 %v1758
      %v1770 = vunpack.c.l.b16 %v1759
      %v1771 = vunpack.c.l.b16 %v1760
      %v1772 = vunpack.c.l.b16 %v1761
      %v1773 = vpack.c.b16 %v1770, %v1769
      %v1774 = vpack.c.b16 %v1772, %v1771
      %v1778 = vsel %vm723, %v1764, 0
      %1780 = vmatprep.subr.bf16.mxu0 0
      %1781 = vmatpush1.bf16.msra.mxu0 %v1773
      %1782 = vmatprep.subr.bf16.mxu0 0
      %1783 = vmatpush1.bf16.msra.mxu0 %v1774
      %1784 = vmatprep.subr.bf16.mxu0 0
      %1785 = vmatpush1.bf16.msra.mxu0 0
      %1786 = vmatprep.subr.bf16.mxu0 0
      %1787 = vmatpush1.bf16.msra.mxu0 0
      %1788 = vmatprep.subr.bf16.mxu0 0
      %1789 = vmatpush1.bf16.msra.mxu0 0
      %1790 = vmatprep.subr.bf16.mxu0 0
      %1791 = vmatpush1.bf16.msra.mxu0 0
      %1792 = vmatprep.subr.bf16.mxu0 0
      %1793 = vmatpush1.bf16.msra.mxu0 0
      %1794 = vmatprep.subr.bf16.mxu0 0
      %1795 = vmatpush1.bf16.msra.mxu0 0
      %1796 = vmatprep.subr.bf16.mxu0 0
      %1797 = vmatpush1.bf16.msra.mxu0 0
      %1798 = vmatprep.subr.bf16.mxu0 0
      %1799 = vmatpush1.bf16.msra.mxu0 0
      %1800 = vmatprep.subr.bf16.mxu0 0
      %1801 = vmatpush1.bf16.msra.mxu0 0
      %1802 = vmatprep.subr.bf16.mxu0 0
      %1803 = vmatpush1.bf16.msra.mxu0 0
      %1804 = vmatprep.subr.bf16.mxu0 0
      %1805 = vmatpush1.bf16.msra.mxu0 0
      %1806 = vmatprep.subr.bf16.mxu0 0
      %1807 = vmatpush1.bf16.msra.mxu0 0
      %1808 = vmatprep.subr.bf16.mxu0 0
      %1809 = vmatpush1.bf16.msra.mxu0 0
      %1810 = vmatprep.subr.bf16.mxu0 0
      %1811 = vmatpush1.bf16.msra.mxu0 0
      %1812 = vmatprep.mubr.bf16.mxu0 0
      %1813 = vmatmul.mubr.bf16.gmra.mrb[0].mxu0 %v1778
      %v1814 = vpop.f32.mrb[0].mxu0
      %v1815 = vadd.f32 0.0, %v1814
      %v1816 = vpop.f32.mrb[0].mxu0
      %v1817 = vpop.f32.mrb[0].mxu0
      %v1818 = vpop.f32.mrb[0].mxu0
      %1819 = vdwg.mxu0
      %v1820 = vadd.f32 %v1643, %v1815
      %s1821 = scalar_lea.vmem %s7, 80
      %v1822 = vld [vmem:[%s1821] sm:$0xf]
      %v1823 = vld [vmem:[%s1821 + $0x4] sm:$0xf]
      %v1824 = vld [vmem:[%s1821 + $0x8] sm:$0xf]
      %v1825 = vld [vmem:[%s1821 + $0xc] sm:$0xf]
      %v1830 = vunpack.c.l.b16 %v1822
      %v1831 = vunpack.c.l.b16 %v1823
      %v1832 = vunpack.c.l.b16 %v1824
      %v1833 = vunpack.c.l.b16 %v1825
      %v1834 = vpack.c.b16 %v1831, %v1830
      %v1835 = vpack.c.b16 %v1833, %v1832
      %1838 = vmatprep.subr.bf16.mxu0 0
      %1839 = vmatpush1.bf16.msra.mxu0 %v1834
      %1840 = vmatprep.subr.bf16.mxu0 0
      %1841 = vmatpush1.bf16.msra.mxu0 %v1835
      %1842 = vmatprep.subr.bf16.mxu0 0
      %1843 = vmatpush1.bf16.msra.mxu0 0
      %1844 = vmatprep.subr.bf16.mxu0 0
      %1845 = vmatpush1.bf16.msra.mxu0 0
      %1846 = vmatprep.subr.bf16.mxu0 0
      %1847 = vmatpush1.bf16.msra.mxu0 0
      %1848 = vmatprep.subr.bf16.mxu0 0
      %1849 = vmatpush1.bf16.msra.mxu0 0
      %1850 = vmatprep.subr.bf16.mxu0 0
      %1851 = vmatpush1.bf16.msra.mxu0 0
      %1852 = vmatprep.subr.bf16.mxu0 0
      %1853 = vmatpush1.bf16.msra.mxu0 0
      %1854 = vmatprep.subr.bf16.mxu0 0
      %1855 = vmatpush1.bf16.msra.mxu0 0
      %1856 = vmatprep.subr.bf16.mxu0 0
      %1857 = vmatpush1.bf16.msra.mxu0 0
      %1858 = vmatprep.subr.bf16.mxu0 0
      %1859 = vmatpush1.bf16.msra.mxu0 0
      %1860 = vmatprep.subr.bf16.mxu0 0
      %1861 = vmatpush1.bf16.msra.mxu0 0
      %1862 = vmatprep.subr.bf16.mxu0 0
      %1863 = vmatpush1.bf16.msra.mxu0 0
      %1864 = vmatprep.subr.bf16.mxu0 0
      %1865 = vmatpush1.bf16.msra.mxu0 0
      %1866 = vmatprep.subr.bf16.mxu0 0
      %1867 = vmatpush1.bf16.msra.mxu0 0
      %1868 = vmatprep.subr.bf16.mxu0 0
      %1869 = vmatpush1.bf16.msra.mxu0 0
      %1870 = vmatprep.mubr.bf16.mxu0 0
      %1871 = vmatmul.mubr.bf16.gmra.mrb[0].mxu0 %v1778
      %v1872 = vpop.f32.mrb[0].mxu0
      %v1873 = vadd.f32 0.0, %v1872
      %v1874 = vpop.f32.mrb[0].mxu0
      %v1875 = vpop.f32.mrb[0].mxu0
      %v1876 = vpop.f32.mrb[0].mxu0
      %1877 = vdwg.mxu0
      %v1878 = vadd.f32 %v1752, %v1873
      %s1879 = scalar_lea.vmem %s8, 1
      %v1880 = vld [vmem:[%s1879] sm:$0x1]
      %v1882 = vlaneseq
      %v1883 = vshrl.u32 %v1882, 7
      %v1884 = vsub.s32 0, %v1883
      %v1885 = vrot.slane %v1880, %v1884
      %v1887 = vadd.f32 %v1820, %v1885
      %s1888 = scalar_lea.vmem %s9, 1
      %v1889 = vld [vmem:[%s1888] sm:$0x1]
      %v1891 = vlaneseq
      %v1892 = vshrl.u32 %v1891, 7
      %v1893 = vsub.s32 0, %v1892
      %v1894 = vrot.slane %v1889, %v1893
      %v1896 = vadd.f32 %v1878, %v1894
      %v1897 = vxor.u32 %v1896, 2147483648
      %v1898 = vmul.f32 %v1897, 1.442695
      %v1899 = vpow.pop %v1898
      %v1900 = vadd.f32 %v1899, 1.0
      %v1901 = vrcp.pop %v1900
      %v1902 = vmul.f32 1.0, %v1901
      %v1903 = vmul.f32 %v1887, %v1902
      %v1904 = vpack.c.bf16 %v1903, %v1903
      %v1906 = vsel %vm723, %v1904, 0
      %1908 = vmatprep.subr.bf16.mxu0 0
      %1909 = vmatpush1.bf16.msra.mxu0 %v1176
      %1910 = vmatprep.subr.bf16.mxu0 0
      %1911 = vmatpush1.bf16.msra.mxu0 %v1177
      %1912 = vmatprep.subr.bf16.mxu0 0
      %1913 = vmatpush1.bf16.msra.mxu0 0
      %1914 = vmatprep.subr.bf16.mxu0 0
      %1915 = vmatpush1.bf16.msra.mxu0 0
      %1916 = vmatprep.subr.bf16.mxu0 0
      %1917 = vmatpush1.bf16.msra.mxu0 0
      %1918 = vmatprep.subr.bf16.mxu0 0
      %1919 = vmatpush1.bf16.msra.mxu0 0
      %1920 = vmatprep.subr.bf16.mxu0 0
      %1921 = vmatpush1.bf16.msra.mxu0 0
      %1922 = vmatprep.subr.bf16.mxu0 0
      %1923 = vmatpush1.bf16.msra.mxu0 0
      %1924 = vmatprep.subr.bf16.mxu0 0
      %1925 = vmatpush1.bf16.msra.mxu0 0
      %1926 = vmatprep.subr.bf16.mxu0 0
      %1927 = vmatpush1.bf16.msra.mxu0 0
      %1928 = vmatprep.subr.bf16.mxu0 0
      %1929 = vmatpush1.bf16.msra.mxu0 0
      %1930 = vmatprep.subr.bf16.mxu0 0
      %1931 = vmatpush1.bf16.msra.mxu0 0
      %1932 = vmatprep.subr.bf16.mxu0 0
      %1933 = vmatpush1.bf16.msra.mxu0 0
      %1934 = vmatprep.subr.bf16.mxu0 0
      %1935 = vmatpush1.bf16.msra.mxu0 0
      %1936 = vmatprep.subr.bf16.mxu0 0
      %1937 = vmatpush1.bf16.msra.mxu0 0
      %1938 = vmatprep.subr.bf16.mxu0 0
      %1939 = vmatpush1.bf16.msra.mxu0 0
      %1940 = vmatprep.mubr.bf16.mxu0 0
      %1941 = vmatmul.mubr.bf16.gmra.mrb[0].mxu0 %v1906
      %v1942 = vpop.f32.mrb[0].mxu0
      %v1943 = vadd.f32 %v1166, %v1942
      %v1944 = vpop.f32.mrb[0].mxu0
      %v1945 = vpop.f32.mrb[0].mxu0
      %v1946 = vpop.f32.mrb[0].mxu0
      %1947 = vdwg.mxu0
      %v1948 = vadd.f32 %v1943, %v664
      %v1949 = vmul.f32 %v1948, 0.70710677
      %v1950 = vpack.c.bf16 %v1949, %v1949
      %v1952 = vsel %vm723, %v1950, 0
      %1954 = vmatprep.subr.bf16.mxu0 0
      %1955 = vmatpush1.bf16.xpose.msra.mxu0 %v1270
      %1956 = vmatprep.subr.bf16.mxu0 0
      %1957 = vmatpush1.bf16.xpose.msra.mxu0 %v1273
      %1958 = vmatprep.subr.bf16.mxu0 0
      %1959 = vmatpush1.bf16.xpose.msra.mxu0 %v1276
      %1960 = vmatprep.subr.bf16.mxu0 0
      %1961 = vmatpush1.bf16.xpose.msra.mxu0 %v1279
      %1962 = vmatprep.subr.bf16.mxu0 0
      %1963 = vmatpush1.bf16.xpose.msra.mxu0 %v1282
      %1964 = vmatprep.subr.bf16.mxu0 0
      %1965 = vmatpush1.bf16.xpose.msra.mxu0 %v1285
      %1966 = vmatprep.subr.bf16.mxu0 0
      %1967 = vmatpush1.bf16.xpose.msra.mxu0 %v1288
      %1968 = vmatprep.subr.bf16.mxu0 0
      %1969 = vmatpush1.bf16.xpose.msra.mxu0 %v1291
      %1970 = vmatprep.subr.bf16.mxu0 0
      %1971 = vmatpush1.bf16.xpose.msra.mxu0 0
      %1972 = vmatprep.subr.bf16.mxu0 0
      %1973 = vmatpush1.bf16.xpose.msra.mxu0 0
      %1974 = vmatprep.subr.bf16.mxu0 0
      %1975 = vmatpush1.bf16.xpose.msra.mxu0 0
      %1976 = vmatprep.subr.bf16.mxu0 0
      %1977 = vmatpush1.bf16.xpose.msra.mxu0 0
      %1978 = vmatprep.subr.bf16.mxu0 0
      %1979 = vmatpush1.bf16.xpose.msra.mxu0 0
      %1980 = vmatprep.subr.bf16.mxu0 0
      %1981 = vmatpush1.bf16.xpose.msra.mxu0 0
      %1982 = vmatprep.subr.bf16.mxu0 0
      %1983 = vmatpush1.bf16.xpose.msra.mxu0 0
      %1984 = vmatprep.subr.bf16.mxu0 0
      %1985 = vmatpush1.bf16.xpose.msra.mxu0 0
      %1986 = vmatprep.mubr.bf16.mxu0 0
      %1987 = vmatmul.mubr.bf16.gmra.mrb[0].mxu0 %v1952
      %v1988 = vpop.f32.mrb[0].mxu0
      %v1989 = vadd.f32 0.0, %v1988
      %v1990 = vpop.f32.mrb[0].mxu0
      %v1991 = vpop.f32.mrb[0].mxu0
      %v1992 = vpop.f32.mrb[0].mxu0
      %1993 = vdwg.mxu0
      %v1994 = vsel %vm1338, %v1989, -1e+09
      %v1995 = vsel %vm1340, %v1994, -inf
      %1996 = vmax.xlane.f32.xlu0 %v1995
      %v1997 = vpop.xlane.xlu0 %1996
      %v1998 = vsub.f32 %v1994, %v1997
      %v1999 = vmul.f32 %v1998, 1.442695
      %v2000 = vpow.pop %v1999
      %v2001 = vsel %vm1340, %v2000, 0.0
      %2002 = vadd.xlane.f32.xlu0 %v2001
      %v2003 = vpop.xlane.xlu0 %2002
      %v2004 = vrcp.pop %v2003
      %v2005 = vmul.f32 %v2000, %v2004
      %v2006 = vpack.c.bf16 %v2005, %v2005
      %2007 = vmatprep.subr.bf16.mxu0 0
      %2008 = vmatpush1.bf16.msra.mxu0 %v1385
      %2009 = vmatprep.subr.bf16.mxu0 0
      %2010 = vmatpush1.bf16.msra.mxu0 %v1386
      %2011 = vmatprep.subr.bf16.mxu0 0
      %2012 = vmatpush1.bf16.msra.mxu0 %v1387
      %2013 = vmatprep.subr.bf16.mxu0 0
      %2014 = vmatpush1.bf16.msra.mxu0 %v1388
      %2015 = vmatprep.subr.bf16.mxu0 0
      %2016 = vmatpush1.bf16.msra.mxu0 %v1389
      %2017 = vmatprep.subr.bf16.mxu0 0
      %2018 = vmatpush1.bf16.msra.mxu0 %v1390
      %2019 = vmatprep.subr.bf16.mxu0 0
      %2020 = vmatpush1.bf16.msra.mxu0 %v1391
      %2021 = vmatprep.subr.bf16.mxu0 0
      %2022 = vmatpush1.bf16.msra.mxu0 %v1392
      %2023 = vmatprep.subr.bf16.mxu0 0
      %2024 = vmatpush1.bf16.msra.mxu0 0
      %2025 = vmatprep.subr.bf16.mxu0 0
      %2026 = vmatpush1.bf16.msra.mxu0 0
      %2027 = vmatprep.subr.bf16.mxu0 0
      %2028 = vmatpush1.bf16.msra.mxu0 0
      %2029 = vmatprep.subr.bf16.mxu0 0
      %2030 = vmatpush1.bf16.msra.mxu0 0
      %2031 = vmatprep.subr.bf16.mxu0 0
      %2032 = vmatpush1.bf16.msra.mxu0 0
      %2033 = vmatprep.subr.bf16.mxu0 0
      %2034 = vmatpush1.bf16.msra.mxu0 0
      %2035 = vmatprep.subr.bf16.mxu0 0
      %2036 = vmatpush1.bf16.msra.mxu0 0
      %2037 = vmatprep.subr.bf16.mxu0 0
      %2038 = vmatpush1.bf16.msra.mxu0 0
      %2039 = vmatprep.mubr.bf16.mxu0 0
      %2040 = vmatmul.mubr.bf16.gmra.mrb[0].mxu0 %v2006
      %v2041 = vpop.f32.mrb[0].mxu0
      %v2042 = vadd.f32 0.0, %v2041
      %v2043 = vpop.f32.mrb[0].mxu0
      %v2044 = vpop.f32.mrb[0].mxu0
      %v2045 = vpop.f32.mrb[0].mxu0
      %2046 = vdwg.mxu0
      %v2047 = vpack.c.bf16 %v2042, %v2042
      %v2049 = vsel %vm723, %v2047, 0
      %2051 = vmatprep.subr.bf16.mxu0 0
      %2052 = vmatpush1.bf16.msra.mxu0 %v1461
      %2053 = vmatprep.subr.bf16.mxu0 0
      %2054 = vmatpush1.bf16.msra.mxu0 %v1462
      %2055 = vmatprep.subr.bf16.mxu0 0
      %2056 = vmatpush1.bf16.msra.mxu0 0
      %2057 = vmatprep.subr.bf16.mxu0 0
      %2058 = vmatpush1.bf16.msra.mxu0 0
      %2059 = vmatprep.subr.bf16.mxu0 0
      %2060 = vmatpush1.bf16.msra.mxu0 0
      %2061 = vmatprep.subr.bf16.mxu0 0
      %2062 = vmatpush1.bf16.msra.mxu0 0
      %2063 = vmatprep.subr.bf16.mxu0 0
      %2064 = vmatpush1.bf16.msra.mxu0 0
      %2065 = vmatprep.subr.bf16.mxu0 0
      %2066 = vmatpush1.bf16.msra.mxu0 0
      %2067 = vmatprep.subr.bf16.mxu0 0
      %2068 = vmatpush1.bf16.msra.mxu0 0
      %2069 = vmatprep.subr.bf16.mxu0 0
      %2070 = vmatpush1.bf16.msra.mxu0 0
      %2071 = vmatprep.subr.bf16.mxu0 0
      %2072 = vmatpush1.bf16.msra.mxu0 0
      %2073 = vmatprep.subr.bf16.mxu0 0
      %2074 = vmatpush1.bf16.msra.mxu0 0
      %2075 = vmatprep.subr.bf16.mxu0 0
      %2076 = vmatpush1.bf16.msra.mxu0 0
      %2077 = vmatprep.subr.bf16.mxu0 0
      %2078 = vmatpush1.bf16.msra.mxu0 0
      %2079 = vmatprep.subr.bf16.mxu0 0
      %2080 = vmatpush1.bf16.msra.mxu0 0
      %2081 = vmatprep.subr.bf16.mxu0 0
      %2082 = vmatpush1.bf16.msra.mxu0 0
      %2083 = vmatprep.mubr.bf16.mxu0 0
      %2084 = vmatmul.mubr.bf16.gmra.mrb[0].mxu0 %v2049
      %v2085 = vpop.f32.mrb[0].mxu0
      %v2086 = vadd.f32 %v1451, %v2085
      %v2087 = vpop.f32.mrb[0].mxu0
      %v2088 = vpop.f32.mrb[0].mxu0
      %v2089 = vpop.f32.mrb[0].mxu0
      %2090 = vdwg.mxu0
      %v2091 = vadd.f32 %v1903, %v2086
      %v2092 = vmul.f32 %v2091, 0.70710677
      %v2093 = vadd.f32 %v2092, %v1511
      %v2094 = vmul.f32 %v2093, 0.70710677
      %v2095 = vld [vmem:[%s14] sm:$0xf]
      %v2096 = vld [vmem:[%s14 + $0x4] sm:$0xf]
      %v2097 = vld [vmem:[%s14 + $0x8] sm:$0xf]
      %v2098 = vld [vmem:[%s14 + $0xc] sm:$0xf]
      %v2099 = vpack.c.bf16 %v2094, %v2094
      %v2100 = vld [vmem:[%s15] sm:$0x1]
      %v2102 = vlaneseq
      %v2103 = vshrl.u32 %v2102, 7
      %v2104 = vsub.s32 0, %v2103
      %v2105 = vrot.slane %v2100, %v2104
      %v2111 = vunpack.c.l.b16 %v2095
      %v2112 = vunpack.c.l.b16 %v2096
      %v2113 = vunpack.c.l.b16 %v2097
      %v2114 = vunpack.c.l.b16 %v2098
      %v2115 = vpack.c.b16 %v2112, %v2111
      %v2116 = vpack.c.b16 %v2114, %v2113
      %v2120 = vsel %vm723, %v2099, 0
      %2122 = vmatprep.subr.bf16.mxu0 0
      %2123 = vmatpush1.bf16.msra.mxu0 %v2115
      %2124 = vmatprep.subr.bf16.mxu0 0
      %2125 = vmatpush1.bf16.msra.mxu0 %v2116
      %2126 = vmatprep.subr.bf16.mxu0 0
      %2127 = vmatpush1.bf16.msra.mxu0 0
      %2128 = vmatprep.subr.bf16.mxu0 0
      %2129 = vmatpush1.bf16.msra.mxu0 0
      %2130 = vmatprep.subr.bf16.mxu0 0
      %2131 = vmatpush1.bf16.msra.mxu0 0
      %2132 = vmatprep.subr.bf16.mxu0 0
      %2133 = vmatpush1.bf16.msra.mxu0 0
      %2134 = vmatprep.subr.bf16.mxu0 0
      %2135 = vmatpush1.bf16.msra.mxu0 0
      %2136 = vmatprep.subr.bf16.mxu0 0
      %2137 = vmatpush1.bf16.msra.mxu0 0
      %2138 = vmatprep.subr.bf16.mxu0 0
      %2139 = vmatpush1.bf16.msra.mxu0 0
      %2140 = vmatprep.subr.bf16.mxu0 0
      %2141 = vmatpush1.bf16.msra.mxu0 0
      %2142 = vmatprep.subr.bf16.mxu0 0
      %2143 = vmatpush1.bf16.msra.mxu0 0
      %2144 = vmatprep.subr.bf16.mxu0 0
      %2145 = vmatpush1.bf16.msra.mxu0 0
      %2146 = vmatprep.subr.bf16.mxu0 0
      %2147 = vmatpush1.bf16.msra.mxu0 0
      %2148 = vmatprep.subr.bf16.mxu0 0
      %2149 = vmatpush1.bf16.msra.mxu0 0
      %2150 = vmatprep.subr.bf16.mxu0 0
      %2151 = vmatpush1.bf16.msra.mxu0 0
      %2152 = vmatprep.subr.bf16.mxu0 0
      %2153 = vmatpush1.bf16.msra.mxu0 0
      %2154 = vmatprep.mubr.bf16.mxu0 0
      %2155 = vmatmul.mubr.bf16.gmra.mrb[0].mxu0 %v2120
      %v2156 = vpop.f32.mrb[0].mxu0
      %v2157 = vadd.f32 %v2105, %v2156
      %v2158 = vpop.f32.mrb[0].mxu0
      %v2159 = vpop.f32.mrb[0].mxu0
      %v2160 = vpop.f32.mrb[0].mxu0
      %2161 = vdwg.mxu0
      %v2162 = vld [vmem:[%s16] sm:$0xf]
      %v2163 = vld [vmem:[%s16 + $0x4] sm:$0xf]
      %v2164 = vld [vmem:[%s16 + $0x8] sm:$0xf]
      %v2165 = vld [vmem:[%s16 + $0xc] sm:$0xf]
      %v2166 = vpack.c.bf16 %v2157, %v2157
      %v2167 = vld [vmem:[%s17] sm:$0x1]
      %v2169 = vlaneseq
      %v2170 = vshrl.u32 %v2169, 7
      %v2171 = vsub.s32 0, %v2170
      %v2172 = vrot.slane %v2167, %v2171
      %v2178 = vunpack.c.l.b16 %v2162
      %v2179 = vunpack.c.l.b16 %v2163
      %v2180 = vunpack.c.l.b16 %v2164
      %v2181 = vunpack.c.l.b16 %v2165
      %v2182 = vpack.c.b16 %v2179, %v2178
      %v2183 = vpack.c.b16 %v2181, %v2180
      %v2187 = vsel %vm723, %v2166, 0
      %2189 = vmatprep.subr.bf16.mxu0 0
      %2190 = vmatpush1.bf16.msra.mxu0 %v2182
      %2191 = vmatprep.subr.bf16.mxu0 0
      %2192 = vmatpush1.bf16.msra.mxu0 %v2183
      %2193 = vmatprep.subr.bf16.mxu0 0
      %2194 = vmatpush1.bf16.msra.mxu0 0
      %2195 = vmatprep.subr.bf16.mxu0 0
      %2196 = vmatpush1.bf16.msra.mxu0 0
      %2197 = vmatprep.subr.bf16.mxu0 0
      %2198 = vmatpush1.bf16.msra.mxu0 0
      %2199 = vmatprep.subr.bf16.mxu0 0
      %2200 = vmatpush1.bf16.msra.mxu0 0
      %2201 = vmatprep.subr.bf16.mxu0 0
      %2202 = vmatpush1.bf16.msra.mxu0 0
      %2203 = vmatprep.subr.bf16.mxu0 0
      %2204 = vmatpush1.bf16.msra.mxu0 0
      %2205 = vmatprep.subr.bf16.mxu0 0
      %2206 = vmatpush1.bf16.msra.mxu0 0
      %2207 = vmatprep.subr.bf16.mxu0 0
      %2208 = vmatpush1.bf16.msra.mxu0 0
      %2209 = vmatprep.subr.bf16.mxu0 0
      %2210 = vmatpush1.bf16.msra.mxu0 0
      %2211 = vmatprep.subr.bf16.mxu0 0
      %2212 = vmatpush1.bf16.msra.mxu0 0
      %2213 = vmatprep.subr.bf16.mxu0 0
      %2214 = vmatpush1.bf16.msra.mxu0 0
      %2215 = vmatprep.subr.bf16.mxu0 0
      %2216 = vmatpush1.bf16.msra.mxu0 0
      %2217 = vmatprep.subr.bf16.mxu0 0
      %2218 = vmatpush1.bf16.msra.mxu0 0
      %2219 = vmatprep.subr.bf16.mxu0 0
      %2220 = vmatpush1.bf16.msra.mxu0 0
      %2221 = vmatprep.mubr.bf16.mxu0 0
      %2222 = vmatmul.mubr.bf16.gmra.mrb[0].mxu0 %v2187
      %v2223 = vpop.f32.mrb[0].mxu0
      %v2224 = vadd.f32 %v2172, %v2223
      %v2225 = vpop.f32.mrb[0].mxu0
      %v2226 = vpop.f32.mrb[0].mxu0
      %v2227 = vpop.f32.mrb[0].mxu0
      %2228 = vdwg.mxu0
      %2229 = vst [vmem:[%s658] sm:$0x7f] %v2224
      %2230 = vst [vmem:[%s662] sm:$0x7f] %v2005
      %p2231 = scmp.lt.s32.totalorder %s31, 1
      %s2232 = scalar_select %p2231, %s31, 1
      %s2233 = smul.addr %s2232, 8
      %s2234 = scalar_lea.vmem %s18, %s2233
      %p2235 = scmp.lt.s32.totalorder %s31, 1
      %s2236 = scalar_select %p2235, %s31, 1
      %s2237 = smul.addr %s2236, 8
      %s2238 = scalar_lea.vmem %s19, %s2237
      // Predicated region
      $region93: #{_teacher_forced_forward.3} parent=91 // pred_check
        %p2239 = pneg %p447
      $region94: #{_teacher_forced_forward.3} parent=91 // pred_check_branch
        %2241 = sbr.rel (%p2239) target = $region96
      $region95: #{_teacher_forced_forward.3} parent=91 // pred_region
        _
      $region96: #{_teacher_forced_forward.3} parent=91 // pred_fallthru
        _
      // Predicated region
      $region97: #{_teacher_forced_forward.3} parent=91 // pred_check
        %p2242 = pneg %p473
      $region98: #{_teacher_forced_forward.3} parent=91 // pred_check_branch
        %2244 = sbr.rel (%p2242) target = $region100
      $region99: #{_teacher_forced_forward.3} parent=91 // pred_region
        _
      $region100: #{_teacher_forced_forward.3} parent=91 // pred_fallthru
        _
    $region92: #{_teacher_forced_forward.3} parent=5 // pred_fallthru
      _
    %p2245 = scmp.le.s32.totalorder 2, %s26
    // Predicated region
    $region101: #{_teacher_forced_forward.3} parent=5 // pred_check
      %p2246 = pneg %p2245
    $region102: #{_teacher_forced_forward.3} parent=5 // pred_check_branch
      %2248 = sbr.rel (%p2246) target = $region104
    $region103: #{_teacher_forced_forward.3} parent=5 // pred_region
      %s2249 = ssub.s32 %s26, 2
      // Predicated region
      $region105: #{_teacher_forced_forward.3} parent=103 // pred_check
        %p2250 = pneg %p453
      $region106: #{_teacher_forced_forward.3} parent=103 // pred_check_branch
        %2252 = sbr.rel (%p2250) target = $region108
      $region107: #{_teacher_forced_forward.3} parent=103 // pred_region
        %p2253 = scmp.lt.s32.totalorder %s32, 1
        %s2254 = scalar_select %p2253, %s32, 1
        %s2255 = smul.addr %s2254, 8
        %s2256 = scalar_lea.vmem %s18, %s2255
      $region108: #{_teacher_forced_forward.3} parent=103 // pred_fallthru
        _
      // Predicated region
      $region109: #{_teacher_forced_forward.3} parent=103 // pred_check
        %p2257 = pneg %p479
      $region110: #{_teacher_forced_forward.3} parent=103 // pred_check_branch
        %2259 = sbr.rel (%p2257) target = $region112
      $region111: #{_teacher_forced_forward.3} parent=103 // pred_region
        %p2260 = scmp.lt.s32.totalorder %s32, 1
        %s2261 = scalar_select %p2260, %s32, 1
        %s2262 = smul.addr %s2261, 8
        %s2263 = scalar_lea.vmem %s19, %s2262
      $region112: #{_teacher_forced_forward.3} parent=103 // pred_fallthru
        _
    $region104: #{_teacher_forced_forward.3} parent=5 // pred_fallthru
      _
  $region6: #{_teacher_forced_forward.3} parent=0 // loop_footer
    %s30 = sadd.s32 1, %s26
  $region7: #{_teacher_forced_forward.3} parent=0 // loop_footer_branch
    %25 = sbr.rel target = $region3
  $region8: #{_teacher_forced_forward.3} parent=0 // loop_exit
    _

</llo_original>
